<compile_context>
chip_gen: v7x
topology: tpu7x:2x2x1
jax: 0.10.0
libtpu: 0.0.40
codegen_flags: <defaults>
</compile_context>

<pallas_src>
import jax
import jax.numpy as jnp
from jax.experimental import pallas as pl
from jax.experimental.pallas import tpu as pltpu


# ------------------------------ fused kernel -------------------------------

def _make_generator_kernel(S, Bp, H, num_layers, out_pad):
    """Builds the fused kernel for static (S, padded batch Bp, H, num_layers)."""
    H2, H3, H4 = 2 * H, 3 * H, 4 * H
    B2 = 2 * Bp

    def kernel(*args):
        # args = [x, (wih, whh, b) * L, wout, bout, o_ref, xp_scr, act_scr]
        x_ref = args[0]
        layer_refs = [args[1 + 3 * l: 4 + 3 * l] for l in range(num_layers)]
        wout_ref = args[1 + 3 * num_layers]
        bout_ref = args[2 + 3 * num_layers]
        o_ref = args[3 + 3 * num_layers]
        xp_scr = args[4 + 3 * num_layers]    # (S*2Bp, 4H) per-step gate inputs
        act_scr = args[5 + 3 * num_layers]   # (S*Bp, 2H)  inter-layer activations

        # Rows [0, Bp) carry the forward recurrence, rows [Bp, 2Bp) the backward.
        row_ids = jax.lax.broadcasted_iota(jnp.int32, (B2, 1), 0)
        is_fwd = row_ids < Bp

        for l in range(num_layers):
            wih_ref, whh_ref, b_ref = layer_refs[l]
            xin = x_ref[...] if l == 0 else act_scr[...]           # (S*Bp, D_l)

            # Hoisted, time-independent input projection for BOTH directions in
            # one bf16 MXU matmul (f32 accumulate); bias folded in.
            proj = (jnp.dot(xin.astype(jnp.bfloat16), wih_ref[...],
                            preferred_element_type=jnp.float32)
                    + b_ref[...])                                   # (S*Bp, 8H)

            # Rearrange once (OFF the serial chain, tile-aligned copies) into the
            # per-recurrence-step layout: at step s, rows :Bp hold fwd lanes at
            # time s, rows Bp: hold bwd lanes at time S-1-s (pre-reversed).
            for s in range(S):
                rs = s * Bp
                xp_scr[s * B2: s * B2 + Bp, :] = proj[rs:rs + Bp, :H4]
                xp_scr[(S - 1 - s) * B2 + Bp: (S - s) * B2, :] = proj[rs:rs + Bp, H4:]

            # Serial recurrence: one (2Bp, H) @ (H, 8H) f32 MXU matmul per step
            # covering both directions; direction selection is a pure-VPU
            # row-mask select on 128-lane-aligned halves (no per-step concat).
            h = jnp.zeros((B2, H), jnp.float32)
            c = jnp.zeros((B2, H), jnp.float32)
            for s in range(S):
                hh = jnp.dot(h, whh_ref[...],
                             preferred_element_type=jnp.float32)   # (2Bp, 8H)
                g = (jnp.where(is_fwd, hh[:, :H4], hh[:, H4:])
                     + xp_scr[s * B2:(s + 1) * B2, :])              # (2Bp, 4H) i,f,o,g

                sig = jax.nn.sigmoid(g[:, :H3])                     # i, f, o (contiguous)
                gg = jnp.tanh(g[:, H3:])                            # cell gate g

                c = sig[:, H:H2] * c + sig[:, :H] * gg              # f*c + i*g
                h = sig[:, H2:H3] * jnp.tanh(c)                     # o*tanh(c)

                # Sublane-aligned (Bp is a multiple of 8) stores, not on the
                # recurrence dependency chain.
                act_scr[s * Bp:(s + 1) * Bp, :H] = h[:Bp]               # fwd @ time s
                act_scr[(S - 1 - s) * Bp:(S - s) * Bp, H:] = h[Bp:]     # bwd @ time S-1-s

        # Fused output Linear over the whole flattened sequence; output width is
        # padded to a multiple of 128 lanes so the store/writeback is lane-dense.
        o_ref[...] = (jnp.dot(act_scr[...].astype(jnp.bfloat16), wout_ref[...],
                              preferred_element_type=jnp.float32)
                      + bout_ref[...])

    return kernel


# --------------------- one-time parameter repacking -------------------------

def pack_params(params):
    """One-time repack of PyTorch-layout params into kernel layout.

    Gate reorder (i,f,g,o -> i,f,o,g so sigmoid gates are contiguous), fwd/bwd
    concat on the lane dim, bias folding, and bf16 cast of the two big slab
    matmul weights.  Hoisted out of generator_forward so it is not re-executed
    per call.
    """
    H = params["lstm"][0]["w_hh_f"].shape[1]

    def reorder(w):
        return jnp.concatenate([w[:H], w[H:2 * H], w[3 * H:], w[2 * H:3 * H]], axis=0)

    layers = []
    for layer in params["lstm"]:
        wih = jnp.concatenate([reorder(layer["w_ih_f"]).T,
                               reorder(layer["w_ih_b"]).T],
                              axis=1).astype(jnp.bfloat16)              # (D_l, 8H) bf16
        whh = jnp.concatenate([reorder(layer["w_hh_f"]).T,
                               reorder(layer["w_hh_b"]).T], axis=1)     # (H, 8H) f32
        b = jnp.concatenate([reorder(layer["b_ih_f"] + layer["b_hh_f"]),
                             reorder(layer["b_ih_b"] + layer["b_hh_b"])]
                            ).reshape(1, 8 * H)                          # (1, 8H) f32
        layers.append({"wih": wih, "whh": whh, "b": b})

    return {"layers": layers,
            "w_out_t": jnp.transpose(params["w_out"]).astype(jnp.bfloat16),  # (2H, out)
            "b_out": params["b_out"]}                                        # (out,)


# ---------------------------- Generator forward ----------------------------

def generator_forward(packed, x):
    """x: (seq, batch, input_dim) -> (seq, batch, output_dim)."""
    S, B, D = x.shape
    layers = packed["layers"]
    num_layers = len(layers)
    H = layers[0]["whh"].shape[0]
    out_dim = packed["b_out"].shape[0]

    Bp = max(8, -(-B // 8) * 8)                  # batch padded to whole sublane tiles
    B2 = 2 * Bp
    OP = max(128, -(-out_dim // 128) * 128)      # lane-dense output width

    # Zero-padded batch rows never mix with real rows (all ops are row-local)
    # and are sliced off at the end; padded output lanes have zero weights/bias.
    x_p = jnp.pad(x, ((0, 0), (0, Bp - B), (0, 0))).reshape(S * Bp, D)
    wout = jnp.pad(packed["w_out_t"], ((0, 0), (0, OP - out_dim)))
    bout = jnp.pad(packed["b_out"], (0, OP - out_dim)).reshape(1, OP).astype(jnp.float32)

    kernel_args = [x_p]
    for layer in layers:
        kernel_args += [layer["wih"], layer["whh"], layer["b"]]
        # TODO(synk): nn.LSTM dropout=0.5 between layers is train-mode only;
        # this inference-style forward treats it as identity.
    kernel_args += [wout, bout]

    # VMEM budget + cost estimate from the real footprint (capped at v7x's 64 MiB).
    scratch_bytes = (S * B2 * 4 * H + S * Bp * 2 * H) * 4
    arg_bytes = sum(a.size * a.dtype.itemsize for a in kernel_args) + S * Bp * OP * 4
    vmem_limit = int(min(64 * 1024 * 1024,
                         max(32 * 1024 * 1024, 3 * (scratch_bytes + arg_bytes))))

    flops = 0
    d_in = D
    for _ in range(num_layers):
        flops += 2 * S * Bp * d_in * 8 * H       # hoisted input projection
        flops += 2 * S * B2 * H * 8 * H          # serial recurrence matmuls
        d_in = 2 * H
    flops += 2 * S * Bp * 2 * H * OP             # output Linear
    cost = pl.CostEstimate(flops=flops,
                           transcendentals=num_layers * S * B2 * 5 * H,
                           bytes_accessed=arg_bytes + scratch_bytes)

    out_flat = pl.pallas_call(
        _make_generator_kernel(S, Bp, H, num_layers, OP),
        out_shape=jax.ShapeDtypeStruct((S * Bp, OP), jnp.float32),
        scratch_shapes=[
            pltpu.VMEM((S * B2, 4 * H), jnp.float32),   # per-step gate inputs (xp)
            pltpu.VMEM((S * Bp, 2 * H), jnp.float32),   # inter-layer activations
        ],
        compiler_params=pltpu.CompilerParams(vmem_limit_bytes=vmem_limit),
        cost_estimate=cost,
    )(*kernel_args)

    return out_flat.reshape(S, Bp, OP)[:, :B, :out_dim]


# ------------------------- deterministic param init ------------------------

def init_params(key, input_dim, hidden_dim, output_dim, num_layers):
    params = {"lstm": []}
    k = 1.0 / jnp.sqrt(hidden_dim)

    def unif(key, shape):
        return jax.random.uniform(key, shape, jnp.float32, -k, k)

    for layer_idx in range(num_layers):
        d_in = input_dim if layer_idx == 0 else 2 * hidden_dim
        keys = jax.random.split(key, 9)
        key = keys[0]
        layer = {
            "w_ih_f": unif(keys[1], (4 * hidden_dim, d_in)),
            "w_hh_f": unif(keys[2], (4 * hidden_dim, hidden_dim)),
            "b_ih_f": unif(keys[3], (4 * hidden_dim,)),
            "b_hh_f": unif(keys[4], (4 * hidden_dim,)),
            "w_ih_b": unif(keys[5], (4 * hidden_dim, d_in)),
            "w_hh_b": unif(keys[6], (4 * hidden_dim, hidden_dim)),
            "b_ih_b": unif(keys[7], (4 * hidden_dim,)),
            "b_hh_b": unif(keys[8], (4 * hidden_dim,)),
        }
        params["lstm"].append(layer)

    ko = 1.0 / jnp.sqrt(2 * hidden_dim)
    k1, k2 = jax.random.split(key)
    params["w_out"] = jax.random.uniform(
        k1, (output_dim, 2 * hidden_dim), jnp.float32, -ko, ko)
    params["b_out"] = jax.random.uniform(
        k2, (output_dim,), jnp.float32, -ko, ko)
    return params


# ------------------------------ JAX reference -------------------------------

_HP = jax.lax.Precision.HIGHEST


def _lstm_dir_ref(x, w_ih, w_hh, b_ih, b_hh, reverse):
    S, B, _ = x.shape
    H = w_hh.shape[1]
    xs = x[::-1] if reverse else x

    def step(carry, xt):
        h, c = carry
        g = (jnp.dot(xt, w_ih.T, precision=_HP) + b_ih
             + jnp.dot(h, w_hh.T, precision=_HP) + b_hh)
        i, f, gg, o = jnp.split(g, 4, axis=-1)
        i, f, o = jax.nn.sigmoid(i), jax.nn.sigmoid(f), jax.nn.sigmoid(o)
        gg = jnp.tanh(gg)
        c = f * c + i * gg
        h = o * jnp.tanh(c)
        return (h, c), h

    init = (jnp.zeros((B, H), jnp.float32), jnp.zeros((B, H), jnp.float32))
    _, ys = jax.lax.scan(step, init, xs)
    return ys[::-1] if reverse else ys


def generator_ref(params, x):
    h = x
    for layer in params["lstm"]:
        fwd = _lstm_dir_ref(h, layer["w_ih_f"], layer["w_hh_f"],
                            layer["b_ih_f"], layer["b_hh_f"], False)
        bwd = _lstm_dir_ref(h, layer["w_ih_b"], layer["w_hh_b"],
                            layer["b_ih_b"], layer["b_hh_b"], True)
        h = jnp.concatenate([fwd, bwd], axis=-1)
    S, B, HH = h.shape
    flat = h.reshape(S * B, HH)
    out = jnp.dot(flat, params["w_out"].T, precision=_HP) + params["b_out"]
    return out.reshape(S, B, -1)


# ----------------------------------- main -----------------------------------

if __name__ == "__main__":
    input_dim, hidden_dim, output_dim, num_layers = 8, 32, 4, 2
    seq_len, batch = 8, 4

    root = jax.random.PRNGKey(0)
    k_param, k_x = jax.random.split(root)
    params = init_params(k_param, input_dim, hidden_dim, output_dim, num_layers)
    x = jax.random.normal(k_x, (seq_len, batch, input_dim), jnp.float32)

    packed = pack_params(params)                 # one-time weight repacking
    fwd = jax.jit(generator_forward)
    out = jax.block_until_ready(fwd(packed, x))

    assert out.shape == (seq_len, batch, output_dim), out.shape

    ref = generator_ref(params, x)
    # The two big slab matmuls (input projection, output Linear) run in bf16
    # with f32 accumulation; the serial recurrence stays f32, so the error does
    # not compound over time steps. Tolerance budgets for the bf16 casts.
    assert jnp.allclose(out, ref, atol=1e-2, rtol=1e-2), (
        float(jnp.max(jnp.abs(out - ref))))

    print("KERNEL_OK")
</pallas_src>

<mosaic_0001>
module attributes {stable_mosaic.version = 11 : i64} {
  func.func @kernel(%arg0: memref<64x8xf32, #tpu.memory_space<vmem>>, %arg1: memref<8x256xbf16, #tpu.memory_space<vmem>>, %arg2: memref<32x256xf32, #tpu.memory_space<vmem>>, %arg3: memref<1x256xf32, #tpu.memory_space<vmem>>, %arg4: memref<64x256xbf16, #tpu.memory_space<vmem>>, %arg5: memref<32x256xf32, #tpu.memory_space<vmem>>, %arg6: memref<1x256xf32, #tpu.memory_space<vmem>>, %arg7: memref<64x128xbf16, #tpu.memory_space<vmem>>, %arg8: memref<1x128xf32, #tpu.memory_space<vmem>>, %arg9: memref<64x128xf32, #tpu.memory_space<vmem>>, %arg10: memref<128x128xf32, #tpu.memory_space<vmem>>, %arg11: memref<64x64xf32, #tpu.memory_space<vmem>>) attributes {dimension_semantics = [], scalar_prefetch = 0 : i64, scratch_operands = 2 : i64, tpu.core_type = #tpu.core_type<tc>} {
    %0 = tpu.iota {dimensions = array<i32: 0>} : vector<16x1xi32>
    %c8_i32 = arith.constant 8 : i32
    %1 = vector.broadcast %c8_i32 : i32 to vector<16x1xi32>
    %2 = arith.cmpi slt, %0, %1 : vector<16x1xi32>
    %c0 = arith.constant 0 : index
    %c0_0 = arith.constant 0 : index
    %3 = vector.load %arg0[%c0, %c0_0] : memref<64x8xf32, #tpu.memory_space<vmem>>, vector<64x8xf32>
    %4 = arith.truncf %3 : vector<64x8xf32> to vector<64x8xbf16>
    %c0_1 = arith.constant 0 : index
    %c0_2 = arith.constant 0 : index
    %5 = vector.load %arg1[%c0_1, %c0_2] : memref<8x256xbf16, #tpu.memory_space<vmem>>, vector<8x256xbf16>
    %cst = arith.constant dense<0.000000e+00> : vector<64x256xf32>
    %6 = tpu.matmul %4, %5, %cst {dimension_numbers = #tpu.dot_dimension_numbers<[1], [0], [0], [1], [0, 0, 1, 1], [], []>} : vector<64x8xbf16>, vector<8x256xbf16>, vector<64x256xf32> -> vector<64x256xf32>
    %c0_3 = arith.constant 0 : index
    %c0_4 = arith.constant 0 : index
    %7 = vector.load %arg3[%c0_3, %c0_4] : memref<1x256xf32, #tpu.memory_space<vmem>>, vector<1x256xf32>
    %8 = vector.broadcast %7 : vector<1x256xf32> to vector<64x256xf32>
    %9 = arith.addf %6, %8 : vector<64x256xf32>
    %10 = vector.extract_strided_slice %9 {offsets = [0, 0], sizes = [8, 128], strides = [1, 1]} : vector<64x256xf32> to vector<8x128xf32>
    %c0_5 = arith.constant 0 : index
    %c0_6 = arith.constant 0 : index
    %11 = vector.load %arg10[%c0_5, %c0_6] : memref<128x128xf32, #tpu.memory_space<vmem>>, vector<8x128xf32>
    tpu.vector_store %arg10[%c0_5, %c0_6], %10 {strides = array<i32>} : memref<128x128xf32, #tpu.memory_space<vmem>>, vector<8x128xf32>,
    %12 = vector.extract_strided_slice %9 {offsets = [0, 128], sizes = [8, 128], strides = [1, 1]} : vector<64x256xf32> to vector<8x128xf32>
    %c120 = arith.constant 120 : index
    %c0_7 = arith.constant 0 : index
    %13 = vector.load %arg10[%c120, %c0_7] : memref<128x128xf32, #tpu.memory_space<vmem>>, vector<8x128xf32>
    tpu.vector_store %arg10[%c120, %c0_7], %12 {strides = array<i32>} : memref<128x128xf32, #tpu.memory_space<vmem>>, vector<8x128xf32>,
    %14 = vector.extract_strided_slice %9 {offsets = [8, 0], sizes = [8, 128], strides = [1, 1]} : vector<64x256xf32> to vector<8x128xf32>
    %c16 = arith.constant 16 : index
    %c0_8 = arith.constant 0 : index
    %15 = vector.load %arg10[%c16, %c0_8] : memref<128x128xf32, #tpu.memory_space<vmem>>, vector<8x128xf32>
    tpu.vector_store %arg10[%c16, %c0_8], %14 {strides = array<i32>} : memref<128x128xf32, #tpu.memory_space<vmem>>, vector<8x128xf32>,
    %16 = vector.extract_strided_slice %9 {offsets = [8, 128], sizes = [8, 128], strides = [1, 1]} : vector<64x256xf32> to vector<8x128xf32>
    %c104 = arith.constant 104 : index
    %c0_9 = arith.constant 0 : index
    %17 = vector.load %arg10[%c104, %c0_9] : memref<128x128xf32, #tpu.memory_space<vmem>>, vector<8x128xf32>
    tpu.vector_store %arg10[%c104, %c0_9], %16 {strides = array<i32>} : memref<128x128xf32, #tpu.memory_space<vmem>>, vector<8x128xf32>,
    %18 = vector.extract_strided_slice %9 {offsets = [16, 0], sizes = [8, 128], strides = [1, 1]} : vector<64x256xf32> to vector<8x128xf32>
    %c32 = arith.constant 32 : index
    %c0_10 = arith.constant 0 : index
    %19 = vector.load %arg10[%c32, %c0_10] : memref<128x128xf32, #tpu.memory_space<vmem>>, vector<8x128xf32>
    tpu.vector_store %arg10[%c32, %c0_10], %18 {strides = array<i32>} : memref<128x128xf32, #tpu.memory_space<vmem>>, vector<8x128xf32>,
    %20 = vector.extract_strided_slice %9 {offsets = [16, 128], sizes = [8, 128], strides = [1, 1]} : vector<64x256xf32> to vector<8x128xf32>
    %c88 = arith.constant 88 : index
    %c0_11 = arith.constant 0 : index
    %21 = vector.load %arg10[%c88, %c0_11] : memref<128x128xf32, #tpu.memory_space<vmem>>, vector<8x128xf32>
    tpu.vector_store %arg10[%c88, %c0_11], %20 {strides = array<i32>} : memref<128x128xf32, #tpu.memory_space<vmem>>, vector<8x128xf32>,
    %22 = vector.extract_strided_slice %9 {offsets = [24, 0], sizes = [8, 128], strides = [1, 1]} : vector<64x256xf32> to vector<8x128xf32>
    %c48 = arith.constant 48 : index
    %c0_12 = arith.constant 0 : index
    %23 = vector.load %arg10[%c48, %c0_12] : memref<128x128xf32, #tpu.memory_space<vmem>>, vector<8x128xf32>
    tpu.vector_store %arg10[%c48, %c0_12], %22 {strides = array<i32>} : memref<128x128xf32, #tpu.memory_space<vmem>>, vector<8x128xf32>,
    %24 = vector.extract_strided_slice %9 {offsets = [24, 128], sizes = [8, 128], strides = [1, 1]} : vector<64x256xf32> to vector<8x128xf32>
    %c72 = arith.constant 72 : index
    %c0_13 = arith.constant 0 : index
    %25 = vector.load %arg10[%c72, %c0_13] : memref<128x128xf32, #tpu.memory_space<vmem>>, vector<8x128xf32>
    tpu.vector_store %arg10[%c72, %c0_13], %24 {strides = array<i32>} : memref<128x128xf32, #tpu.memory_space<vmem>>, vector<8x128xf32>,
    %26 = vector.extract_strided_slice %9 {offsets = [32, 0], sizes = [8, 128], strides = [1, 1]} : vector<64x256xf32> to vector<8x128xf32>
    %c64 = arith.constant 64 : index
    %c0_14 = arith.constant 0 : index
    %27 = vector.load %arg10[%c64, %c0_14] : memref<128x128xf32, #tpu.memory_space<vmem>>, vector<8x128xf32>
    tpu.vector_store %arg10[%c64, %c0_14], %26 {strides = array<i32>} : memref<128x128xf32, #tpu.memory_space<vmem>>, vector<8x128xf32>,
    %28 = vector.extract_strided_slice %9 {offsets = [32, 128], sizes = [8, 128], strides = [1, 1]} : vector<64x256xf32> to vector<8x128xf32>
    %c56 = arith.constant 56 : index
    %c0_15 = arith.constant 0 : index
    %29 = vector.load %arg10[%c56, %c0_15] : memref<128x128xf32, #tpu.memory_space<vmem>>, vector<8x128xf32>
    tpu.vector_store %arg10[%c56, %c0_15], %28 {strides = array<i32>} : memref<128x128xf32, #tpu.memory_space<vmem>>, vector<8x128xf32>,
    %30 = vector.extract_strided_slice %9 {offsets = [40, 0], sizes = [8, 128], strides = [1, 1]} : vector<64x256xf32> to vector<8x128xf32>
    %c80 = arith.constant 80 : index
    %c0_16 = arith.constant 0 : index
    %31 = vector.load %arg10[%c80, %c0_16] : memref<128x128xf32, #tpu.memory_space<vmem>>, vector<8x128xf32>
    tpu.vector_store %arg10[%c80, %c0_16], %30 {strides = array<i32>} : memref<128x128xf32, #tpu.memory_space<vmem>>, vector<8x128xf32>,
    %32 = vector.extract_strided_slice %9 {offsets = [40, 128], sizes = [8, 128], strides = [1, 1]} : vector<64x256xf32> to vector<8x128xf32>
    %c40 = arith.constant 40 : index
    %c0_17 = arith.constant 0 : index
    %33 = vector.load %arg10[%c40, %c0_17] : memref<128x128xf32, #tpu.memory_space<vmem>>, vector<8x128xf32>
    tpu.vector_store %arg10[%c40, %c0_17], %32 {strides = array<i32>} : memref<128x128xf32, #tpu.memory_space<vmem>>, vector<8x128xf32>,
    %34 = vector.extract_strided_slice %9 {offsets = [48, 0], sizes = [8, 128], strides = [1, 1]} : vector<64x256xf32> to vector<8x128xf32>
    %c96 = arith.constant 96 : index
    %c0_18 = arith.constant 0 : index
    %35 = vector.load %arg10[%c96, %c0_18] : memref<128x128xf32, #tpu.memory_space<vmem>>, vector<8x128xf32>
    tpu.vector_store %arg10[%c96, %c0_18], %34 {strides = array<i32>} : memref<128x128xf32, #tpu.memory_space<vmem>>, vector<8x128xf32>,
    %36 = vector.extract_strided_slice %9 {offsets = [48, 128], sizes = [8, 128], strides = [1, 1]} : vector<64x256xf32> to vector<8x128xf32>
    %c24 = arith.constant 24 : index
    %c0_19 = arith.constant 0 : index
    %37 = vector.load %arg10[%c24, %c0_19] : memref<128x128xf32, #tpu.memory_space<vmem>>, vector<8x128xf32>
    tpu.vector_store %arg10[%c24, %c0_19], %36 {strides = array<i32>} : memref<128x128xf32, #tpu.memory_space<vmem>>, vector<8x128xf32>,
    %38 = vector.extract_strided_slice %9 {offsets = [56, 0], sizes = [8, 128], strides = [1, 1]} : vector<64x256xf32> to vector<8x128xf32>
    %c112 = arith.constant 112 : index
    %c0_20 = arith.constant 0 : index
    %39 = vector.load %arg10[%c112, %c0_20] : memref<128x128xf32, #tpu.memory_space<vmem>>, vector<8x128xf32>
    tpu.vector_store %arg10[%c112, %c0_20], %38 {strides = array<i32>} : memref<128x128xf32, #tpu.memory_space<vmem>>, vector<8x128xf32>,
    %40 = vector.extract_strided_slice %9 {offsets = [56, 128], sizes = [8, 128], strides = [1, 1]} : vector<64x256xf32> to vector<8x128xf32>
    %c8 = arith.constant 8 : index
    %c0_21 = arith.constant 0 : index
    %41 = vector.load %arg10[%c8, %c0_21] : memref<128x128xf32, #tpu.memory_space<vmem>>, vector<8x128xf32>
    tpu.vector_store %arg10[%c8, %c0_21], %40 {strides = array<i32>} : memref<128x128xf32, #tpu.memory_space<vmem>>, vector<8x128xf32>,
    %cst_22 = arith.constant 0.000000e+00 : f32
    %42 = vector.broadcast %cst_22 : f32 to vector<16x32xf32>
    %cst_23 = arith.constant 0.000000e+00 : f32
    %43 = vector.broadcast %cst_23 : f32 to vector<16x32xf32>
    %c0_24 = arith.constant 0 : index
    %c0_25 = arith.constant 0 : index
    %44 = vector.load %arg2[%c0_24, %c0_25] : memref<32x256xf32, #tpu.memory_space<vmem>>, vector<32x256xf32>
    %cst_26 = arith.constant dense<0.000000e+00> : vector<16x256xf32>
    %45 = tpu.matmul %42, %44, %cst_26 {dimension_numbers = #tpu.dot_dimension_numbers<[1], [0], [0], [1], [0, 0, 1, 1], [], []>} : vector<16x32xf32>, vector<32x256xf32>, vector<16x256xf32> -> vector<16x256xf32>
    %46 = vector.extract_strided_slice %45 {offsets = [0, 0], sizes = [16, 128], strides = [1, 1]} : vector<16x256xf32> to vector<16x128xf32>
    %47 = vector.extract_strided_slice %45 {offsets = [0, 128], sizes = [16, 128], strides = [1, 1]} : vector<16x256xf32> to vector<16x128xf32>
    %48 = vector.shape_cast %2 : vector<16x1xi1> to vector<16x1xi1>
    %49 = vector.broadcast %48 : vector<16x1xi1> to vector<16x128xi1>
    %50 = arith.select %49, %46, %47 : vector<16x128xi1>, vector<16x128xf32>
    %c0_27 = arith.constant 0 : index
    %c0_28 = arith.constant 0 : index
    %51 = vector.load %arg10[%c0_27, %c0_28] : memref<128x128xf32, #tpu.memory_space<vmem>>, vector<16x128xf32>
    %52 = arith.addf %50, %51 : vector<16x128xf32>
    %53 = vector.extract_strided_slice %52 {offsets = [0, 0], sizes = [16, 96], strides = [1, 1]} : vector<16x128xf32> to vector<16x96xf32>
    %54 = arith.negf %53 : vector<16x96xf32>
    %55 = math.exp %54 : vector<16x96xf32>
    %cst_29 = arith.constant 1.000000e+00 : f32
    %56 = vector.broadcast %cst_29 : f32 to vector<16x96xf32>
    %57 = arith.addf %56, %55 : vector<16x96xf32>
    %58 = arith.divf %56, %57 : vector<16x96xf32>
    %59 = vector.extract_strided_slice %52 {offsets = [0, 96], sizes = [16, 32], strides = [1, 1]} : vector<16x128xf32> to vector<16x32xf32>
    %60 = math.tanh %59 : vector<16x32xf32>
    %61 = vector.extract_strided_slice %58 {offsets = [0, 32], sizes = [16, 32], strides = [1, 1]} : vector<16x96xf32> to vector<16x32xf32>
    %62 = arith.mulf %61, %43 : vector<16x32xf32>
    %63 = vector.extract_strided_slice %58 {offsets = [0, 0], sizes = [16, 32], strides = [1, 1]} : vector<16x96xf32> to vector<16x32xf32>
    %64 = arith.mulf %63, %60 : vector<16x32xf32>
    %65 = arith.addf %62, %64 : vector<16x32xf32>
    %66 = vector.extract_strided_slice %58 {offsets = [0, 64], sizes = [16, 32], strides = [1, 1]} : vector<16x96xf32> to vector<16x32xf32>
    %67 = math.tanh %65 : vector<16x32xf32>
    %68 = arith.mulf %66, %67 : vector<16x32xf32>
    %69 = vector.extract_strided_slice %68 {offsets = [0, 0], sizes = [8, 32], strides = [1, 1]} : vector<16x32xf32> to vector<8x32xf32>
    %c0_30 = arith.constant 0 : index
    %c0_31 = arith.constant 0 : index
    %70 = vector.load %arg11[%c0_30, %c0_31] : memref<64x64xf32, #tpu.memory_space<vmem>>, vector<8x32xf32>
    tpu.vector_store %arg11[%c0_30, %c0_31], %69 {strides = array<i32>} : memref<64x64xf32, #tpu.memory_space<vmem>>, vector<8x32xf32>,
    %71 = vector.extract_strided_slice %68 {offsets = [8, 0], sizes = [8, 32], strides = [1, 1]} : vector<16x32xf32> to vector<8x32xf32>
    %c56_32 = arith.constant 56 : index
    %c32_33 = arith.constant 32 : index
    %72 = vector.load %arg11[%c56_32, %c32_33] : memref<64x64xf32, #tpu.memory_space<vmem>>, vector<8x32xf32>
    tpu.vector_store %arg11[%c56_32, %c32_33], %71 {strides = array<i32>} : memref<64x64xf32, #tpu.memory_space<vmem>>, vector<8x32xf32>,
    %c0_34 = arith.constant 0 : index
    %c0_35 = arith.constant 0 : index
    %73 = vector.load %arg2[%c0_34, %c0_35] : memref<32x256xf32, #tpu.memory_space<vmem>>, vector<32x256xf32>
    %cst_36 = arith.constant dense<0.000000e+00> : vector<16x256xf32>
    %74 = tpu.matmul %68, %73, %cst_36 {dimension_numbers = #tpu.dot_dimension_numbers<[1], [0], [0], [1], [0, 0, 1, 1], [], []>} : vector<16x32xf32>, vector<32x256xf32>, vector<16x256xf32> -> vector<16x256xf32>
    %75 = vector.extract_strided_slice %74 {offsets = [0, 0], sizes = [16, 128], strides = [1, 1]} : vector<16x256xf32> to vector<16x128xf32>
    %76 = vector.extract_strided_slice %74 {offsets = [0, 128], sizes = [16, 128], strides = [1, 1]} : vector<16x256xf32> to vector<16x128xf32>
    %77 = vector.shape_cast %2 : vector<16x1xi1> to vector<16x1xi1>
    %78 = vector.broadcast %77 : vector<16x1xi1> to vector<16x128xi1>
    %79 = arith.select %78, %75, %76 : vector<16x128xi1>, vector<16x128xf32>
    %c16_37 = arith.constant 16 : index
    %c0_38 = arith.constant 0 : index
    %80 = vector.load %arg10[%c16_37, %c0_38] : memref<128x128xf32, #tpu.memory_space<vmem>>, vector<16x128xf32>
    %81 = arith.addf %79, %80 : vector<16x128xf32>
    %82 = vector.extract_strided_slice %81 {offsets = [0, 0], sizes = [16, 96], strides = [1, 1]} : vector<16x128xf32> to vector<16x96xf32>
    %83 = arith.negf %82 : vector<16x96xf32>
    %84 = math.exp %83 : vector<16x96xf32>
    %cst_39 = arith.constant 1.000000e+00 : f32
    %85 = vector.broadcast %cst_39 : f32 to vector<16x96xf32>
    %86 = arith.addf %85, %84 : vector<16x96xf32>
    %87 = arith.divf %85, %86 : vector<16x96xf32>
    %88 = vector.extract_strided_slice %81 {offsets = [0, 96], sizes = [16, 32], strides = [1, 1]} : vector<16x128xf32> to vector<16x32xf32>
    %89 = math.tanh %88 : vector<16x32xf32>
    %90 = vector.extract_strided_slice %87 {offsets = [0, 32], sizes = [16, 32], strides = [1, 1]} : vector<16x96xf32> to vector<16x32xf32>
    %91 = arith.mulf %90, %65 : vector<16x32xf32>
    %92 = vector.extract_strided_slice %87 {offsets = [0, 0], sizes = [16, 32], strides = [1, 1]} : vector<16x96xf32> to vector<16x32xf32>
    %93 = arith.mulf %92, %89 : vector<16x32xf32>
    %94 = arith.addf %91, %93 : vector<16x32xf32>
    %95 = vector.extract_strided_slice %87 {offsets = [0, 64], sizes = [16, 32], strides = [1, 1]} : vector<16x96xf32> to vector<16x32xf32>
    %96 = math.tanh %94 : vector<16x32xf32>
    %97 = arith.mulf %95, %96 : vector<16x32xf32>
    %98 = vector.extract_strided_slice %97 {offsets = [0, 0], sizes = [8, 32], strides = [1, 1]} : vector<16x32xf32> to vector<8x32xf32>
    %c8_40 = arith.constant 8 : index
    %c0_41 = arith.constant 0 : index
    %99 = vector.load %arg11[%c8_40, %c0_41] : memref<64x64xf32, #tpu.memory_space<vmem>>, vector<8x32xf32>
    tpu.vector_store %arg11[%c8_40, %c0_41], %98 {strides = array<i32>} : memref<64x64xf32, #tpu.memory_space<vmem>>, vector<8x32xf32>,
    %100 = vector.extract_strided_slice %97 {offsets = [8, 0], sizes = [8, 32], strides = [1, 1]} : vector<16x32xf32> to vector<8x32xf32>
    %c48_42 = arith.constant 48 : index
    %c32_43 = arith.constant 32 : index
    %101 = vector.load %arg11[%c48_42, %c32_43] : memref<64x64xf32, #tpu.memory_space<vmem>>, vector<8x32xf32>
    tpu.vector_store %arg11[%c48_42, %c32_43], %100 {strides = array<i32>} : memref<64x64xf32, #tpu.memory_space<vmem>>, vector<8x32xf32>,
    %c0_44 = arith.constant 0 : index
    %c0_45 = arith.constant 0 : index
    %102 = vector.load %arg2[%c0_44, %c0_45] : memref<32x256xf32, #tpu.memory_space<vmem>>, vector<32x256xf32>
    %cst_46 = arith.constant dense<0.000000e+00> : vector<16x256xf32>
    %103 = tpu.matmul %97, %102, %cst_46 {dimension_numbers = #tpu.dot_dimension_numbers<[1], [0], [0], [1], [0, 0, 1, 1], [], []>} : vector<16x32xf32>, vector<32x256xf32>, vector<16x256xf32> -> vector<16x256xf32>
    %104 = vector.extract_strided_slice %103 {offsets = [0, 0], sizes = [16, 128], strides = [1, 1]} : vector<16x256xf32> to vector<16x128xf32>
    %105 = vector.extract_strided_slice %103 {offsets = [0, 128], sizes = [16, 128], strides = [1, 1]} : vector<16x256xf32> to vector<16x128xf32>
    %106 = vector.shape_cast %2 : vector<16x1xi1> to vector<16x1xi1>
    %107 = vector.broadcast %106 : vector<16x1xi1> to vector<16x128xi1>
    %108 = arith.select %107, %104, %105 : vector<16x128xi1>, vector<16x128xf32>
    %c32_47 = arith.constant 32 : index
    %c0_48 = arith.constant 0 : index
    %109 = vector.load %arg10[%c32_47, %c0_48] : memref<128x128xf32, #tpu.memory_space<vmem>>, vector<16x128xf32>
    %110 = arith.addf %108, %109 : vector<16x128xf32>
    %111 = vector.extract_strided_slice %110 {offsets = [0, 0], sizes = [16, 96], strides = [1, 1]} : vector<16x128xf32> to vector<16x96xf32>
    %112 = arith.negf %111 : vector<16x96xf32>
    %113 = math.exp %112 : vector<16x96xf32>
    %cst_49 = arith.constant 1.000000e+00 : f32
    %114 = vector.broadcast %cst_49 : f32 to vector<16x96xf32>
    %115 = arith.addf %114, %113 : vector<16x96xf32>
    %116 = arith.divf %114, %115 : vector<16x96xf32>
    %117 = vector.extract_strided_slice %110 {offsets = [0, 96], sizes = [16, 32], strides = [1, 1]} : vector<16x128xf32> to vector<16x32xf32>
    %118 = math.tanh %117 : vector<16x32xf32>
    %119 = vector.extract_strided_slice %116 {offsets = [0, 32], sizes = [16, 32], strides = [1, 1]} : vector<16x96xf32> to vector<16x32xf32>
    %120 = arith.mulf %119, %94 : vector<16x32xf32>
    %121 = vector.extract_strided_slice %116 {offsets = [0, 0], sizes = [16, 32], strides = [1, 1]} : vector<16x96xf32> to vector<16x32xf32>
    %122 = arith.mulf %121, %118 : vector<16x32xf32>
    %123 = arith.addf %120, %122 : vector<16x32xf32>
    %124 = vector.extract_strided_slice %116 {offsets = [0, 64], sizes = [16, 32], strides = [1, 1]} : vector<16x96xf32> to vector<16x32xf32>
    %125 = math.tanh %123 : vector<16x32xf32>
    %126 = arith.mulf %124, %125 : vector<16x32xf32>
    %127 = vector.extract_strided_slice %126 {offsets = [0, 0], sizes = [8, 32], strides = [1, 1]} : vector<16x32xf32> to vector<8x32xf32>
    %c16_50 = arith.constant 16 : index
    %c0_51 = arith.constant 0 : index
    %128 = vector.load %arg11[%c16_50, %c0_51] : memref<64x64xf32, #tpu.memory_space<vmem>>, vector<8x32xf32>
    tpu.vector_store %arg11[%c16_50, %c0_51], %127 {strides = array<i32>} : memref<64x64xf32, #tpu.memory_space<vmem>>, vector<8x32xf32>,
    %129 = vector.extract_strided_slice %126 {offsets = [8, 0], sizes = [8, 32], strides = [1, 1]} : vector<16x32xf32> to vector<8x32xf32>
    %c40_52 = arith.constant 40 : index
    %c32_53 = arith.constant 32 : index
    %130 = vector.load %arg11[%c40_52, %c32_53] : memref<64x64xf32, #tpu.memory_space<vmem>>, vector<8x32xf32>
    tpu.vector_store %arg11[%c40_52, %c32_53], %129 {strides = array<i32>} : memref<64x64xf32, #tpu.memory_space<vmem>>, vector<8x32xf32>,
    %c0_54 = arith.constant 0 : index
    %c0_55 = arith.constant 0 : index
    %131 = vector.load %arg2[%c0_54, %c0_55] : memref<32x256xf32, #tpu.memory_space<vmem>>, vector<32x256xf32>
    %cst_56 = arith.constant dense<0.000000e+00> : vector<16x256xf32>
    %132 = tpu.matmul %126, %131, %cst_56 {dimension_numbers = #tpu.dot_dimension_numbers<[1], [0], [0], [1], [0, 0, 1, 1], [], []>} : vector<16x32xf32>, vector<32x256xf32>, vector<16x256xf32> -> vector<16x256xf32>
    %133 = vector.extract_strided_slice %132 {offsets = [0, 0], sizes = [16, 128], strides = [1, 1]} : vector<16x256xf32> to vector<16x128xf32>
    %134 = vector.extract_strided_slice %132 {offsets = [0, 128], sizes = [16, 128], strides = [1, 1]} : vector<16x256xf32> to vector<16x128xf32>
    %135 = vector.shape_cast %2 : vector<16x1xi1> to vector<16x1xi1>
    %136 = vector.broadcast %135 : vector<16x1xi1> to vector<16x128xi1>
    %137 = arith.select %136, %133, %134 : vector<16x128xi1>, vector<16x128xf32>
    %c48_57 = arith.constant 48 : index
    %c0_58 = arith.constant 0 : index
    %138 = vector.load %arg10[%c48_57, %c0_58] : memref<128x128xf32, #tpu.memory_space<vmem>>, vector<16x128xf32>
    %139 = arith.addf %137, %138 : vector<16x128xf32>
    %140 = vector.extract_strided_slice %139 {offsets = [0, 0], sizes = [16, 96], strides = [1, 1]} : vector<16x128xf32> to vector<16x96xf32>
    %141 = arith.negf %140 : vector<16x96xf32>
    %142 = math.exp %141 : vector<16x96xf32>
    %cst_59 = arith.constant 1.000000e+00 : f32
    %143 = vector.broadcast %cst_59 : f32 to vector<16x96xf32>
    %144 = arith.addf %143, %142 : vector<16x96xf32>
    %145 = arith.divf %143, %144 : vector<16x96xf32>
    %146 = vector.extract_strided_slice %139 {offsets = [0, 96], sizes = [16, 32], strides = [1, 1]} : vector<16x128xf32> to vector<16x32xf32>
    %147 = math.tanh %146 : vector<16x32xf32>
    %148 = vector.extract_strided_slice %145 {offsets = [0, 32], sizes = [16, 32], strides = [1, 1]} : vector<16x96xf32> to vector<16x32xf32>
    %149 = arith.mulf %148, %123 : vector<16x32xf32>
    %150 = vector.extract_strided_slice %145 {offsets = [0, 0], sizes = [16, 32], strides = [1, 1]} : vector<16x96xf32> to vector<16x32xf32>
    %151 = arith.mulf %150, %147 : vector<16x32xf32>
    %152 = arith.addf %149, %151 : vector<16x32xf32>
    %153 = vector.extract_strided_slice %145 {offsets = [0, 64], sizes = [16, 32], strides = [1, 1]} : vector<16x96xf32> to vector<16x32xf32>
    %154 = math.tanh %152 : vector<16x32xf32>
    %155 = arith.mulf %153, %154 : vector<16x32xf32>
    %156 = vector.extract_strided_slice %155 {offsets = [0, 0], sizes = [8, 32], strides = [1, 1]} : vector<16x32xf32> to vector<8x32xf32>
    %c24_60 = arith.constant 24 : index
    %c0_61 = arith.constant 0 : index
    %157 = vector.load %arg11[%c24_60, %c0_61] : memref<64x64xf32, #tpu.memory_space<vmem>>, vector<8x32xf32>
    tpu.vector_store %arg11[%c24_60, %c0_61], %156 {strides = array<i32>} : memref<64x64xf32, #tpu.memory_space<vmem>>, vector<8x32xf32>,
    %158 = vector.extract_strided_slice %155 {offsets = [8, 0], sizes = [8, 32], strides = [1, 1]} : vector<16x32xf32> to vector<8x32xf32>
    %c32_62 = arith.constant 32 : index
    %c32_63 = arith.constant 32 : index
    %159 = vector.load %arg11[%c32_62, %c32_63] : memref<64x64xf32, #tpu.memory_space<vmem>>, vector<8x32xf32>
    tpu.vector_store %arg11[%c32_62, %c32_63], %158 {strides = array<i32>} : memref<64x64xf32, #tpu.memory_space<vmem>>, vector<8x32xf32>,
    %c0_64 = arith.constant 0 : index
    %c0_65 = arith.constant 0 : index
    %160 = vector.load %arg2[%c0_64, %c0_65] : memref<32x256xf32, #tpu.memory_space<vmem>>, vector<32x256xf32>
    %cst_66 = arith.constant dense<0.000000e+00> : vector<16x256xf32>
    %161 = tpu.matmul %155, %160, %cst_66 {dimension_numbers = #tpu.dot_dimension_numbers<[1], [0], [0], [1], [0, 0, 1, 1], [], []>} : vector<16x32xf32>, vector<32x256xf32>, vector<16x256xf32> -> vector<16x256xf32>
    %162 = vector.extract_strided_slice %161 {offsets = [0, 0], sizes = [16, 128], strides = [1, 1]} : vector<16x256xf32> to vector<16x128xf32>
    %163 = vector.extract_strided_slice %161 {offsets = [0, 128], sizes = [16, 128], strides = [1, 1]} : vector<16x256xf32> to vector<16x128xf32>
    %164 = vector.shape_cast %2 : vector<16x1xi1> to vector<16x1xi1>
    %165 = vector.broadcast %164 : vector<16x1xi1> to vector<16x128xi1>
    %166 = arith.select %165, %162, %163 : vector<16x128xi1>, vector<16x128xf32>
    %c64_67 = arith.constant 64 : index
    %c0_68 = arith.constant 0 : index
    %167 = vector.load %arg10[%c64_67, %c0_68] : memref<128x128xf32, #tpu.memory_space<vmem>>, vector<16x128xf32>
    %168 = arith.addf %166, %167 : vector<16x128xf32>
    %169 = vector.extract_strided_slice %168 {offsets = [0, 0], sizes = [16, 96], strides = [1, 1]} : vector<16x128xf32> to vector<16x96xf32>
    %170 = arith.negf %169 : vector<16x96xf32>
    %171 = math.exp %170 : vector<16x96xf32>
    %cst_69 = arith.constant 1.000000e+00 : f32
    %172 = vector.broadcast %cst_69 : f32 to vector<16x96xf32>
    %173 = arith.addf %172, %171 : vector<16x96xf32>
    %174 = arith.divf %172, %173 : vector<16x96xf32>
    %175 = vector.extract_strided_slice %168 {offsets = [0, 96], sizes = [16, 32], strides = [1, 1]} : vector<16x128xf32> to vector<16x32xf32>
    %176 = math.tanh %175 : vector<16x32xf32>
    %177 = vector.extract_strided_slice %174 {offsets = [0, 32], sizes = [16, 32], strides = [1, 1]} : vector<16x96xf32> to vector<16x32xf32>
    %178 = arith.mulf %177, %152 : vector<16x32xf32>
    %179 = vector.extract_strided_slice %174 {offsets = [0, 0], sizes = [16, 32], strides = [1, 1]} : vector<16x96xf32> to vector<16x32xf32>
    %180 = arith.mulf %179, %176 : vector<16x32xf32>
    %181 = arith.addf %178, %180 : vector<16x32xf32>
    %182 = vector.extract_strided_slice %174 {offsets = [0, 64], sizes = [16, 32], strides = [1, 1]} : vector<16x96xf32> to vector<16x32xf32>
    %183 = math.tanh %181 : vector<16x32xf32>
    %184 = arith.mulf %182, %183 : vector<16x32xf32>
    %185 = vector.extract_strided_slice %184 {offsets = [0, 0], sizes = [8, 32], strides = [1, 1]} : vector<16x32xf32> to vector<8x32xf32>
    %c32_70 = arith.constant 32 : index
    %c0_71 = arith.constant 0 : index
    %186 = vector.load %arg11[%c32_70, %c0_71] : memref<64x64xf32, #tpu.memory_space<vmem>>, vector<8x32xf32>
    tpu.vector_store %arg11[%c32_70, %c0_71], %185 {strides = array<i32>} : memref<64x64xf32, #tpu.memory_space<vmem>>, vector<8x32xf32>,
    %187 = vector.extract_strided_slice %184 {offsets = [8, 0], sizes = [8, 32], strides = [1, 1]} : vector<16x32xf32> to vector<8x32xf32>
    %c24_72 = arith.constant 24 : index
    %c32_73 = arith.constant 32 : index
    %188 = vector.load %arg11[%c24_72, %c32_73] : memref<64x64xf32, #tpu.memory_space<vmem>>, vector<8x32xf32>
    tpu.vector_store %arg11[%c24_72, %c32_73], %187 {strides = array<i32>} : memref<64x64xf32, #tpu.memory_space<vmem>>, vector<8x32xf32>,
    %c0_74 = arith.constant 0 : index
    %c0_75 = arith.constant 0 : index
    %189 = vector.load %arg2[%c0_74, %c0_75] : memref<32x256xf32, #tpu.memory_space<vmem>>, vector<32x256xf32>
    %cst_76 = arith.constant dense<0.000000e+00> : vector<16x256xf32>
    %190 = tpu.matmul %184, %189, %cst_76 {dimension_numbers = #tpu.dot_dimension_numbers<[1], [0], [0], [1], [0, 0, 1, 1], [], []>} : vector<16x32xf32>, vector<32x256xf32>, vector<16x256xf32> -> vector<16x256xf32>
    %191 = vector.extract_strided_slice %190 {offsets = [0, 0], sizes = [16, 128], strides = [1, 1]} : vector<16x256xf32> to vector<16x128xf32>
    %192 = vector.extract_strided_slice %190 {offsets = [0, 128], sizes = [16, 128], strides = [1, 1]} : vector<16x256xf32> to vector<16x128xf32>
    %193 = vector.shape_cast %2 : vector<16x1xi1> to vector<16x1xi1>
    %194 = vector.broadcast %193 : vector<16x1xi1> to vector<16x128xi1>
    %195 = arith.select %194, %191, %192 : vector<16x128xi1>, vector<16x128xf32>
    %c80_77 = arith.constant 80 : index
    %c0_78 = arith.constant 0 : index
    %196 = vector.load %arg10[%c80_77, %c0_78] : memref<128x128xf32, #tpu.memory_space<vmem>>, vector<16x128xf32>
    %197 = arith.addf %195, %196 : vector<16x128xf32>
    %198 = vector.extract_strided_slice %197 {offsets = [0, 0], sizes = [16, 96], strides = [1, 1]} : vector<16x128xf32> to vector<16x96xf32>
    %199 = arith.negf %198 : vector<16x96xf32>
    %200 = math.exp %199 : vector<16x96xf32>
    %cst_79 = arith.constant 1.000000e+00 : f32
    %201 = vector.broadcast %cst_79 : f32 to vector<16x96xf32>
    %202 = arith.addf %201, %200 : vector<16x96xf32>
    %203 = arith.divf %201, %202 : vector<16x96xf32>
    %204 = vector.extract_strided_slice %197 {offsets = [0, 96], sizes = [16, 32], strides = [1, 1]} : vector<16x128xf32> to vector<16x32xf32>
    %205 = math.tanh %204 : vector<16x32xf32>
    %206 = vector.extract_strided_slice %203 {offsets = [0, 32], sizes = [16, 32], strides = [1, 1]} : vector<16x96xf32> to vector<16x32xf32>
    %207 = arith.mulf %206, %181 : vector<16x32xf32>
    %208 = vector.extract_strided_slice %203 {offsets = [0, 0], sizes = [16, 32], strides = [1, 1]} : vector<16x96xf32> to vector<16x32xf32>
    %209 = arith.mulf %208, %205 : vector<16x32xf32>
    %210 = arith.addf %207, %209 : vector<16x32xf32>
    %211 = vector.extract_strided_slice %203 {offsets = [0, 64], sizes = [16, 32], strides = [1, 1]} : vector<16x96xf32> to vector<16x32xf32>
    %212 = math.tanh %210 : vector<16x32xf32>
    %213 = arith.mulf %211, %212 : vector<16x32xf32>
    %214 = vector.extract_strided_slice %213 {offsets = [0, 0], sizes = [8, 32], strides = [1, 1]} : vector<16x32xf32> to vector<8x32xf32>
    %c40_80 = arith.constant 40 : index
    %c0_81 = arith.constant 0 : index
    %215 = vector.load %arg11[%c40_80, %c0_81] : memref<64x64xf32, #tpu.memory_space<vmem>>, vector<8x32xf32>
    tpu.vector_store %arg11[%c40_80, %c0_81], %214 {strides = array<i32>} : memref<64x64xf32, #tpu.memory_space<vmem>>, vector<8x32xf32>,
    %216 = vector.extract_strided_slice %213 {offsets = [8, 0], sizes = [8, 32], strides = [1, 1]} : vector<16x32xf32> to vector<8x32xf32>
    %c16_82 = arith.constant 16 : index
    %c32_83 = arith.constant 32 : index
    %217 = vector.load %arg11[%c16_82, %c32_83] : memref<64x64xf32, #tpu.memory_space<vmem>>, vector<8x32xf32>
    tpu.vector_store %arg11[%c16_82, %c32_83], %216 {strides = array<i32>} : memref<64x64xf32, #tpu.memory_space<vmem>>, vector<8x32xf32>,
    %c0_84 = arith.constant 0 : index
    %c0_85 = arith.constant 0 : index
    %218 = vector.load %arg2[%c0_84, %c0_85] : memref<32x256xf32, #tpu.memory_space<vmem>>, vector<32x256xf32>
    %cst_86 = arith.constant dense<0.000000e+00> : vector<16x256xf32>
    %219 = tpu.matmul %213, %218, %cst_86 {dimension_numbers = #tpu.dot_dimension_numbers<[1], [0], [0], [1], [0, 0, 1, 1], [], []>} : vector<16x32xf32>, vector<32x256xf32>, vector<16x256xf32> -> vector<16x256xf32>
    %220 = vector.extract_strided_slice %219 {offsets = [0, 0], sizes = [16, 128], strides = [1, 1]} : vector<16x256xf32> to vector<16x128xf32>
    %221 = vector.extract_strided_slice %219 {offsets = [0, 128], sizes = [16, 128], strides = [1, 1]} : vector<16x256xf32> to vector<16x128xf32>
    %222 = vector.shape_cast %2 : vector<16x1xi1> to vector<16x1xi1>
    %223 = vector.broadcast %222 : vector<16x1xi1> to vector<16x128xi1>
    %224 = arith.select %223, %220, %221 : vector<16x128xi1>, vector<16x128xf32>
    %c96_87 = arith.constant 96 : index
    %c0_88 = arith.constant 0 : index
    %225 = vector.load %arg10[%c96_87, %c0_88] : memref<128x128xf32, #tpu.memory_space<vmem>>, vector<16x128xf32>
    %226 = arith.addf %224, %225 : vector<16x128xf32>
    %227 = vector.extract_strided_slice %226 {offsets = [0, 0], sizes = [16, 96], strides = [1, 1]} : vector<16x128xf32> to vector<16x96xf32>
    %228 = arith.negf %227 : vector<16x96xf32>
    %229 = math.exp %228 : vector<16x96xf32>
    %cst_89 = arith.constant 1.000000e+00 : f32
    %230 = vector.broadcast %cst_89 : f32 to vector<16x96xf32>
    %231 = arith.addf %230, %229 : vector<16x96xf32>
    %232 = arith.divf %230, %231 : vector<16x96xf32>
    %233 = vector.extract_strided_slice %226 {offsets = [0, 96], sizes = [16, 32], strides = [1, 1]} : vector<16x128xf32> to vector<16x32xf32>
    %234 = math.tanh %233 : vector<16x32xf32>
    %235 = vector.extract_strided_slice %232 {offsets = [0, 32], sizes = [16, 32], strides = [1, 1]} : vector<16x96xf32> to vector<16x32xf32>
    %236 = arith.mulf %235, %210 : vector<16x32xf32>
    %237 = vector.extract_strided_slice %232 {offsets = [0, 0], sizes = [16, 32], strides = [1, 1]} : vector<16x96xf32> to vector<16x32xf32>
    %238 = arith.mulf %237, %234 : vector<16x32xf32>
    %239 = arith.addf %236, %238 : vector<16x32xf32>
    %240 = vector.extract_strided_slice %232 {offsets = [0, 64], sizes = [16, 32], strides = [1, 1]} : vector<16x96xf32> to vector<16x32xf32>
    %241 = math.tanh %239 : vector<16x32xf32>
    %242 = arith.mulf %240, %241 : vector<16x32xf32>
    %243 = vector.extract_strided_slice %242 {offsets = [0, 0], sizes = [8, 32], strides = [1, 1]} : vector<16x32xf32> to vector<8x32xf32>
    %c48_90 = arith.constant 48 : index
    %c0_91 = arith.constant 0 : index
    %244 = vector.load %arg11[%c48_90, %c0_91] : memref<64x64xf32, #tpu.memory_space<vmem>>, vector<8x32xf32>
    tpu.vector_store %arg11[%c48_90, %c0_91], %243 {strides = array<i32>} : memref<64x64xf32, #tpu.memory_space<vmem>>, vector<8x32xf32>,
    %245 = vector.extract_strided_slice %242 {offsets = [8, 0], sizes = [8, 32], strides = [1, 1]} : vector<16x32xf32> to vector<8x32xf32>
    %c8_92 = arith.constant 8 : index
    %c32_93 = arith.constant 32 : index
    %246 = vector.load %arg11[%c8_92, %c32_93] : memref<64x64xf32, #tpu.memory_space<vmem>>, vector<8x32xf32>
    tpu.vector_store %arg11[%c8_92, %c32_93], %245 {strides = array<i32>} : memref<64x64xf32, #tpu.memory_space<vmem>>, vector<8x32xf32>,
    %c0_94 = arith.constant 0 : index
    %c0_95 = arith.constant 0 : index
    %247 = vector.load %arg2[%c0_94, %c0_95] : memref<32x256xf32, #tpu.memory_space<vmem>>, vector<32x256xf32>
    %cst_96 = arith.constant dense<0.000000e+00> : vector<16x256xf32>
    %248 = tpu.matmul %242, %247, %cst_96 {dimension_numbers = #tpu.dot_dimension_numbers<[1], [0], [0], [1], [0, 0, 1, 1], [], []>} : vector<16x32xf32>, vector<32x256xf32>, vector<16x256xf32> -> vector<16x256xf32>
    %249 = vector.extract_strided_slice %248 {offsets = [0, 0], sizes = [16, 128], strides = [1, 1]} : vector<16x256xf32> to vector<16x128xf32>
    %250 = vector.extract_strided_slice %248 {offsets = [0, 128], sizes = [16, 128], strides = [1, 1]} : vector<16x256xf32> to vector<16x128xf32>
    %251 = vector.shape_cast %2 : vector<16x1xi1> to vector<16x1xi1>
    %252 = vector.broadcast %251 : vector<16x1xi1> to vector<16x128xi1>
    %253 = arith.select %252, %249, %250 : vector<16x128xi1>, vector<16x128xf32>
    %c112_97 = arith.constant 112 : index
    %c0_98 = arith.constant 0 : index
    %254 = vector.load %arg10[%c112_97, %c0_98] : memref<128x128xf32, #tpu.memory_space<vmem>>, vector<16x128xf32>
    %255 = arith.addf %253, %254 : vector<16x128xf32>
    %256 = vector.extract_strided_slice %255 {offsets = [0, 0], sizes = [16, 96], strides = [1, 1]} : vector<16x128xf32> to vector<16x96xf32>
    %257 = arith.negf %256 : vector<16x96xf32>
    %258 = math.exp %257 : vector<16x96xf32>
    %cst_99 = arith.constant 1.000000e+00 : f32
    %259 = vector.broadcast %cst_99 : f32 to vector<16x96xf32>
    %260 = arith.addf %259, %258 : vector<16x96xf32>
    %261 = arith.divf %259, %260 : vector<16x96xf32>
    %262 = vector.extract_strided_slice %255 {offsets = [0, 96], sizes = [16, 32], strides = [1, 1]} : vector<16x128xf32> to vector<16x32xf32>
    %263 = math.tanh %262 : vector<16x32xf32>
    %264 = vector.extract_strided_slice %261 {offsets = [0, 32], sizes = [16, 32], strides = [1, 1]} : vector<16x96xf32> to vector<16x32xf32>
    %265 = arith.mulf %264, %239 : vector<16x32xf32>
    %266 = vector.extract_strided_slice %261 {offsets = [0, 0], sizes = [16, 32], strides = [1, 1]} : vector<16x96xf32> to vector<16x32xf32>
    %267 = arith.mulf %266, %263 : vector<16x32xf32>
    %268 = arith.addf %265, %267 : vector<16x32xf32>
    %269 = vector.extract_strided_slice %261 {offsets = [0, 64], sizes = [16, 32], strides = [1, 1]} : vector<16x96xf32> to vector<16x32xf32>
    %270 = math.tanh %268 : vector<16x32xf32>
    %271 = arith.mulf %269, %270 : vector<16x32xf32>
    %272 = vector.extract_strided_slice %271 {offsets = [0, 0], sizes = [8, 32], strides = [1, 1]} : vector<16x32xf32> to vector<8x32xf32>
    %c56_100 = arith.constant 56 : index
    %c0_101 = arith.constant 0 : index
    %273 = vector.load %arg11[%c56_100, %c0_101] : memref<64x64xf32, #tpu.memory_space<vmem>>, vector<8x32xf32>
    tpu.vector_store %arg11[%c56_100, %c0_101], %272 {strides = array<i32>} : memref<64x64xf32, #tpu.memory_space<vmem>>, vector<8x32xf32>,
    %274 = vector.extract_strided_slice %271 {offsets = [8, 0], sizes = [8, 32], strides = [1, 1]} : vector<16x32xf32> to vector<8x32xf32>
    %c0_102 = arith.constant 0 : index
    %c32_103 = arith.constant 32 : index
    %275 = vector.load %arg11[%c0_102, %c32_103] : memref<64x64xf32, #tpu.memory_space<vmem>>, vector<8x32xf32>
    tpu.vector_store %arg11[%c0_102, %c32_103], %274 {strides = array<i32>} : memref<64x64xf32, #tpu.memory_space<vmem>>, vector<8x32xf32>,
    %c0_104 = arith.constant 0 : index
    %c0_105 = arith.constant 0 : index
    %276 = vector.load %arg11[%c0_104, %c0_105] : memref<64x64xf32, #tpu.memory_space<vmem>>, vector<64x64xf32>
    %277 = arith.truncf %276 : vector<64x64xf32> to vector<64x64xbf16>
    %c0_106 = arith.constant 0 : index
    %c0_107 = arith.constant 0 : index
    %278 = vector.load %arg4[%c0_106, %c0_107] : memref<64x256xbf16, #tpu.memory_space<vmem>>, vector<64x256xbf16>
    %cst_108 = arith.constant dense<0.000000e+00> : vector<64x256xf32>
    %279 = tpu.matmul %277, %278, %cst_108 {dimension_numbers = #tpu.dot_dimension_numbers<[1], [0], [0], [1], [0, 0, 1, 1], [], []>} : vector<64x64xbf16>, vector<64x256xbf16>, vector<64x256xf32> -> vector<64x256xf32>
    %c0_109 = arith.constant 0 : index
    %c0_110 = arith.constant 0 : index
    %280 = vector.load %arg6[%c0_109, %c0_110] : memref<1x256xf32, #tpu.memory_space<vmem>>, vector<1x256xf32>
    %281 = vector.broadcast %280 : vector<1x256xf32> to vector<64x256xf32>
    %282 = arith.addf %279, %281 : vector<64x256xf32>
    %283 = vector.extract_strided_slice %282 {offsets = [0, 0], sizes = [8, 128], strides = [1, 1]} : vector<64x256xf32> to vector<8x128xf32>
    %c0_111 = arith.constant 0 : index
    %c0_112 = arith.constant 0 : index
    %284 = vector.load %arg10[%c0_111, %c0_112] : memref<128x128xf32, #tpu.memory_space<vmem>>, vector<8x128xf32>
    tpu.vector_store %arg10[%c0_111, %c0_112], %283 {strides = array<i32>} : memref<128x128xf32, #tpu.memory_space<vmem>>, vector<8x128xf32>,
    %285 = vector.extract_strided_slice %282 {offsets = [0, 128], sizes = [8, 128], strides = [1, 1]} : vector<64x256xf32> to vector<8x128xf32>
    %c120_113 = arith.constant 120 : index
    %c0_114 = arith.constant 0 : index
    %286 = vector.load %arg10[%c120_113, %c0_114] : memref<128x128xf32, #tpu.memory_space<vmem>>, vector<8x128xf32>
    tpu.vector_store %arg10[%c120_113, %c0_114], %285 {strides = array<i32>} : memref<128x128xf32, #tpu.memory_space<vmem>>, vector<8x128xf32>,
    %287 = vector.extract_strided_slice %282 {offsets = [8, 0], sizes = [8, 128], strides = [1, 1]} : vector<64x256xf32> to vector<8x128xf32>
    %c16_115 = arith.constant 16 : index
    %c0_116 = arith.constant 0 : index
    %288 = vector.load %arg10[%c16_115, %c0_116] : memref<128x128xf32, #tpu.memory_space<vmem>>, vector<8x128xf32>
    tpu.vector_store %arg10[%c16_115, %c0_116], %287 {strides = array<i32>} : memref<128x128xf32, #tpu.memory_space<vmem>>, vector<8x128xf32>,
    %289 = vector.extract_strided_slice %282 {offsets = [8, 128], sizes = [8, 128], strides = [1, 1]} : vector<64x256xf32> to vector<8x128xf32>
    %c104_117 = arith.constant 104 : index
    %c0_118 = arith.constant 0 : index
    %290 = vector.load %arg10[%c104_117, %c0_118] : memref<128x128xf32, #tpu.memory_space<vmem>>, vector<8x128xf32>
    tpu.vector_store %arg10[%c104_117, %c0_118], %289 {strides = array<i32>} : memref<128x128xf32, #tpu.memory_space<vmem>>, vector<8x128xf32>,
    %291 = vector.extract_strided_slice %282 {offsets = [16, 0], sizes = [8, 128], strides = [1, 1]} : vector<64x256xf32> to vector<8x128xf32>
    %c32_119 = arith.constant 32 : index
    %c0_120 = arith.constant 0 : index
    %292 = vector.load %arg10[%c32_119, %c0_120] : memref<128x128xf32, #tpu.memory_space<vmem>>, vector<8x128xf32>
    tpu.vector_store %arg10[%c32_119, %c0_120], %291 {strides = array<i32>} : memref<128x128xf32, #tpu.memory_space<vmem>>, vector<8x128xf32>,
    %293 = vector.extract_strided_slice %282 {offsets = [16, 128], sizes = [8, 128], strides = [1, 1]} : vector<64x256xf32> to vector<8x128xf32>
    %c88_121 = arith.constant 88 : index
    %c0_122 = arith.constant 0 : index
    %294 = vector.load %arg10[%c88_121, %c0_122] : memref<128x128xf32, #tpu.memory_space<vmem>>, vector<8x128xf32>
    tpu.vector_store %arg10[%c88_121, %c0_122], %293 {strides = array<i32>} : memref<128x128xf32, #tpu.memory_space<vmem>>, vector<8x128xf32>,
    %295 = vector.extract_strided_slice %282 {offsets = [24, 0], sizes = [8, 128], strides = [1, 1]} : vector<64x256xf32> to vector<8x128xf32>
    %c48_123 = arith.constant 48 : index
    %c0_124 = arith.constant 0 : index
    %296 = vector.load %arg10[%c48_123, %c0_124] : memref<128x128xf32, #tpu.memory_space<vmem>>, vector<8x128xf32>
    tpu.vector_store %arg10[%c48_123, %c0_124], %295 {strides = array<i32>} : memref<128x128xf32, #tpu.memory_space<vmem>>, vector<8x128xf32>,
    %297 = vector.extract_strided_slice %282 {offsets = [24, 128], sizes = [8, 128], strides = [1, 1]} : vector<64x256xf32> to vector<8x128xf32>
    %c72_125 = arith.constant 72 : index
    %c0_126 = arith.constant 0 : index
    %298 = vector.load %arg10[%c72_125, %c0_126] : memref<128x128xf32, #tpu.memory_space<vmem>>, vector<8x128xf32>
    tpu.vector_store %arg10[%c72_125, %c0_126], %297 {strides = array<i32>} : memref<128x128xf32, #tpu.memory_space<vmem>>, vector<8x128xf32>,
    %299 = vector.extract_strided_slice %282 {offsets = [32, 0], sizes = [8, 128], strides = [1, 1]} : vector<64x256xf32> to vector<8x128xf32>
    %c64_127 = arith.constant 64 : index
    %c0_128 = arith.constant 0 : index
    %300 = vector.load %arg10[%c64_127, %c0_128] : memref<128x128xf32, #tpu.memory_space<vmem>>, vector<8x128xf32>
    tpu.vector_store %arg10[%c64_127, %c0_128], %299 {strides = array<i32>} : memref<128x128xf32, #tpu.memory_space<vmem>>, vector<8x128xf32>,
    %301 = vector.extract_strided_slice %282 {offsets = [32, 128], sizes = [8, 128], strides = [1, 1]} : vector<64x256xf32> to vector<8x128xf32>
    %c56_129 = arith.constant 56 : index
    %c0_130 = arith.constant 0 : index
    %302 = vector.load %arg10[%c56_129, %c0_130] : memref<128x128xf32, #tpu.memory_space<vmem>>, vector<8x128xf32>
    tpu.vector_store %arg10[%c56_129, %c0_130], %301 {strides = array<i32>} : memref<128x128xf32, #tpu.memory_space<vmem>>, vector<8x128xf32>,
    %303 = vector.extract_strided_slice %282 {offsets = [40, 0], sizes = [8, 128], strides = [1, 1]} : vector<64x256xf32> to vector<8x128xf32>
    %c80_131 = arith.constant 80 : index
    %c0_132 = arith.constant 0 : index
    %304 = vector.load %arg10[%c80_131, %c0_132] : memref<128x128xf32, #tpu.memory_space<vmem>>, vector<8x128xf32>
    tpu.vector_store %arg10[%c80_131, %c0_132], %303 {strides = array<i32>} : memref<128x128xf32, #tpu.memory_space<vmem>>, vector<8x128xf32>,
    %305 = vector.extract_strided_slice %282 {offsets = [40, 128], sizes = [8, 128], strides = [1, 1]} : vector<64x256xf32> to vector<8x128xf32>
    %c40_133 = arith.constant 40 : index
    %c0_134 = arith.constant 0 : index
    %306 = vector.load %arg10[%c40_133, %c0_134] : memref<128x128xf32, #tpu.memory_space<vmem>>, vector<8x128xf32>
    tpu.vector_store %arg10[%c40_133, %c0_134], %305 {strides = array<i32>} : memref<128x128xf32, #tpu.memory_space<vmem>>, vector<8x128xf32>,
    %307 = vector.extract_strided_slice %282 {offsets = [48, 0], sizes = [8, 128], strides = [1, 1]} : vector<64x256xf32> to vector<8x128xf32>
    %c96_135 = arith.constant 96 : index
    %c0_136 = arith.constant 0 : index
    %308 = vector.load %arg10[%c96_135, %c0_136] : memref<128x128xf32, #tpu.memory_space<vmem>>, vector<8x128xf32>
    tpu.vector_store %arg10[%c96_135, %c0_136], %307 {strides = array<i32>} : memref<128x128xf32, #tpu.memory_space<vmem>>, vector<8x128xf32>,
    %309 = vector.extract_strided_slice %282 {offsets = [48, 128], sizes = [8, 128], strides = [1, 1]} : vector<64x256xf32> to vector<8x128xf32>
    %c24_137 = arith.constant 24 : index
    %c0_138 = arith.constant 0 : index
    %310 = vector.load %arg10[%c24_137, %c0_138] : memref<128x128xf32, #tpu.memory_space<vmem>>, vector<8x128xf32>
    tpu.vector_store %arg10[%c24_137, %c0_138], %309 {strides = array<i32>} : memref<128x128xf32, #tpu.memory_space<vmem>>, vector<8x128xf32>,
    %311 = vector.extract_strided_slice %282 {offsets = [56, 0], sizes = [8, 128], strides = [1, 1]} : vector<64x256xf32> to vector<8x128xf32>
    %c112_139 = arith.constant 112 : index
    %c0_140 = arith.constant 0 : index
    %312 = vector.load %arg10[%c112_139, %c0_140] : memref<128x128xf32, #tpu.memory_space<vmem>>, vector<8x128xf32>
    tpu.vector_store %arg10[%c112_139, %c0_140], %311 {strides = array<i32>} : memref<128x128xf32, #tpu.memory_space<vmem>>, vector<8x128xf32>,
    %313 = vector.extract_strided_slice %282 {offsets = [56, 128], sizes = [8, 128], strides = [1, 1]} : vector<64x256xf32> to vector<8x128xf32>
    %c8_141 = arith.constant 8 : index
    %c0_142 = arith.constant 0 : index
    %314 = vector.load %arg10[%c8_141, %c0_142] : memref<128x128xf32, #tpu.memory_space<vmem>>, vector<8x128xf32>
    tpu.vector_store %arg10[%c8_141, %c0_142], %313 {strides = array<i32>} : memref<128x128xf32, #tpu.memory_space<vmem>>, vector<8x128xf32>,
    %cst_143 = arith.constant 0.000000e+00 : f32
    %315 = vector.broadcast %cst_143 : f32 to vector<16x32xf32>
    %cst_144 = arith.constant 0.000000e+00 : f32
    %316 = vector.broadcast %cst_144 : f32 to vector<16x32xf32>
    %c0_145 = arith.constant 0 : index
    %c0_146 = arith.constant 0 : index
    %317 = vector.load %arg5[%c0_145, %c0_146] : memref<32x256xf32, #tpu.memory_space<vmem>>, vector<32x256xf32>
    %cst_147 = arith.constant dense<0.000000e+00> : vector<16x256xf32>
    %318 = tpu.matmul %315, %317, %cst_147 {dimension_numbers = #tpu.dot_dimension_numbers<[1], [0], [0], [1], [0, 0, 1, 1], [], []>} : vector<16x32xf32>, vector<32x256xf32>, vector<16x256xf32> -> vector<16x256xf32>
    %319 = vector.extract_strided_slice %318 {offsets = [0, 0], sizes = [16, 128], strides = [1, 1]} : vector<16x256xf32> to vector<16x128xf32>
    %320 = vector.extract_strided_slice %318 {offsets = [0, 128], sizes = [16, 128], strides = [1, 1]} : vector<16x256xf32> to vector<16x128xf32>
    %321 = vector.shape_cast %2 : vector<16x1xi1> to vector<16x1xi1>
    %322 = vector.broadcast %321 : vector<16x1xi1> to vector<16x128xi1>
    %323 = arith.select %322, %319, %320 : vector<16x128xi1>, vector<16x128xf32>
    %c0_148 = arith.constant 0 : index
    %c0_149 = arith.constant 0 : index
    %324 = vector.load %arg10[%c0_148, %c0_149] : memref<128x128xf32, #tpu.memory_space<vmem>>, vector<16x128xf32>
    %325 = arith.addf %323, %324 : vector<16x128xf32>
    %326 = vector.extract_strided_slice %325 {offsets = [0, 0], sizes = [16, 96], strides = [1, 1]} : vector<16x128xf32> to vector<16x96xf32>
    %327 = arith.negf %326 : vector<16x96xf32>
    %328 = math.exp %327 : vector<16x96xf32>
    %cst_150 = arith.constant 1.000000e+00 : f32
    %329 = vector.broadcast %cst_150 : f32 to vector<16x96xf32>
    %330 = arith.addf %329, %328 : vector<16x96xf32>
    %331 = arith.divf %329, %330 : vector<16x96xf32>
    %332 = vector.extract_strided_slice %325 {offsets = [0, 96], sizes = [16, 32], strides = [1, 1]} : vector<16x128xf32> to vector<16x32xf32>
    %333 = math.tanh %332 : vector<16x32xf32>
    %334 = vector.extract_strided_slice %331 {offsets = [0, 32], sizes = [16, 32], strides = [1, 1]} : vector<16x96xf32> to vector<16x32xf32>
    %335 = arith.mulf %334, %316 : vector<16x32xf32>
    %336 = vector.extract_strided_slice %331 {offsets = [0, 0], sizes = [16, 32], strides = [1, 1]} : vector<16x96xf32> to vector<16x32xf32>
    %337 = arith.mulf %336, %333 : vector<16x32xf32>
    %338 = arith.addf %335, %337 : vector<16x32xf32>
    %339 = vector.extract_strided_slice %331 {offsets = [0, 64], sizes = [16, 32], strides = [1, 1]} : vector<16x96xf32> to vector<16x32xf32>
    %340 = math.tanh %338 : vector<16x32xf32>
    %341 = arith.mulf %339, %340 : vector<16x32xf32>
    %342 = vector.extract_strided_slice %341 {offsets = [0, 0], sizes = [8, 32], strides = [1, 1]} : vector<16x32xf32> to vector<8x32xf32>
    %c0_151 = arith.constant 0 : index
    %c0_152 = arith.constant 0 : index
    %343 = vector.load %arg11[%c0_151, %c0_152] : memref<64x64xf32, #tpu.memory_space<vmem>>, vector<8x32xf32>
    tpu.vector_store %arg11[%c0_151, %c0_152], %342 {strides = array<i32>} : memref<64x64xf32, #tpu.memory_space<vmem>>, vector<8x32xf32>,
    %344 = vector.extract_strided_slice %341 {offsets = [8, 0], sizes = [8, 32], strides = [1, 1]} : vector<16x32xf32> to vector<8x32xf32>
    %c56_153 = arith.constant 56 : index
    %c32_154 = arith.constant 32 : index
    %345 = vector.load %arg11[%c56_153, %c32_154] : memref<64x64xf32, #tpu.memory_space<vmem>>, vector<8x32xf32>
    tpu.vector_store %arg11[%c56_153, %c32_154], %344 {strides = array<i32>} : memref<64x64xf32, #tpu.memory_space<vmem>>, vector<8x32xf32>,
    %c0_155 = arith.constant 0 : index
    %c0_156 = arith.constant 0 : index
    %346 = vector.load %arg5[%c0_155, %c0_156] : memref<32x256xf32, #tpu.memory_space<vmem>>, vector<32x256xf32>
    %cst_157 = arith.constant dense<0.000000e+00> : vector<16x256xf32>
    %347 = tpu.matmul %341, %346, %cst_157 {dimension_numbers = #tpu.dot_dimension_numbers<[1], [0], [0], [1], [0, 0, 1, 1], [], []>} : vector<16x32xf32>, vector<32x256xf32>, vector<16x256xf32> -> vector<16x256xf32>
    %348 = vector.extract_strided_slice %347 {offsets = [0, 0], sizes = [16, 128], strides = [1, 1]} : vector<16x256xf32> to vector<16x128xf32>
    %349 = vector.extract_strided_slice %347 {offsets = [0, 128], sizes = [16, 128], strides = [1, 1]} : vector<16x256xf32> to vector<16x128xf32>
    %350 = vector.shape_cast %2 : vector<16x1xi1> to vector<16x1xi1>
    %351 = vector.broadcast %350 : vector<16x1xi1> to vector<16x128xi1>
    %352 = arith.select %351, %348, %349 : vector<16x128xi1>, vector<16x128xf32>
    %c16_158 = arith.constant 16 : index
    %c0_159 = arith.constant 0 : index
    %353 = vector.load %arg10[%c16_158, %c0_159] : memref<128x128xf32, #tpu.memory_space<vmem>>, vector<16x128xf32>
    %354 = arith.addf %352, %353 : vector<16x128xf32>
    %355 = vector.extract_strided_slice %354 {offsets = [0, 0], sizes = [16, 96], strides = [1, 1]} : vector<16x128xf32> to vector<16x96xf32>
    %356 = arith.negf %355 : vector<16x96xf32>
    %357 = math.exp %356 : vector<16x96xf32>
    %cst_160 = arith.constant 1.000000e+00 : f32
    %358 = vector.broadcast %cst_160 : f32 to vector<16x96xf32>
    %359 = arith.addf %358, %357 : vector<16x96xf32>
    %360 = arith.divf %358, %359 : vector<16x96xf32>
    %361 = vector.extract_strided_slice %354 {offsets = [0, 96], sizes = [16, 32], strides = [1, 1]} : vector<16x128xf32> to vector<16x32xf32>
    %362 = math.tanh %361 : vector<16x32xf32>
    %363 = vector.extract_strided_slice %360 {offsets = [0, 32], sizes = [16, 32], strides = [1, 1]} : vector<16x96xf32> to vector<16x32xf32>
    %364 = arith.mulf %363, %338 : vector<16x32xf32>
    %365 = vector.extract_strided_slice %360 {offsets = [0, 0], sizes = [16, 32], strides = [1, 1]} : vector<16x96xf32> to vector<16x32xf32>
    %366 = arith.mulf %365, %362 : vector<16x32xf32>
    %367 = arith.addf %364, %366 : vector<16x32xf32>
    %368 = vector.extract_strided_slice %360 {offsets = [0, 64], sizes = [16, 32], strides = [1, 1]} : vector<16x96xf32> to vector<16x32xf32>
    %369 = math.tanh %367 : vector<16x32xf32>
    %370 = arith.mulf %368, %369 : vector<16x32xf32>
    %371 = vector.extract_strided_slice %370 {offsets = [0, 0], sizes = [8, 32], strides = [1, 1]} : vector<16x32xf32> to vector<8x32xf32>
    %c8_161 = arith.constant 8 : index
    %c0_162 = arith.constant 0 : index
    %372 = vector.load %arg11[%c8_161, %c0_162] : memref<64x64xf32, #tpu.memory_space<vmem>>, vector<8x32xf32>
    tpu.vector_store %arg11[%c8_161, %c0_162], %371 {strides = array<i32>} : memref<64x64xf32, #tpu.memory_space<vmem>>, vector<8x32xf32>,
    %373 = vector.extract_strided_slice %370 {offsets = [8, 0], sizes = [8, 32], strides = [1, 1]} : vector<16x32xf32> to vector<8x32xf32>
    %c48_163 = arith.constant 48 : index
    %c32_164 = arith.constant 32 : index
    %374 = vector.load %arg11[%c48_163, %c32_164] : memref<64x64xf32, #tpu.memory_space<vmem>>, vector<8x32xf32>
    tpu.vector_store %arg11[%c48_163, %c32_164], %373 {strides = array<i32>} : memref<64x64xf32, #tpu.memory_space<vmem>>, vector<8x32xf32>,
    %c0_165 = arith.constant 0 : index
    %c0_166 = arith.constant 0 : index
    %375 = vector.load %arg5[%c0_165, %c0_166] : memref<32x256xf32, #tpu.memory_space<vmem>>, vector<32x256xf32>
    %cst_167 = arith.constant dense<0.000000e+00> : vector<16x256xf32>
    %376 = tpu.matmul %370, %375, %cst_167 {dimension_numbers = #tpu.dot_dimension_numbers<[1], [0], [0], [1], [0, 0, 1, 1], [], []>} : vector<16x32xf32>, vector<32x256xf32>, vector<16x256xf32> -> vector<16x256xf32>
    %377 = vector.extract_strided_slice %376 {offsets = [0, 0], sizes = [16, 128], strides = [1, 1]} : vector<16x256xf32> to vector<16x128xf32>
    %378 = vector.extract_strided_slice %376 {offsets = [0, 128], sizes = [16, 128], strides = [1, 1]} : vector<16x256xf32> to vector<16x128xf32>
    %379 = vector.shape_cast %2 : vector<16x1xi1> to vector<16x1xi1>
    %380 = vector.broadcast %379 : vector<16x1xi1> to vector<16x128xi1>
    %381 = arith.select %380, %377, %378 : vector<16x128xi1>, vector<16x128xf32>
    %c32_168 = arith.constant 32 : index
    %c0_169 = arith.constant 0 : index
    %382 = vector.load %arg10[%c32_168, %c0_169] : memref<128x128xf32, #tpu.memory_space<vmem>>, vector<16x128xf32>
    %383 = arith.addf %381, %382 : vector<16x128xf32>
    %384 = vector.extract_strided_slice %383 {offsets = [0, 0], sizes = [16, 96], strides = [1, 1]} : vector<16x128xf32> to vector<16x96xf32>
    %385 = arith.negf %384 : vector<16x96xf32>
    %386 = math.exp %385 : vector<16x96xf32>
    %cst_170 = arith.constant 1.000000e+00 : f32
    %387 = vector.broadcast %cst_170 : f32 to vector<16x96xf32>
    %388 = arith.addf %387, %386 : vector<16x96xf32>
    %389 = arith.divf %387, %388 : vector<16x96xf32>
    %390 = vector.extract_strided_slice %383 {offsets = [0, 96], sizes = [16, 32], strides = [1, 1]} : vector<16x128xf32> to vector<16x32xf32>
    %391 = math.tanh %390 : vector<16x32xf32>
    %392 = vector.extract_strided_slice %389 {offsets = [0, 32], sizes = [16, 32], strides = [1, 1]} : vector<16x96xf32> to vector<16x32xf32>
    %393 = arith.mulf %392, %367 : vector<16x32xf32>
    %394 = vector.extract_strided_slice %389 {offsets = [0, 0], sizes = [16, 32], strides = [1, 1]} : vector<16x96xf32> to vector<16x32xf32>
    %395 = arith.mulf %394, %391 : vector<16x32xf32>
    %396 = arith.addf %393, %395 : vector<16x32xf32>
    %397 = vector.extract_strided_slice %389 {offsets = [0, 64], sizes = [16, 32], strides = [1, 1]} : vector<16x96xf32> to vector<16x32xf32>
    %398 = math.tanh %396 : vector<16x32xf32>
    %399 = arith.mulf %397, %398 : vector<16x32xf32>
    %400 = vector.extract_strided_slice %399 {offsets = [0, 0], sizes = [8, 32], strides = [1, 1]} : vector<16x32xf32> to vector<8x32xf32>
    %c16_171 = arith.constant 16 : index
    %c0_172 = arith.constant 0 : index
    %401 = vector.load %arg11[%c16_171, %c0_172] : memref<64x64xf32, #tpu.memory_space<vmem>>, vector<8x32xf32>
    tpu.vector_store %arg11[%c16_171, %c0_172], %400 {strides = array<i32>} : memref<64x64xf32, #tpu.memory_space<vmem>>, vector<8x32xf32>,
    %402 = vector.extract_strided_slice %399 {offsets = [8, 0], sizes = [8, 32], strides = [1, 1]} : vector<16x32xf32> to vector<8x32xf32>
    %c40_173 = arith.constant 40 : index
    %c32_174 = arith.constant 32 : index
    %403 = vector.load %arg11[%c40_173, %c32_174] : memref<64x64xf32, #tpu.memory_space<vmem>>, vector<8x32xf32>
    tpu.vector_store %arg11[%c40_173, %c32_174], %402 {strides = array<i32>} : memref<64x64xf32, #tpu.memory_space<vmem>>, vector<8x32xf32>,
    %c0_175 = arith.constant 0 : index
    %c0_176 = arith.constant 0 : index
    %404 = vector.load %arg5[%c0_175, %c0_176] : memref<32x256xf32, #tpu.memory_space<vmem>>, vector<32x256xf32>
    %cst_177 = arith.constant dense<0.000000e+00> : vector<16x256xf32>
    %405 = tpu.matmul %399, %404, %cst_177 {dimension_numbers = #tpu.dot_dimension_numbers<[1], [0], [0], [1], [0, 0, 1, 1], [], []>} : vector<16x32xf32>, vector<32x256xf32>, vector<16x256xf32> -> vector<16x256xf32>
    %406 = vector.extract_strided_slice %405 {offsets = [0, 0], sizes = [16, 128], strides = [1, 1]} : vector<16x256xf32> to vector<16x128xf32>
    %407 = vector.extract_strided_slice %405 {offsets = [0, 128], sizes = [16, 128], strides = [1, 1]} : vector<16x256xf32> to vector<16x128xf32>
    %408 = vector.shape_cast %2 : vector<16x1xi1> to vector<16x1xi1>
    %409 = vector.broadcast %408 : vector<16x1xi1> to vector<16x128xi1>
    %410 = arith.select %409, %406, %407 : vector<16x128xi1>, vector<16x128xf32>
    %c48_178 = arith.constant 48 : index
    %c0_179 = arith.constant 0 : index
    %411 = vector.load %arg10[%c48_178, %c0_179] : memref<128x128xf32, #tpu.memory_space<vmem>>, vector<16x128xf32>
    %412 = arith.addf %410, %411 : vector<16x128xf32>
    %413 = vector.extract_strided_slice %412 {offsets = [0, 0], sizes = [16, 96], strides = [1, 1]} : vector<16x128xf32> to vector<16x96xf32>
    %414 = arith.negf %413 : vector<16x96xf32>
    %415 = math.exp %414 : vector<16x96xf32>
    %cst_180 = arith.constant 1.000000e+00 : f32
    %416 = vector.broadcast %cst_180 : f32 to vector<16x96xf32>
    %417 = arith.addf %416, %415 : vector<16x96xf32>
    %418 = arith.divf %416, %417 : vector<16x96xf32>
    %419 = vector.extract_strided_slice %412 {offsets = [0, 96], sizes = [16, 32], strides = [1, 1]} : vector<16x128xf32> to vector<16x32xf32>
    %420 = math.tanh %419 : vector<16x32xf32>
    %421 = vector.extract_strided_slice %418 {offsets = [0, 32], sizes = [16, 32], strides = [1, 1]} : vector<16x96xf32> to vector<16x32xf32>
    %422 = arith.mulf %421, %396 : vector<16x32xf32>
    %423 = vector.extract_strided_slice %418 {offsets = [0, 0], sizes = [16, 32], strides = [1, 1]} : vector<16x96xf32> to vector<16x32xf32>
    %424 = arith.mulf %423, %420 : vector<16x32xf32>
    %425 = arith.addf %422, %424 : vector<16x32xf32>
    %426 = vector.extract_strided_slice %418 {offsets = [0, 64], sizes = [16, 32], strides = [1, 1]} : vector<16x96xf32> to vector<16x32xf32>
    %427 = math.tanh %425 : vector<16x32xf32>
    %428 = arith.mulf %426, %427 : vector<16x32xf32>
    %429 = vector.extract_strided_slice %428 {offsets = [0, 0], sizes = [8, 32], strides = [1, 1]} : vector<16x32xf32> to vector<8x32xf32>
    %c24_181 = arith.constant 24 : index
    %c0_182 = arith.constant 0 : index
    %430 = vector.load %arg11[%c24_181, %c0_182] : memref<64x64xf32, #tpu.memory_space<vmem>>, vector<8x32xf32>
    tpu.vector_store %arg11[%c24_181, %c0_182], %429 {strides = array<i32>} : memref<64x64xf32, #tpu.memory_space<vmem>>, vector<8x32xf32>,
    %431 = vector.extract_strided_slice %428 {offsets = [8, 0], sizes = [8, 32], strides = [1, 1]} : vector<16x32xf32> to vector<8x32xf32>
    %c32_183 = arith.constant 32 : index
    %c32_184 = arith.constant 32 : index
    %432 = vector.load %arg11[%c32_183, %c32_184] : memref<64x64xf32, #tpu.memory_space<vmem>>, vector<8x32xf32>
    tpu.vector_store %arg11[%c32_183, %c32_184], %431 {strides = array<i32>} : memref<64x64xf32, #tpu.memory_space<vmem>>, vector<8x32xf32>,
    %c0_185 = arith.constant 0 : index
    %c0_186 = arith.constant 0 : index
    %433 = vector.load %arg5[%c0_185, %c0_186] : memref<32x256xf32, #tpu.memory_space<vmem>>, vector<32x256xf32>
    %cst_187 = arith.constant dense<0.000000e+00> : vector<16x256xf32>
    %434 = tpu.matmul %428, %433, %cst_187 {dimension_numbers = #tpu.dot_dimension_numbers<[1], [0], [0], [1], [0, 0, 1, 1], [], []>} : vector<16x32xf32>, vector<32x256xf32>, vector<16x256xf32> -> vector<16x256xf32>
    %435 = vector.extract_strided_slice %434 {offsets = [0, 0], sizes = [16, 128], strides = [1, 1]} : vector<16x256xf32> to vector<16x128xf32>
    %436 = vector.extract_strided_slice %434 {offsets = [0, 128], sizes = [16, 128], strides = [1, 1]} : vector<16x256xf32> to vector<16x128xf32>
    %437 = vector.shape_cast %2 : vector<16x1xi1> to vector<16x1xi1>
    %438 = vector.broadcast %437 : vector<16x1xi1> to vector<16x128xi1>
    %439 = arith.select %438, %435, %436 : vector<16x128xi1>, vector<16x128xf32>
    %c64_188 = arith.constant 64 : index
    %c0_189 = arith.constant 0 : index
    %440 = vector.load %arg10[%c64_188, %c0_189] : memref<128x128xf32, #tpu.memory_space<vmem>>, vector<16x128xf32>
    %441 = arith.addf %439, %440 : vector<16x128xf32>
    %442 = vector.extract_strided_slice %441 {offsets = [0, 0], sizes = [16, 96], strides = [1, 1]} : vector<16x128xf32> to vector<16x96xf32>
    %443 = arith.negf %442 : vector<16x96xf32>
    %444 = math.exp %443 : vector<16x96xf32>
    %cst_190 = arith.constant 1.000000e+00 : f32
    %445 = vector.broadcast %cst_190 : f32 to vector<16x96xf32>
    %446 = arith.addf %445, %444 : vector<16x96xf32>
    %447 = arith.divf %445, %446 : vector<16x96xf32>
    %448 = vector.extract_strided_slice %441 {offsets = [0, 96], sizes = [16, 32], strides = [1, 1]} : vector<16x128xf32> to vector<16x32xf32>
    %449 = math.tanh %448 : vector<16x32xf32>
    %450 = vector.extract_strided_slice %447 {offsets = [0, 32], sizes = [16, 32], strides = [1, 1]} : vector<16x96xf32> to vector<16x32xf32>
    %451 = arith.mulf %450, %425 : vector<16x32xf32>
    %452 = vector.extract_strided_slice %447 {offsets = [0, 0], sizes = [16, 32], strides = [1, 1]} : vector<16x96xf32> to vector<16x32xf32>
    %453 = arith.mulf %452, %449 : vector<16x32xf32>
    %454 = arith.addf %451, %453 : vector<16x32xf32>
    %455 = vector.extract_strided_slice %447 {offsets = [0, 64], sizes = [16, 32], strides = [1, 1]} : vector<16x96xf32> to vector<16x32xf32>
    %456 = math.tanh %454 : vector<16x32xf32>
    %457 = arith.mulf %455, %456 : vector<16x32xf32>
    %458 = vector.extract_strided_slice %457 {offsets = [0, 0], sizes = [8, 32], strides = [1, 1]} : vector<16x32xf32> to vector<8x32xf32>
    %c32_191 = arith.constant 32 : index
    %c0_192 = arith.constant 0 : index
    %459 = vector.load %arg11[%c32_191, %c0_192] : memref<64x64xf32, #tpu.memory_space<vmem>>, vector<8x32xf32>
    tpu.vector_store %arg11[%c32_191, %c0_192], %458 {strides = array<i32>} : memref<64x64xf32, #tpu.memory_space<vmem>>, vector<8x32xf32>,
    %460 = vector.extract_strided_slice %457 {offsets = [8, 0], sizes = [8, 32], strides = [1, 1]} : vector<16x32xf32> to vector<8x32xf32>
    %c24_193 = arith.constant 24 : index
    %c32_194 = arith.constant 32 : index
    %461 = vector.load %arg11[%c24_193, %c32_194] : memref<64x64xf32, #tpu.memory_space<vmem>>, vector<8x32xf32>
    tpu.vector_store %arg11[%c24_193, %c32_194], %460 {strides = array<i32>} : memref<64x64xf32, #tpu.memory_space<vmem>>, vector<8x32xf32>,
    %c0_195 = arith.constant 0 : index
    %c0_196 = arith.constant 0 : index
    %462 = vector.load %arg5[%c0_195, %c0_196] : memref<32x256xf32, #tpu.memory_space<vmem>>, vector<32x256xf32>
    %cst_197 = arith.constant dense<0.000000e+00> : vector<16x256xf32>
    %463 = tpu.matmul %457, %462, %cst_197 {dimension_numbers = #tpu.dot_dimension_numbers<[1], [0], [0], [1], [0, 0, 1, 1], [], []>} : vector<16x32xf32>, vector<32x256xf32>, vector<16x256xf32> -> vector<16x256xf32>
    %464 = vector.extract_strided_slice %463 {offsets = [0, 0], sizes = [16, 128], strides = [1, 1]} : vector<16x256xf32> to vector<16x128xf32>
    %465 = vector.extract_strided_slice %463 {offsets = [0, 128], sizes = [16, 128], strides = [1, 1]} : vector<16x256xf32> to vector<16x128xf32>
    %466 = vector.shape_cast %2 : vector<16x1xi1> to vector<16x1xi1>
    %467 = vector.broadcast %466 : vector<16x1xi1> to vector<16x128xi1>
    %468 = arith.select %467, %464, %465 : vector<16x128xi1>, vector<16x128xf32>
    %c80_198 = arith.constant 80 : index
    %c0_199 = arith.constant 0 : index
    %469 = vector.load %arg10[%c80_198, %c0_199] : memref<128x128xf32, #tpu.memory_space<vmem>>, vector<16x128xf32>
    %470 = arith.addf %468, %469 : vector<16x128xf32>
    %471 = vector.extract_strided_slice %470 {offsets = [0, 0], sizes = [16, 96], strides = [1, 1]} : vector<16x128xf32> to vector<16x96xf32>
    %472 = arith.negf %471 : vector<16x96xf32>
    %473 = math.exp %472 : vector<16x96xf32>
    %cst_200 = arith.constant 1.000000e+00 : f32
    %474 = vector.broadcast %cst_200 : f32 to vector<16x96xf32>
    %475 = arith.addf %474, %473 : vector<16x96xf32>
    %476 = arith.divf %474, %475 : vector<16x96xf32>
    %477 = vector.extract_strided_slice %470 {offsets = [0, 96], sizes = [16, 32], strides = [1, 1]} : vector<16x128xf32> to vector<16x32xf32>
    %478 = math.tanh %477 : vector<16x32xf32>
    %479 = vector.extract_strided_slice %476 {offsets = [0, 32], sizes = [16, 32], strides = [1, 1]} : vector<16x96xf32> to vector<16x32xf32>
    %480 = arith.mulf %479, %454 : vector<16x32xf32>
    %481 = vector.extract_strided_slice %476 {offsets = [0, 0], sizes = [16, 32], strides = [1, 1]} : vector<16x96xf32> to vector<16x32xf32>
    %482 = arith.mulf %481, %478 : vector<16x32xf32>
    %483 = arith.addf %480, %482 : vector<16x32xf32>
    %484 = vector.extract_strided_slice %476 {offsets = [0, 64], sizes = [16, 32], strides = [1, 1]} : vector<16x96xf32> to vector<16x32xf32>
    %485 = math.tanh %483 : vector<16x32xf32>
    %486 = arith.mulf %484, %485 : vector<16x32xf32>
    %487 = vector.extract_strided_slice %486 {offsets = [0, 0], sizes = [8, 32], strides = [1, 1]} : vector<16x32xf32> to vector<8x32xf32>
    %c40_201 = arith.constant 40 : index
    %c0_202 = arith.constant 0 : index
    %488 = vector.load %arg11[%c40_201, %c0_202] : memref<64x64xf32, #tpu.memory_space<vmem>>, vector<8x32xf32>
    tpu.vector_store %arg11[%c40_201, %c0_202], %487 {strides = array<i32>} : memref<64x64xf32, #tpu.memory_space<vmem>>, vector<8x32xf32>,
    %489 = vector.extract_strided_slice %486 {offsets = [8, 0], sizes = [8, 32], strides = [1, 1]} : vector<16x32xf32> to vector<8x32xf32>
    %c16_203 = arith.constant 16 : index
    %c32_204 = arith.constant 32 : index
    %490 = vector.load %arg11[%c16_203, %c32_204] : memref<64x64xf32, #tpu.memory_space<vmem>>, vector<8x32xf32>
    tpu.vector_store %arg11[%c16_203, %c32_204], %489 {strides = array<i32>} : memref<64x64xf32, #tpu.memory_space<vmem>>, vector<8x32xf32>,
    %c0_205 = arith.constant 0 : index
    %c0_206 = arith.constant 0 : index
    %491 = vector.load %arg5[%c0_205, %c0_206] : memref<32x256xf32, #tpu.memory_space<vmem>>, vector<32x256xf32>
    %cst_207 = arith.constant dense<0.000000e+00> : vector<16x256xf32>
    %492 = tpu.matmul %486, %491, %cst_207 {dimension_numbers = #tpu.dot_dimension_numbers<[1], [0], [0], [1], [0, 0, 1, 1], [], []>} : vector<16x32xf32>, vector<32x256xf32>, vector<16x256xf32> -> vector<16x256xf32>
    %493 = vector.extract_strided_slice %492 {offsets = [0, 0], sizes = [16, 128], strides = [1, 1]} : vector<16x256xf32> to vector<16x128xf32>
    %494 = vector.extract_strided_slice %492 {offsets = [0, 128], sizes = [16, 128], strides = [1, 1]} : vector<16x256xf32> to vector<16x128xf32>
    %495 = vector.shape_cast %2 : vector<16x1xi1> to vector<16x1xi1>
    %496 = vector.broadcast %495 : vector<16x1xi1> to vector<16x128xi1>
    %497 = arith.select %496, %493, %494 : vector<16x128xi1>, vector<16x128xf32>
    %c96_208 = arith.constant 96 : index
    %c0_209 = arith.constant 0 : index
    %498 = vector.load %arg10[%c96_208, %c0_209] : memref<128x128xf32, #tpu.memory_space<vmem>>, vector<16x128xf32>
    %499 = arith.addf %497, %498 : vector<16x128xf32>
    %500 = vector.extract_strided_slice %499 {offsets = [0, 0], sizes = [16, 96], strides = [1, 1]} : vector<16x128xf32> to vector<16x96xf32>
    %501 = arith.negf %500 : vector<16x96xf32>
    %502 = math.exp %501 : vector<16x96xf32>
    %cst_210 = arith.constant 1.000000e+00 : f32
    %503 = vector.broadcast %cst_210 : f32 to vector<16x96xf32>
    %504 = arith.addf %503, %502 : vector<16x96xf32>
    %505 = arith.divf %503, %504 : vector<16x96xf32>
    %506 = vector.extract_strided_slice %499 {offsets = [0, 96], sizes = [16, 32], strides = [1, 1]} : vector<16x128xf32> to vector<16x32xf32>
    %507 = math.tanh %506 : vector<16x32xf32>
    %508 = vector.extract_strided_slice %505 {offsets = [0, 32], sizes = [16, 32], strides = [1, 1]} : vector<16x96xf32> to vector<16x32xf32>
    %509 = arith.mulf %508, %483 : vector<16x32xf32>
    %510 = vector.extract_strided_slice %505 {offsets = [0, 0], sizes = [16, 32], strides = [1, 1]} : vector<16x96xf32> to vector<16x32xf32>
    %511 = arith.mulf %510, %507 : vector<16x32xf32>
    %512 = arith.addf %509, %511 : vector<16x32xf32>
    %513 = vector.extract_strided_slice %505 {offsets = [0, 64], sizes = [16, 32], strides = [1, 1]} : vector<16x96xf32> to vector<16x32xf32>
    %514 = math.tanh %512 : vector<16x32xf32>
    %515 = arith.mulf %513, %514 : vector<16x32xf32>
    %516 = vector.extract_strided_slice %515 {offsets = [0, 0], sizes = [8, 32], strides = [1, 1]} : vector<16x32xf32> to vector<8x32xf32>
    %c48_211 = arith.constant 48 : index
    %c0_212 = arith.constant 0 : index
    %517 = vector.load %arg11[%c48_211, %c0_212] : memref<64x64xf32, #tpu.memory_space<vmem>>, vector<8x32xf32>
    tpu.vector_store %arg11[%c48_211, %c0_212], %516 {strides = array<i32>} : memref<64x64xf32, #tpu.memory_space<vmem>>, vector<8x32xf32>,
    %518 = vector.extract_strided_slice %515 {offsets = [8, 0], sizes = [8, 32], strides = [1, 1]} : vector<16x32xf32> to vector<8x32xf32>
    %c8_213 = arith.constant 8 : index
    %c32_214 = arith.constant 32 : index
    %519 = vector.load %arg11[%c8_213, %c32_214] : memref<64x64xf32, #tpu.memory_space<vmem>>, vector<8x32xf32>
    tpu.vector_store %arg11[%c8_213, %c32_214], %518 {strides = array<i32>} : memref<64x64xf32, #tpu.memory_space<vmem>>, vector<8x32xf32>,
    %c0_215 = arith.constant 0 : index
    %c0_216 = arith.constant 0 : index
    %520 = vector.load %arg5[%c0_215, %c0_216] : memref<32x256xf32, #tpu.memory_space<vmem>>, vector<32x256xf32>
    %cst_217 = arith.constant dense<0.000000e+00> : vector<16x256xf32>
    %521 = tpu.matmul %515, %520, %cst_217 {dimension_numbers = #tpu.dot_dimension_numbers<[1], [0], [0], [1], [0, 0, 1, 1], [], []>} : vector<16x32xf32>, vector<32x256xf32>, vector<16x256xf32> -> vector<16x256xf32>
    %522 = vector.extract_strided_slice %521 {offsets = [0, 0], sizes = [16, 128], strides = [1, 1]} : vector<16x256xf32> to vector<16x128xf32>
    %523 = vector.extract_strided_slice %521 {offsets = [0, 128], sizes = [16, 128], strides = [1, 1]} : vector<16x256xf32> to vector<16x128xf32>
    %524 = vector.shape_cast %2 : vector<16x1xi1> to vector<16x1xi1>
    %525 = vector.broadcast %524 : vector<16x1xi1> to vector<16x128xi1>
    %526 = arith.select %525, %522, %523 : vector<16x128xi1>, vector<16x128xf32>
    %c112_218 = arith.constant 112 : index
    %c0_219 = arith.constant 0 : index
    %527 = vector.load %arg10[%c112_218, %c0_219] : memref<128x128xf32, #tpu.memory_space<vmem>>, vector<16x128xf32>
    %528 = arith.addf %526, %527 : vector<16x128xf32>
    %529 = vector.extract_strided_slice %528 {offsets = [0, 0], sizes = [16, 96], strides = [1, 1]} : vector<16x128xf32> to vector<16x96xf32>
    %530 = arith.negf %529 : vector<16x96xf32>
    %531 = math.exp %530 : vector<16x96xf32>
    %cst_220 = arith.constant 1.000000e+00 : f32
    %532 = vector.broadcast %cst_220 : f32 to vector<16x96xf32>
    %533 = arith.addf %532, %531 : vector<16x96xf32>
    %534 = arith.divf %532, %533 : vector<16x96xf32>
    %535 = vector.extract_strided_slice %528 {offsets = [0, 96], sizes = [16, 32], strides = [1, 1]} : vector<16x128xf32> to vector<16x32xf32>
    %536 = math.tanh %535 : vector<16x32xf32>
    %537 = vector.extract_strided_slice %534 {offsets = [0, 32], sizes = [16, 32], strides = [1, 1]} : vector<16x96xf32> to vector<16x32xf32>
    %538 = arith.mulf %537, %512 : vector<16x32xf32>
    %539 = vector.extract_strided_slice %534 {offsets = [0, 0], sizes = [16, 32], strides = [1, 1]} : vector<16x96xf32> to vector<16x32xf32>
    %540 = arith.mulf %539, %536 : vector<16x32xf32>
    %541 = arith.addf %538, %540 : vector<16x32xf32>
    %542 = vector.extract_strided_slice %534 {offsets = [0, 64], sizes = [16, 32], strides = [1, 1]} : vector<16x96xf32> to vector<16x32xf32>
    %543 = math.tanh %541 : vector<16x32xf32>
    %544 = arith.mulf %542, %543 : vector<16x32xf32>
    %545 = vector.extract_strided_slice %544 {offsets = [0, 0], sizes = [8, 32], strides = [1, 1]} : vector<16x32xf32> to vector<8x32xf32>
    %c56_221 = arith.constant 56 : index
    %c0_222 = arith.constant 0 : index
    %546 = vector.load %arg11[%c56_221, %c0_222] : memref<64x64xf32, #tpu.memory_space<vmem>>, vector<8x32xf32>
    tpu.vector_store %arg11[%c56_221, %c0_222], %545 {strides = array<i32>} : memref<64x64xf32, #tpu.memory_space<vmem>>, vector<8x32xf32>,
    %547 = vector.extract_strided_slice %544 {offsets = [8, 0], sizes = [8, 32], strides = [1, 1]} : vector<16x32xf32> to vector<8x32xf32>
    %c0_223 = arith.constant 0 : index
    %c32_224 = arith.constant 32 : index
    %548 = vector.load %arg11[%c0_223, %c32_224] : memref<64x64xf32, #tpu.memory_space<vmem>>, vector<8x32xf32>
    tpu.vector_store %arg11[%c0_223, %c32_224], %547 {strides = array<i32>} : memref<64x64xf32, #tpu.memory_space<vmem>>, vector<8x32xf32>,
    %c0_225 = arith.constant 0 : index
    %c0_226 = arith.constant 0 : index
    %549 = vector.load %arg11[%c0_225, %c0_226] : memref<64x64xf32, #tpu.memory_space<vmem>>, vector<64x64xf32>
    %550 = arith.truncf %549 : vector<64x64xf32> to vector<64x64xbf16>
    %c0_227 = arith.constant 0 : index
    %c0_228 = arith.constant 0 : index
    %551 = vector.load %arg7[%c0_227, %c0_228] : memref<64x128xbf16, #tpu.memory_space<vmem>>, vector<64x128xbf16>
    %cst_229 = arith.constant dense<0.000000e+00> : vector<64x128xf32>
    %552 = tpu.matmul %550, %551, %cst_229 {dimension_numbers = #tpu.dot_dimension_numbers<[1], [0], [0], [1], [0, 0, 1, 1], [], []>} : vector<64x64xbf16>, vector<64x128xbf16>, vector<64x128xf32> -> vector<64x128xf32>
    %c0_230 = arith.constant 0 : index
    %c0_231 = arith.constant 0 : index
    %553 = vector.load %arg8[%c0_230, %c0_231] : memref<1x128xf32, #tpu.memory_space<vmem>>, vector<1x128xf32>
    %554 = vector.broadcast %553 : vector<1x128xf32> to vector<64x128xf32>
    %555 = arith.addf %552, %554 : vector<64x128xf32>
    %c0_232 = arith.constant 0 : index
    %c0_233 = arith.constant 0 : index
    %556 = vector.load %arg9[%c0_232, %c0_233] : memref<64x128xf32, #tpu.memory_space<vmem>>, vector<64x128xf32>
    tpu.vector_store %arg9[%c0_232, %c0_233], %555 {strides = array<i32>} : memref<64x128xf32, #tpu.memory_space<vmem>>, vector<64x128xf32>,
    return
  }
}

</mosaic_0001>

<llo_original>
// kernel: generator_forward.1
$region0: #{generator_forward.1}
  #allocation0 [shape = 'u32[]', space=smem, size = 0x4, offset = 0x4, fixed_abs, tag = 'smem constant byte address 0x4 - core index']
  #allocation1 [shape = 'u32[144,128]{1,0:T(1,128)}', space=vmem, size = 0x12000, scoped, tag = 'internal scratch']
  #allocation2 [shape = 'f32[128,128]{1,0:T(8,128)}', space=vmem, size = 0x10000, scoped, tag = 'scratch operand']
  #allocation3 [shape = 'f32[64,64]{1,0:T(8,128)}', space=vmem, size = 0x8000, scoped, tag = 'scratch operand']
  %s0 = inlined_call_operand.vmem [shape: f32[64,8], index: 0, kind: input, shape index: {}]
  %s1 = inlined_call_operand.hbm [shape: bf16[8,256], index: 1, kind: input, shape index: {}]
  %s2 = inlined_call_operand.vmem [shape: f32[32,256], index: 2, kind: input, shape index: {}]
  %s3 = inlined_call_operand.hbm [shape: f32[1,256], index: 3, kind: input, shape index: {}]
  %s4 = inlined_call_operand.vmem [shape: bf16[64,256], index: 4, kind: input, shape index: {}]
  %s5 = inlined_call_operand.vmem [shape: f32[32,256], index: 5, kind: input, shape index: {}]
  %s6 = inlined_call_operand.hbm [shape: f32[1,256], index: 6, kind: input, shape index: {}]
  %s7 = inlined_call_operand.vmem [shape: bf16[64,128], index: 7, kind: input, shape index: {}]
  %s8 = inlined_call_operand.vmem [shape: f32[1,128], index: 8, kind: input, shape index: {}]
  %s9 = inlined_call_operand.vmem [shape: f32[64,128], index: 9, kind: output, shape index: {}]
  %s10 = sld [smem:[#allocation0]]
  $region58: #{generator_forward.1} parent=0
    _
  %s12 = ssub.s32 1, %s10
  %s13 = scalar_select 0, %s12, %s10
  $region1: #{generator_forward.1} parent=0
    #allocation4 [shape = 'u8[4096]{0}', space=vmem, size = 0x1000, scoped, tag = 'input window, operand 1, single buffered']
    #allocation5 [shape = 's32[1]{0}', space=sflag, size = 0x4, scoped, tag = 'scoped memory for generator_forward.1']
    #allocation6 [shape = 'u8[1024]{0}', space=vmem, size = 0x400, scoped, tag = 'input window, operand 3, single buffered']
    #allocation7 [shape = 's32[1]{0}', space=sflag, size = 0x4, scoped, tag = 'scoped memory for generator_forward.1']
    #allocation8 [shape = 'u8[1024]{0}', space=vmem, size = 0x400, scoped, tag = 'input window, operand 6, single buffered']
    %14 = vsyncpa [#allocation5], 0
    %15 = vsyncpa [#allocation7], 0
    // Predicated region
    $region2: #{generator_forward.1} parent=1 // pred_check
      _
    $region3: #{generator_forward.1} parent=1 // pred_check_branch
      %17 = sbr.rel (0) target = $region5
    $region4: #{generator_forward.1} parent=1 // pred_region
      _
    $region5: #{generator_forward.1} parent=1 // pred_fallthru
      _
    // Predicated region
    $region6: #{generator_forward.1} parent=1 // pred_check
      _
    $region7: #{generator_forward.1} parent=1 // pred_check_branch
      %19 = sbr.rel (0) target = $region9
    $region8: #{generator_forward.1} parent=1 // pred_region
      %s21 = ssub.s32 128, 128
      %22 = vsyncadd [#allocation5], %s21
      %s24 = sshll.u32 [#allocation4], 4
      %s25 = int_to_ptr.vmem [resolvable:$true] %s24
      %27 = dma.hbm_to_vmem [thread:$0]  %s1, 128, %s25, [#allocation5]
    $region9: #{generator_forward.1} parent=1 // pred_fallthru
      _
    // Predicated region
    $region10: #{generator_forward.1} parent=1 // pred_check
      _
    $region11: #{generator_forward.1} parent=1 // pred_check_branch
      %29 = sbr.rel (0) target = $region13
    $region12: #{generator_forward.1} parent=1 // pred_region
      _
    $region13: #{generator_forward.1} parent=1 // pred_fallthru
      _
    // Predicated region
    $region14: #{generator_forward.1} parent=1 // pred_check
      _
    $region15: #{generator_forward.1} parent=1 // pred_check_branch
      %31 = sbr.rel (0) target = $region17
    $region16: #{generator_forward.1} parent=1 // pred_region
      %s33 = ssub.s32 32, 32
      %34 = vsyncadd [#allocation7], %s33
      %s36 = sshll.u32 [#allocation6], 4
      %s37 = int_to_ptr.vmem [resolvable:$true] %s36
      %39 = dma.hbm_to_vmem [thread:$0]  %s3, 32, %s37, [#allocation7]
    $region17: #{generator_forward.1} parent=1 // pred_fallthru
      _
    // Predicated region
    $region18: #{generator_forward.1} parent=1 // pred_check
      _
    $region19: #{generator_forward.1} parent=1 // pred_check_branch
      %41 = sbr.rel (0) target = $region21
    $region20: #{generator_forward.1} parent=1 // pred_region
      _
    $region21: #{generator_forward.1} parent=1 // pred_fallthru
      _
    // Predicated region
    $region22: #{generator_forward.1} parent=1 // pred_check
      _
    $region23: #{generator_forward.1} parent=1 // pred_check_branch
      %43 = sbr.rel (0) target = $region25
    $region24: #{generator_forward.1} parent=1 // pred_region
      _
    $region25: #{generator_forward.1} parent=1 // pred_fallthru
      _
    // Predicated region
    $region26: #{generator_forward.1} parent=1 // pred_check
      _
    $region27: #{generator_forward.1} parent=1 // pred_check_branch
      %45 = sbr.rel (0) target = $region29
    $region28: #{generator_forward.1} parent=1 // pred_region
      %s47 = ssub.s32 32, 32
      %48 = vsyncadd [#allocation7], %s47
      %s50 = sshll.u32 [#allocation8], 4
      %s51 = int_to_ptr.vmem [resolvable:$true] %s50
      %53 = dma.hbm_to_vmem [thread:$0]  %s6, 32, %s51, [#allocation7]
    $region29: #{generator_forward.1} parent=1 // pred_fallthru
      _
    // Predicated region
    $region30: #{generator_forward.1} parent=1 // pred_check
      _
    $region31: #{generator_forward.1} parent=1 // pred_check_branch
      %55 = sbr.rel (0) target = $region33
    $region32: #{generator_forward.1} parent=1 // pred_region
      _
    $region33: #{generator_forward.1} parent=1 // pred_fallthru
      _
    // Predicated region
    $region34: #{generator_forward.1} parent=1 // pred_check
      _
    $region35: #{generator_forward.1} parent=1 // pred_check_branch
      %57 = sbr.rel (0) target = $region37
    $region36: #{generator_forward.1} parent=1 // pred_region
      _
    $region37: #{generator_forward.1} parent=1 // pred_fallthru
      _
    // Predicated region
    $region38: #{generator_forward.1} parent=1 // pred_check
      _
    $region39: #{generator_forward.1} parent=1 // pred_check_branch
      %59 = sbr.rel (0) target = $region41
    $region40: #{generator_forward.1} parent=1 // pred_region
      %60 = dma.done [#allocation5], 128
    $region41: #{generator_forward.1} parent=1 // pred_fallthru
      _
    // Predicated region
    $region42: #{generator_forward.1} parent=1 // pred_check
      _
    $region43: #{generator_forward.1} parent=1 // pred_check_branch
      %62 = sbr.rel (0) target = $region45
    $region44: #{generator_forward.1} parent=1 // pred_region
      %63 = dma.done [#allocation7], 32
    $region45: #{generator_forward.1} parent=1 // pred_fallthru
      _
    // Predicated region
    $region46: #{generator_forward.1} parent=1 // pred_check
      _
    $region47: #{generator_forward.1} parent=1 // pred_check_branch
      %65 = sbr.rel (0) target = $region49
    $region48: #{generator_forward.1} parent=1 // pred_region
      %66 = dma.done [#allocation7], 32
    $region49: #{generator_forward.1} parent=1 // pred_fallthru
      _
    %v68 = vlaneseq
    %v69 = vshrl.u32 %v68, 7
    %v70 = vadd.s32 %v69, 8
    %vm71 = vcmp.lt.s32.totalorder %v69, 8
    %vm72 = vcmp.lt.s32.totalorder %v70, 8
    %v73 = vld [vmem:[%s0] sm:$0xff]
    %v74 = vld [vmem:[%s0 + $0x8] sm:$0xff]
    %v75 = vld [vmem:[%s0 + $0x10] sm:$0xff]
    %v76 = vld [vmem:[%s0 + $0x18] sm:$0xff]
    %v77 = vld [vmem:[%s0 + $0x20] sm:$0xff]
    %v78 = vld [vmem:[%s0 + $0x28] sm:$0xff]
    %v79 = vld [vmem:[%s0 + $0x30] sm:$0xff]
    %v80 = vld [vmem:[%s0 + $0x38] sm:$0xff]
    %v81 = vpack.c.bf16 %v74, %v73
    %v82 = vpack.c.bf16 %v76, %v75
    %v83 = vpack.c.bf16 %v78, %v77
    %v84 = vpack.c.bf16 %v80, %v79
    %v85 = vld [vmem:[#allocation4] sm:$0xff]
    %v86 = vld [vmem:[#allocation6] sm:$0x3]
    %v88 = vlaneseq
    %v89 = vshrl.u32 %v88, 7
    %v90 = vsub.s32 0, %v89
    %v91 = vrot.slane %v86, %v90
    %v92 = vlaneseq
    %v93 = vshrl.u32 %v92, 7
    %v94 = vsub.s32 1, %v93
    %v95 = vrot.slane %v86, %v94
    %v99 = vunpack.c.l.b16 %v85
    %v100 = vunpack.c.h.b16 %v85
    %v101 = vpack.c.b16 %v99, %v99
    %v102 = vpack.c.b16 %v100, %v100
    %vm103 = vcmask 64512
    %v105 = vsel %vm103, %v81, 0
    %v108 = vsel %vm103, %v82, 0
    %v111 = vsel %vm103, %v83, 0
    %v114 = vsel %vm103, %v84, 0
    %vm116 = vcmask 1043456
    %v118 = vsel %vm116, %v101, 0
    %v121 = vsel %vm116, %v102, 0
    %123 = vmatprep.subr.bf16.mxu0 %v121
    %124 = vmatpush1.bf16.msra.mxu0 %v118
    %125 = vmatprep.subr.bf16.mxu0 0
    %126 = vmatpush1.bf16.msra.mxu0 0
    %127 = vmatprep.subr.bf16.mxu0 0
    %128 = vmatpush1.bf16.msra.mxu0 0
    %129 = vmatprep.subr.bf16.mxu0 0
    %130 = vmatpush1.bf16.msra.mxu0 0
    %131 = vmatprep.subr.bf16.mxu0 0
    %132 = vmatpush1.bf16.msra.mxu0 0
    %133 = vmatprep.subr.bf16.mxu0 0
    %134 = vmatpush1.bf16.msra.mxu0 0
    %135 = vmatprep.subr.bf16.mxu0 0
    %136 = vmatpush1.bf16.msra.mxu0 0
    %137 = vmatprep.subr.bf16.mxu0 0
    %138 = vmatpush1.bf16.msra.mxu0 0
    %139 = vmatprep.subr.bf16.mxu0 0
    %140 = vmatpush1.bf16.msra.mxu0 0
    %141 = vmatprep.subr.bf16.mxu0 0
    %142 = vmatpush1.bf16.msra.mxu0 0
    %143 = vmatprep.subr.bf16.mxu0 0
    %144 = vmatpush1.bf16.msra.mxu0 0
    %145 = vmatprep.subr.bf16.mxu0 0
    %146 = vmatpush1.bf16.msra.mxu0 0
    %147 = vmatprep.subr.bf16.mxu0 0
    %148 = vmatpush1.bf16.msra.mxu0 0
    %149 = vmatprep.subr.bf16.mxu0 0
    %150 = vmatpush1.bf16.msra.mxu0 0
    %151 = vmatprep.subr.bf16.mxu0 0
    %152 = vmatpush1.bf16.msra.mxu0 0
    %153 = vmatprep.subr.bf16.mxu0 0
    %154 = vmatpush1.bf16.msra.mxu0 0
    %155 = vmatprep.mubr.bf16.mxu0 0
    %156 = vmatmul.mubr.bf16.gmra.mrb[0].mxu0 %v105
    %v157 = vpop.f32.mrb[0].mxu0
    %v158 = vadd.f32 %v91, %v157
    %v159 = vpop.f32.mrb[0].mxu0
    %v160 = vadd.f32 %v95, %v159
    %v161 = vpop.f32.mrb[0].mxu0
    %v162 = vadd.f32 %v91, %v161
    %v163 = vpop.f32.mrb[0].mxu0
    %v164 = vadd.f32 %v95, %v163
    %165 = vmatprep.mubr.bf16.mxu0 0
    %166 = vmatmul.mubr.bf16.gmra.mrb[0].mxu0 %v108
    %v167 = vpop.f32.mrb[0].mxu0
    %v168 = vadd.f32 %v91, %v167
    %v169 = vpop.f32.mrb[0].mxu0
    %v170 = vadd.f32 %v95, %v169
    %v171 = vpop.f32.mrb[0].mxu0
    %v172 = vadd.f32 %v91, %v171
    %v173 = vpop.f32.mrb[0].mxu0
    %v174 = vadd.f32 %v95, %v173
    %175 = vmatprep.mubr.bf16.mxu0 0
    %176 = vmatmul.mubr.bf16.gmra.mrb[0].mxu0 %v111
    %v177 = vpop.f32.mrb[0].mxu0
    %v178 = vadd.f32 %v91, %v177
    %v179 = vpop.f32.mrb[0].mxu0
    %v180 = vadd.f32 %v95, %v179
    %v181 = vpop.f32.mrb[0].mxu0
    %v182 = vadd.f32 %v91, %v181
    %v183 = vpop.f32.mrb[0].mxu0
    %v184 = vadd.f32 %v95, %v183
    %185 = vmatprep.mubr.bf16.mxu0 0
    %186 = vmatmul.mubr.bf16.gmra.mrb[0].mxu0 %v114
    %v187 = vpop.f32.mrb[0].mxu0
    %v188 = vadd.f32 %v91, %v187
    %v189 = vpop.f32.mrb[0].mxu0
    %v190 = vadd.f32 %v95, %v189
    %v191 = vpop.f32.mrb[0].mxu0
    %v192 = vadd.f32 %v91, %v191
    %v193 = vpop.f32.mrb[0].mxu0
    %v194 = vadd.f32 %v95, %v193
    %195 = vdwg.mxu0
    %196 = vst [vmem:[#allocation2] sm:$0xff] %v158
    %197 = vst [vmem:[#allocation2 + $0x78] sm:$0xff] %v160
    %198 = vst [vmem:[#allocation2 + $0x10] sm:$0xff] %v162
    %199 = vst [vmem:[#allocation2 + $0x68] sm:$0xff] %v164
    %200 = vst [vmem:[#allocation2 + $0x20] sm:$0xff] %v168
    %201 = vst [vmem:[#allocation2 + $0x58] sm:$0xff] %v170
    %202 = vst [vmem:[#allocation2 + $0x30] sm:$0xff] %v172
    %203 = vst [vmem:[#allocation2 + $0x48] sm:$0xff] %v174
    %204 = vst [vmem:[#allocation2 + $0x40] sm:$0xff] %v178
    %205 = vst [vmem:[#allocation2 + $0x38] sm:$0xff] %v180
    %206 = vst [vmem:[#allocation2 + $0x50] sm:$0xff] %v182
    %207 = vst [vmem:[#allocation2 + $0x28] sm:$0xff] %v184
    %208 = vst [vmem:[#allocation2 + $0x60] sm:$0xff] %v188
    %209 = vst [vmem:[#allocation2 + $0x18] sm:$0xff] %v190
    %210 = vst [vmem:[#allocation2 + $0x70] sm:$0xff] %v192
    %211 = vst [vmem:[#allocation2 + $0x8] sm:$0xff] %v194
    %v212 = vld [vmem:[%s2] sm:$0xff]
    %v213 = vld [vmem:[%s2 + $0x8] sm:$0xff]
    %v214 = vld [vmem:[%s2 + $0x10] sm:$0xff]
    %v215 = vld [vmem:[%s2 + $0x18] sm:$0xff]
    %v216 = vld [vmem:[%s2 + $0x20] sm:$0xff]
    %v217 = vld [vmem:[%s2 + $0x28] sm:$0xff]
    %v218 = vld [vmem:[%s2 + $0x30] sm:$0xff]
    %v219 = vld [vmem:[%s2 + $0x38] sm:$0xff]
    %vm220 = vcmask 261120
    %v222 = vsel %vm220, 0.0, 0
    %224 = vmatprep.subr.mxu0 %v213
    %225 = vmatpush1.msra.mxu0 %v212
    %226 = vmatprep.subr.mxu0 %v215
    %227 = vmatpush1.msra.mxu0 %v214
    %228 = vmatprep.subr.mxu0 %v217
    %229 = vmatpush1.msra.mxu0 %v216
    %230 = vmatprep.subr.mxu0 %v219
    %231 = vmatpush1.msra.mxu0 %v218
    %232 = vmatprep.subr.mxu0 0.0
    %233 = vmatpush1.msra.mxu0 0.0
    %234 = vmatprep.subr.mxu0 0.0
    %235 = vmatpush1.msra.mxu0 0.0
    %236 = vmatprep.subr.mxu0 0.0
    %237 = vmatpush1.msra.mxu0 0.0
    %238 = vmatprep.subr.mxu0 0.0
    %239 = vmatpush1.msra.mxu0 0.0
    %240 = vmatprep.subr.mxu0 0.0
    %241 = vmatpush1.msra.mxu0 0.0
    %242 = vmatprep.subr.mxu0 0.0
    %243 = vmatpush1.msra.mxu0 0.0
    %244 = vmatprep.subr.mxu0 0.0
    %245 = vmatpush1.msra.mxu0 0.0
    %246 = vmatprep.subr.mxu0 0.0
    %247 = vmatpush1.msra.mxu0 0.0
    %248 = vmatprep.subr.mxu0 0.0
    %249 = vmatpush1.msra.mxu0 0.0
    %250 = vmatprep.subr.mxu0 0.0
    %251 = vmatpush1.msra.mxu0 0.0
    %252 = vmatprep.subr.mxu0 0.0
    %253 = vmatpush1.msra.mxu0 0.0
    %254 = vmatprep.subr.mxu0 0.0
    %255 = vmatpush1.msra.mxu0 0.0
    %256 = vmatprep.subr.mxu0 0.0
    %257 = vmatpush1.msra.mxu0 0.0
    %258 = vmatprep.subr.mxu0 0.0
    %259 = vmatpush1.msra.mxu0 0.0
    %260 = vmatprep.subr.mxu0 0.0
    %261 = vmatpush1.msra.mxu0 0.0
    %262 = vmatprep.subr.mxu0 0.0
    %263 = vmatpush1.msra.mxu0 0.0
    %264 = vmatprep.subr.mxu0 0.0
    %265 = vmatpush1.msra.mxu0 0.0
    %266 = vmatprep.subr.mxu0 0.0
    %267 = vmatpush1.msra.mxu0 0.0
    %268 = vmatprep.subr.mxu0 0.0
    %269 = vmatpush1.msra.mxu0 0.0
    %270 = vmatprep.subr.mxu0 0.0
    %271 = vmatpush1.msra.mxu0 0.0
    %272 = vmatprep.subr.mxu0 0.0
    %273 = vmatpush1.msra.mxu0 0.0
    %274 = vmatprep.subr.mxu0 0.0
    %275 = vmatpush1.msra.mxu0 0.0
    %276 = vmatprep.subr.mxu0 0.0
    %277 = vmatpush1.msra.mxu0 0.0
    %278 = vmatprep.subr.mxu0 0.0
    %279 = vmatpush1.msra.mxu0 0.0
    %280 = vmatprep.subr.mxu0 0.0
    %281 = vmatpush1.msra.mxu0 0.0
    %282 = vmatprep.subr.mxu0 0.0
    %283 = vmatpush1.msra.mxu0 0.0
    %284 = vmatprep.subr.mxu0 0.0
    %285 = vmatpush1.msra.mxu0 0.0
    %286 = vmatprep.subr.mxu0 0.0
    %287 = vmatpush1.msra.mxu0 0.0
    %288 = vmatprep.mubr.f32.mxu0 0.0
    %289 = vmatmul.mubr.f32.gmra.mrb[0].mxu0 %v222
    %v290 = vpop.f32.mrb[0].mxu0
    %v291 = vadd.f32 0.0, %v290
    %v292 = vpop.f32.mrb[0].mxu0
    %v293 = vadd.f32 0.0, %v292
    %294 = vmatprep.mubr.f32.mxu0 0.0
    %295 = vmatmul.mubr.f32.gmra.mrb[0].mxu0 %v222
    %v296 = vpop.f32.mrb[0].mxu0
    %v297 = vadd.f32 0.0, %v296
    %v298 = vpop.f32.mrb[0].mxu0
    %v299 = vadd.f32 0.0, %v298
    %300 = vdwg.mxu0
    %v301 = vsel %vm71, 1, 0
    %v302 = vsel %vm72, 1, 0
    %vm303 = vcmp.eq.s32.totalorder %v301, 1
    %vm304 = vcmp.eq.s32.totalorder %v302, 1
    %v305 = vsel %vm303, %v291, %v293
    %v306 = vsel %vm304, %v297, %v299
    %v307 = vld [vmem:[#allocation2] sm:$0xff]
    %v308 = vld [vmem:[#allocation2 + $0x8] sm:$0xff]
    %v309 = vadd.f32 %v305, %v307
    %v310 = vadd.f32 %v306, %v308
    %v311 = vxor.u32 %v309, 2147483648
    %v312 = vxor.u32 %v310, 2147483648
    %v313 = vmul.f32 %v311, 1.442695
    %v314 = vpow.pop %v313
    %v315 = vmul.f32 %v312, 1.442695
    %v316 = vpow.pop %v315
    %v317 = vadd.f32 %v314, 1.0
    %v318 = vadd.f32 %v316, 1.0
    %v319 = vrcp.pop %v317
    %v320 = vmul.f32 1.0, %v319
    %v321 = vrcp.pop %v318
    %v322 = vmul.f32 1.0, %v321
    %v323 = vtanh.pop %v309
    %v324 = vtanh.pop %v310
    %v325 = vmul.f32 %v320, 0.0
    %v326 = vmul.f32 %v322, 0.0
    %329 = vrot.lane.b32.xlu0 %v323, 32
    %v330 = vpop.permute.xlu0 %329
    %331 = vrot.lane.b32.xlu0 %v324, 32
    %v332 = vpop.permute.xlu0 %331
    %v335 = vmul.f32 %v320, %v330
    %v336 = vmul.f32 %v322, %v332
    %339 = vrot.lane.b32.xlu0 %v335, 32
    %v340 = vpop.permute.xlu0 %339
    %341 = vrot.lane.b32.xlu0 %v336, 32
    %v342 = vpop.permute.xlu0 %341
    %v345 = vadd.f32 %v325, %v340
    %v346 = vadd.f32 %v326, %v342
    %v347 = vtanh.pop %v345
    %v348 = vtanh.pop %v346
    %351 = vrot.lane.b32.xlu0 %v347, 32
    %v352 = vpop.permute.xlu0 %351
    %353 = vrot.lane.b32.xlu0 %v348, 32
    %v354 = vpop.permute.xlu0 %353
    %v357 = vmul.f32 %v320, %v352
    %v358 = vmul.f32 %v322, %v354
    %360 = vrot.lane.b32.xlu0 %v357, 64
    %v361 = vpop.permute.xlu0 %360
    %363 = vst.msk [vmem:[#allocation3] sm:$0xff] %vm220, %v361
    %365 = vrot.lane.b32.xlu0 %v358, 96
    %v366 = vpop.permute.xlu0 %365
    %vm368 = vcmask 523520
    %369 = vst.msk [vmem:[#allocation3 + $0x38] sm:$0xff] %vm368, %v366
    %v370 = vld [vmem:[%s2] sm:$0xff]
    %v371 = vld [vmem:[%s2 + $0x8] sm:$0xff]
    %v372 = vld [vmem:[%s2 + $0x10] sm:$0xff]
    %v373 = vld [vmem:[%s2 + $0x18] sm:$0xff]
    %v374 = vld [vmem:[%s2 + $0x20] sm:$0xff]
    %v375 = vld [vmem:[%s2 + $0x28] sm:$0xff]
    %v376 = vld [vmem:[%s2 + $0x30] sm:$0xff]
    %v377 = vld [vmem:[%s2 + $0x38] sm:$0xff]
    %378 = vrot.lane.b32.xlu0 %v358, 64
    %v379 = vpop.permute.xlu0 %378
    %v380 = vsel %vm220, %v361, 0
    %v382 = vsel %vm220, %v379, 0
    %384 = vmatprep.subr.mxu0 %v371
    %385 = vmatpush1.msra.mxu0 %v370
    %386 = vmatprep.subr.mxu0 %v373
    %387 = vmatpush1.msra.mxu0 %v372
    %388 = vmatprep.subr.mxu0 %v375
    %389 = vmatpush1.msra.mxu0 %v374
    %390 = vmatprep.subr.mxu0 %v377
    %391 = vmatpush1.msra.mxu0 %v376
    %392 = vmatprep.subr.mxu0 0.0
    %393 = vmatpush1.msra.mxu0 0.0
    %394 = vmatprep.subr.mxu0 0.0
    %395 = vmatpush1.msra.mxu0 0.0
    %396 = vmatprep.subr.mxu0 0.0
    %397 = vmatpush1.msra.mxu0 0.0
    %398 = vmatprep.subr.mxu0 0.0
    %399 = vmatpush1.msra.mxu0 0.0
    %400 = vmatprep.subr.mxu0 0.0
    %401 = vmatpush1.msra.mxu0 0.0
    %402 = vmatprep.subr.mxu0 0.0
    %403 = vmatpush1.msra.mxu0 0.0
    %404 = vmatprep.subr.mxu0 0.0
    %405 = vmatpush1.msra.mxu0 0.0
    %406 = vmatprep.subr.mxu0 0.0
    %407 = vmatpush1.msra.mxu0 0.0
    %408 = vmatprep.subr.mxu0 0.0
    %409 = vmatpush1.msra.mxu0 0.0
    %410 = vmatprep.subr.mxu0 0.0
    %411 = vmatpush1.msra.mxu0 0.0
    %412 = vmatprep.subr.mxu0 0.0
    %413 = vmatpush1.msra.mxu0 0.0
    %414 = vmatprep.subr.mxu0 0.0
    %415 = vmatpush1.msra.mxu0 0.0
    %416 = vmatprep.subr.mxu0 0.0
    %417 = vmatpush1.msra.mxu0 0.0
    %418 = vmatprep.subr.mxu0 0.0
    %419 = vmatpush1.msra.mxu0 0.0
    %420 = vmatprep.subr.mxu0 0.0
    %421 = vmatpush1.msra.mxu0 0.0
    %422 = vmatprep.subr.mxu0 0.0
    %423 = vmatpush1.msra.mxu0 0.0
    %424 = vmatprep.subr.mxu0 0.0
    %425 = vmatpush1.msra.mxu0 0.0
    %426 = vmatprep.subr.mxu0 0.0
    %427 = vmatpush1.msra.mxu0 0.0
    %428 = vmatprep.subr.mxu0 0.0
    %429 = vmatpush1.msra.mxu0 0.0
    %430 = vmatprep.subr.mxu0 0.0
    %431 = vmatpush1.msra.mxu0 0.0
    %432 = vmatprep.subr.mxu0 0.0
    %433 = vmatpush1.msra.mxu0 0.0
    %434 = vmatprep.subr.mxu0 0.0
    %435 = vmatpush1.msra.mxu0 0.0
    %436 = vmatprep.subr.mxu0 0.0
    %437 = vmatpush1.msra.mxu0 0.0
    %438 = vmatprep.subr.mxu0 0.0
    %439 = vmatpush1.msra.mxu0 0.0
    %440 = vmatprep.subr.mxu0 0.0
    %441 = vmatpush1.msra.mxu0 0.0
    %442 = vmatprep.subr.mxu0 0.0
    %443 = vmatpush1.msra.mxu0 0.0
    %444 = vmatprep.subr.mxu0 0.0
    %445 = vmatpush1.msra.mxu0 0.0
    %446 = vmatprep.subr.mxu0 0.0
    %447 = vmatpush1.msra.mxu0 0.0
    %448 = vmatprep.mubr.f32.mxu0 0.0
    %449 = vmatmul.mubr.f32.gmra.mrb[0].mxu0 %v380
    %v450 = vpop.f32.mrb[0].mxu0
    %v451 = vadd.f32 0.0, %v450
    %v452 = vpop.f32.mrb[0].mxu0
    %v453 = vadd.f32 0.0, %v452
    %454 = vmatprep.mubr.f32.mxu0 0.0
    %455 = vmatmul.mubr.f32.gmra.mrb[0].mxu0 %v382
    %v456 = vpop.f32.mrb[0].mxu0
    %v457 = vadd.f32 0.0, %v456
    %v458 = vpop.f32.mrb[0].mxu0
    %v459 = vadd.f32 0.0, %v458
    %460 = vdwg.mxu0
    %v461 = vsel %vm303, %v451, %v453
    %v462 = vsel %vm304, %v457, %v459
    %v463 = vld [vmem:[#allocation2 + $0x10] sm:$0xff]
    %v464 = vld [vmem:[#allocation2 + $0x18] sm:$0xff]
    %v465 = vadd.f32 %v461, %v463
    %v466 = vadd.f32 %v462, %v464
    %v467 = vxor.u32 %v465, 2147483648
    %v468 = vxor.u32 %v466, 2147483648
    %v469 = vmul.f32 %v467, 1.442695
    %v470 = vpow.pop %v469
    %v471 = vmul.f32 %v468, 1.442695
    %v472 = vpow.pop %v471
    %v473 = vadd.f32 %v470, 1.0
    %v474 = vadd.f32 %v472, 1.0
    %v475 = vrcp.pop %v473
    %v476 = vmul.f32 1.0, %v475
    %v477 = vrcp.pop %v474
    %v478 = vmul.f32 1.0, %v477
    %v479 = vtanh.pop %v465
    %v480 = vtanh.pop %v466
    %v481 = vmul.f32 %v476, %v345
    %v482 = vmul.f32 %v478, %v346
    %485 = vrot.lane.b32.xlu0 %v479, 32
    %v486 = vpop.permute.xlu0 %485
    %487 = vrot.lane.b32.xlu0 %v480, 32
    %v488 = vpop.permute.xlu0 %487
    %v491 = vmul.f32 %v476, %v486
    %v492 = vmul.f32 %v478, %v488
    %495 = vrot.lane.b32.xlu0 %v491, 32
    %v496 = vpop.permute.xlu0 %495
    %497 = vrot.lane.b32.xlu0 %v492, 32
    %v498 = vpop.permute.xlu0 %497
    %v501 = vadd.f32 %v481, %v496
    %v502 = vadd.f32 %v482, %v498
    %v503 = vtanh.pop %v501
    %v504 = vtanh.pop %v502
    %507 = vrot.lane.b32.xlu0 %v503, 32
    %v508 = vpop.permute.xlu0 %507
    %509 = vrot.lane.b32.xlu0 %v504, 32
    %v510 = vpop.permute.xlu0 %509
    %v513 = vmul.f32 %v476, %v508
    %v514 = vmul.f32 %v478, %v510
    %516 = vrot.lane.b32.xlu0 %v513, 64
    %v517 = vpop.permute.xlu0 %516
    %519 = vst.msk [vmem:[#allocation3 + $0x8] sm:$0xff] %vm220, %v517
    %521 = vrot.lane.b32.xlu0 %v514, 96
    %v522 = vpop.permute.xlu0 %521
    %524 = vst.msk [vmem:[#allocation3 + $0x30] sm:$0xff] %vm368, %v522
    %v525 = vld [vmem:[%s2] sm:$0xff]
    %v526 = vld [vmem:[%s2 + $0x8] sm:$0xff]
    %v527 = vld [vmem:[%s2 + $0x10] sm:$0xff]
    %v528 = vld [vmem:[%s2 + $0x18] sm:$0xff]
    %v529 = vld [vmem:[%s2 + $0x20] sm:$0xff]
    %v530 = vld [vmem:[%s2 + $0x28] sm:$0xff]
    %v531 = vld [vmem:[%s2 + $0x30] sm:$0xff]
    %v532 = vld [vmem:[%s2 + $0x38] sm:$0xff]
    %533 = vrot.lane.b32.xlu0 %v514, 64
    %v534 = vpop.permute.xlu0 %533
    %v535 = vsel %vm220, %v517, 0
    %v537 = vsel %vm220, %v534, 0
    %539 = vmatprep.subr.mxu0 %v526
    %540 = vmatpush1.msra.mxu0 %v525
    %541 = vmatprep.subr.mxu0 %v528
    %542 = vmatpush1.msra.mxu0 %v527
    %543 = vmatprep.subr.mxu0 %v530
    %544 = vmatpush1.msra.mxu0 %v529
    %545 = vmatprep.subr.mxu0 %v532
    %546 = vmatpush1.msra.mxu0 %v531
    %547 = vmatprep.subr.mxu0 0.0
    %548 = vmatpush1.msra.mxu0 0.0
    %549 = vmatprep.subr.mxu0 0.0
    %550 = vmatpush1.msra.mxu0 0.0
    %551 = vmatprep.subr.mxu0 0.0
    %552 = vmatpush1.msra.mxu0 0.0
    %553 = vmatprep.subr.mxu0 0.0
    %554 = vmatpush1.msra.mxu0 0.0
    %555 = vmatprep.subr.mxu0 0.0
    %556 = vmatpush1.msra.mxu0 0.0
    %557 = vmatprep.subr.mxu0 0.0
    %558 = vmatpush1.msra.mxu0 0.0
    %559 = vmatprep.subr.mxu0 0.0
    %560 = vmatpush1.msra.mxu0 0.0
    %561 = vmatprep.subr.mxu0 0.0
    %562 = vmatpush1.msra.mxu0 0.0
    %563 = vmatprep.subr.mxu0 0.0
    %564 = vmatpush1.msra.mxu0 0.0
    %565 = vmatprep.subr.mxu0 0.0
    %566 = vmatpush1.msra.mxu0 0.0
    %567 = vmatprep.subr.mxu0 0.0
    %568 = vmatpush1.msra.mxu0 0.0
    %569 = vmatprep.subr.mxu0 0.0
    %570 = vmatpush1.msra.mxu0 0.0
    %571 = vmatprep.subr.mxu0 0.0
    %572 = vmatpush1.msra.mxu0 0.0
    %573 = vmatprep.subr.mxu0 0.0
    %574 = vmatpush1.msra.mxu0 0.0
    %575 = vmatprep.subr.mxu0 0.0
    %576 = vmatpush1.msra.mxu0 0.0
    %577 = vmatprep.subr.mxu0 0.0
    %578 = vmatpush1.msra.mxu0 0.0
    %579 = vmatprep.subr.mxu0 0.0
    %580 = vmatpush1.msra.mxu0 0.0
    %581 = vmatprep.subr.mxu0 0.0
    %582 = vmatpush1.msra.mxu0 0.0
    %583 = vmatprep.subr.mxu0 0.0
    %584 = vmatpush1.msra.mxu0 0.0
    %585 = vmatprep.subr.mxu0 0.0
    %586 = vmatpush1.msra.mxu0 0.0
    %587 = vmatprep.subr.mxu0 0.0
    %588 = vmatpush1.msra.mxu0 0.0
    %589 = vmatprep.subr.mxu0 0.0
    %590 = vmatpush1.msra.mxu0 0.0
    %591 = vmatprep.subr.mxu0 0.0
    %592 = vmatpush1.msra.mxu0 0.0
    %593 = vmatprep.subr.mxu0 0.0
    %594 = vmatpush1.msra.mxu0 0.0
    %595 = vmatprep.subr.mxu0 0.0
    %596 = vmatpush1.msra.mxu0 0.0
    %597 = vmatprep.subr.mxu0 0.0
    %598 = vmatpush1.msra.mxu0 0.0
    %599 = vmatprep.subr.mxu0 0.0
    %600 = vmatpush1.msra.mxu0 0.0
    %601 = vmatprep.subr.mxu0 0.0
    %602 = vmatpush1.msra.mxu0 0.0
    %603 = vmatprep.mubr.f32.mxu0 0.0
    %604 = vmatmul.mubr.f32.gmra.mrb[0].mxu0 %v535
    %v605 = vpop.f32.mrb[0].mxu0
    %v606 = vadd.f32 0.0, %v605
    %v607 = vpop.f32.mrb[0].mxu0
    %v608 = vadd.f32 0.0, %v607
    %609 = vmatprep.mubr.f32.mxu0 0.0
    %610 = vmatmul.mubr.f32.gmra.mrb[0].mxu0 %v537
    %v611 = vpop.f32.mrb[0].mxu0
    %v612 = vadd.f32 0.0, %v611
    %v613 = vpop.f32.mrb[0].mxu0
    %v614 = vadd.f32 0.0, %v613
    %615 = vdwg.mxu0
    %v616 = vsel %vm303, %v606, %v608
    %v617 = vsel %vm304, %v612, %v614
    %v618 = vld [vmem:[#allocation2 + $0x20] sm:$0xff]
    %v619 = vld [vmem:[#allocation2 + $0x28] sm:$0xff]
    %v620 = vadd.f32 %v616, %v618
    %v621 = vadd.f32 %v617, %v619
    %v622 = vxor.u32 %v620, 2147483648
    %v623 = vxor.u32 %v621, 2147483648
    %v624 = vmul.f32 %v622, 1.442695
    %v625 = vpow.pop %v624
    %v626 = vmul.f32 %v623, 1.442695
    %v627 = vpow.pop %v626
    %v628 = vadd.f32 %v625, 1.0
    %v629 = vadd.f32 %v627, 1.0
    %v630 = vrcp.pop %v628
    %v631 = vmul.f32 1.0, %v630
    %v632 = vrcp.pop %v629
    %v633 = vmul.f32 1.0, %v632
    %v634 = vtanh.pop %v620
    %v635 = vtanh.pop %v621
    %v636 = vmul.f32 %v631, %v501
    %v637 = vmul.f32 %v633, %v502
    %640 = vrot.lane.b32.xlu0 %v634, 32
    %v641 = vpop.permute.xlu0 %640
    %642 = vrot.lane.b32.xlu0 %v635, 32
    %v643 = vpop.permute.xlu0 %642
    %v646 = vmul.f32 %v631, %v641
    %v647 = vmul.f32 %v633, %v643
    %650 = vrot.lane.b32.xlu0 %v646, 32
    %v651 = vpop.permute.xlu0 %650
    %652 = vrot.lane.b32.xlu0 %v647, 32
    %v653 = vpop.permute.xlu0 %652
    %v656 = vadd.f32 %v636, %v651
    %v657 = vadd.f32 %v637, %v653
    %v658 = vtanh.pop %v656
    %v659 = vtanh.pop %v657
    %662 = vrot.lane.b32.xlu0 %v658, 32
    %v663 = vpop.permute.xlu0 %662
    %664 = vrot.lane.b32.xlu0 %v659, 32
    %v665 = vpop.permute.xlu0 %664
    %v668 = vmul.f32 %v631, %v663
    %v669 = vmul.f32 %v633, %v665
    %671 = vrot.lane.b32.xlu0 %v668, 64
    %v672 = vpop.permute.xlu0 %671
    %674 = vst.msk [vmem:[#allocation3 + $0x10] sm:$0xff] %vm220, %v672
    %676 = vrot.lane.b32.xlu0 %v669, 96
    %v677 = vpop.permute.xlu0 %676
    %679 = vst.msk [vmem:[#allocation3 + $0x28] sm:$0xff] %vm368, %v677
    %v680 = vld [vmem:[%s2] sm:$0xff]
    %v681 = vld [vmem:[%s2 + $0x8] sm:$0xff]
    %v682 = vld [vmem:[%s2 + $0x10] sm:$0xff]
    %v683 = vld [vmem:[%s2 + $0x18] sm:$0xff]
    %v684 = vld [vmem:[%s2 + $0x20] sm:$0xff]
    %v685 = vld [vmem:[%s2 + $0x28] sm:$0xff]
    %v686 = vld [vmem:[%s2 + $0x30] sm:$0xff]
    %v687 = vld [vmem:[%s2 + $0x38] sm:$0xff]
    %688 = vrot.lane.b32.xlu0 %v669, 64
    %v689 = vpop.permute.xlu0 %688
    %v690 = vsel %vm220, %v672, 0
    %v692 = vsel %vm220, %v689, 0
    %694 = vmatprep.subr.mxu0 %v681
    %695 = vmatpush1.msra.mxu0 %v680
    %696 = vmatprep.subr.mxu0 %v683
    %697 = vmatpush1.msra.mxu0 %v682
    %698 = vmatprep.subr.mxu0 %v685
    %699 = vmatpush1.msra.mxu0 %v684
    %700 = vmatprep.subr.mxu0 %v687
    %701 = vmatpush1.msra.mxu0 %v686
    %702 = vmatprep.subr.mxu0 0.0
    %703 = vmatpush1.msra.mxu0 0.0
    %704 = vmatprep.subr.mxu0 0.0
    %705 = vmatpush1.msra.mxu0 0.0
    %706 = vmatprep.subr.mxu0 0.0
    %707 = vmatpush1.msra.mxu0 0.0
    %708 = vmatprep.subr.mxu0 0.0
    %709 = vmatpush1.msra.mxu0 0.0
    %710 = vmatprep.subr.mxu0 0.0
    %711 = vmatpush1.msra.mxu0 0.0
    %712 = vmatprep.subr.mxu0 0.0
    %713 = vmatpush1.msra.mxu0 0.0
    %714 = vmatprep.subr.mxu0 0.0
    %715 = vmatpush1.msra.mxu0 0.0
    %716 = vmatprep.subr.mxu0 0.0
    %717 = vmatpush1.msra.mxu0 0.0
    %718 = vmatprep.subr.mxu0 0.0
    %719 = vmatpush1.msra.mxu0 0.0
    %720 = vmatprep.subr.mxu0 0.0
    %721 = vmatpush1.msra.mxu0 0.0
    %722 = vmatprep.subr.mxu0 0.0
    %723 = vmatpush1.msra.mxu0 0.0
    %724 = vmatprep.subr.mxu0 0.0
    %725 = vmatpush1.msra.mxu0 0.0
    %726 = vmatprep.subr.mxu0 0.0
    %727 = vmatpush1.msra.mxu0 0.0
    %728 = vmatprep.subr.mxu0 0.0
    %729 = vmatpush1.msra.mxu0 0.0
    %730 = vmatprep.subr.mxu0 0.0
    %731 = vmatpush1.msra.mxu0 0.0
    %732 = vmatprep.subr.mxu0 0.0
    %733 = vmatpush1.msra.mxu0 0.0
    %734 = vmatprep.subr.mxu0 0.0
    %735 = vmatpush1.msra.mxu0 0.0
    %736 = vmatprep.subr.mxu0 0.0
    %737 = vmatpush1.msra.mxu0 0.0
    %738 = vmatprep.subr.mxu0 0.0
    %739 = vmatpush1.msra.mxu0 0.0
    %740 = vmatprep.subr.mxu0 0.0
    %741 = vmatpush1.msra.mxu0 0.0
    %742 = vmatprep.subr.mxu0 0.0
    %743 = vmatpush1.msra.mxu0 0.0
    %744 = vmatprep.subr.mxu0 0.0
    %745 = vmatpush1.msra.mxu0 0.0
    %746 = vmatprep.subr.mxu0 0.0
    %747 = vmatpush1.msra.mxu0 0.0
    %748 = vmatprep.subr.mxu0 0.0
    %749 = vmatpush1.msra.mxu0 0.0
    %750 = vmatprep.subr.mxu0 0.0
    %751 = vmatpush1.msra.mxu0 0.0
    %752 = vmatprep.subr.mxu0 0.0
    %753 = vmatpush1.msra.mxu0 0.0
    %754 = vmatprep.subr.mxu0 0.0
    %755 = vmatpush1.msra.mxu0 0.0
    %756 = vmatprep.subr.mxu0 0.0
    %757 = vmatpush1.msra.mxu0 0.0
    %758 = vmatprep.mubr.f32.mxu0 0.0
    %759 = vmatmul.mubr.f32.gmra.mrb[0].mxu0 %v690
    %v760 = vpop.f32.mrb[0].mxu0
    %v761 = vadd.f32 0.0, %v760
    %v762 = vpop.f32.mrb[0].mxu0
    %v763 = vadd.f32 0.0, %v762
    %764 = vmatprep.mubr.f32.mxu0 0.0
    %765 = vmatmul.mubr.f32.gmra.mrb[0].mxu0 %v692
    %v766 = vpop.f32.mrb[0].mxu0
    %v767 = vadd.f32 0.0, %v766
    %v768 = vpop.f32.mrb[0].mxu0
    %v769 = vadd.f32 0.0, %v768
    %770 = vdwg.mxu0
    %v771 = vsel %vm303, %v761, %v763
    %v772 = vsel %vm304, %v767, %v769
    %v773 = vld [vmem:[#allocation2 + $0x30] sm:$0xff]
    %v774 = vld [vmem:[#allocation2 + $0x38] sm:$0xff]
    %v775 = vadd.f32 %v771, %v773
    %v776 = vadd.f32 %v772, %v774
    %v777 = vxor.u32 %v775, 2147483648
    %v778 = vxor.u32 %v776, 2147483648
    %v779 = vmul.f32 %v777, 1.442695
    %v780 = vpow.pop %v779
    %v781 = vmul.f32 %v778, 1.442695
    %v782 = vpow.pop %v781
    %v783 = vadd.f32 %v780, 1.0
    %v784 = vadd.f32 %v782, 1.0
    %v785 = vrcp.pop %v783
    %v786 = vmul.f32 1.0, %v785
    %v787 = vrcp.pop %v784
    %v788 = vmul.f32 1.0, %v787
    %v789 = vtanh.pop %v775
    %v790 = vtanh.pop %v776
    %v791 = vmul.f32 %v786, %v656
    %v792 = vmul.f32 %v788, %v657
    %795 = vrot.lane.b32.xlu0 %v789, 32
    %v796 = vpop.permute.xlu0 %795
    %797 = vrot.lane.b32.xlu0 %v790, 32
    %v798 = vpop.permute.xlu0 %797
    %v801 = vmul.f32 %v786, %v796
    %v802 = vmul.f32 %v788, %v798
    %805 = vrot.lane.b32.xlu0 %v801, 32
    %v806 = vpop.permute.xlu0 %805
    %807 = vrot.lane.b32.xlu0 %v802, 32
    %v808 = vpop.permute.xlu0 %807
    %v811 = vadd.f32 %v791, %v806
    %v812 = vadd.f32 %v792, %v808
    %v813 = vtanh.pop %v811
    %v814 = vtanh.pop %v812
    %817 = vrot.lane.b32.xlu0 %v813, 32
    %v818 = vpop.permute.xlu0 %817
    %819 = vrot.lane.b32.xlu0 %v814, 32
    %v820 = vpop.permute.xlu0 %819
    %v823 = vmul.f32 %v786, %v818
    %v824 = vmul.f32 %v788, %v820
    %826 = vrot.lane.b32.xlu0 %v823, 64
    %v827 = vpop.permute.xlu0 %826
    %829 = vst.msk [vmem:[#allocation3 + $0x18] sm:$0xff] %vm220, %v827
    %831 = vrot.lane.b32.xlu0 %v824, 96
    %v832 = vpop.permute.xlu0 %831
    %834 = vst.msk [vmem:[#allocation3 + $0x20] sm:$0xff] %vm368, %v832
    %v835 = vld [vmem:[%s2] sm:$0xff]
    %v836 = vld [vmem:[%s2 + $0x8] sm:$0xff]
    %v837 = vld [vmem:[%s2 + $0x10] sm:$0xff]
    %v838 = vld [vmem:[%s2 + $0x18] sm:$0xff]
    %v839 = vld [vmem:[%s2 + $0x20] sm:$0xff]
    %v840 = vld [vmem:[%s2 + $0x28] sm:$0xff]
    %v841 = vld [vmem:[%s2 + $0x30] sm:$0xff]
    %v842 = vld [vmem:[%s2 + $0x38] sm:$0xff]
    %843 = vrot.lane.b32.xlu0 %v824, 64
    %v844 = vpop.permute.xlu0 %843
    %v845 = vsel %vm220, %v827, 0
    %v847 = vsel %vm220, %v844, 0
    %849 = vmatprep.subr.mxu0 %v836
    %850 = vmatpush1.msra.mxu0 %v835
    %851 = vmatprep.subr.mxu0 %v838
    %852 = vmatpush1.msra.mxu0 %v837
    %853 = vmatprep.subr.mxu0 %v840
    %854 = vmatpush1.msra.mxu0 %v839
    %855 = vmatprep.subr.mxu0 %v842
    %856 = vmatpush1.msra.mxu0 %v841
    %857 = vmatprep.subr.mxu0 0.0
    %858 = vmatpush1.msra.mxu0 0.0
    %859 = vmatprep.subr.mxu0 0.0
    %860 = vmatpush1.msra.mxu0 0.0
    %861 = vmatprep.subr.mxu0 0.0
    %862 = vmatpush1.msra.mxu0 0.0
    %863 = vmatprep.subr.mxu0 0.0
    %864 = vmatpush1.msra.mxu0 0.0
    %865 = vmatprep.subr.mxu0 0.0
    %866 = vmatpush1.msra.mxu0 0.0
    %867 = vmatprep.subr.mxu0 0.0
    %868 = vmatpush1.msra.mxu0 0.0
    %869 = vmatprep.subr.mxu0 0.0
    %870 = vmatpush1.msra.mxu0 0.0
    %871 = vmatprep.subr.mxu0 0.0
    %872 = vmatpush1.msra.mxu0 0.0
    %873 = vmatprep.subr.mxu0 0.0
    %874 = vmatpush1.msra.mxu0 0.0
    %875 = vmatprep.subr.mxu0 0.0
    %876 = vmatpush1.msra.mxu0 0.0
    %877 = vmatprep.subr.mxu0 0.0
    %878 = vmatpush1.msra.mxu0 0.0
    %879 = vmatprep.subr.mxu0 0.0
    %880 = vmatpush1.msra.mxu0 0.0
    %881 = vmatprep.subr.mxu0 0.0
    %882 = vmatpush1.msra.mxu0 0.0
    %883 = vmatprep.subr.mxu0 0.0
    %884 = vmatpush1.msra.mxu0 0.0
    %885 = vmatprep.subr.mxu0 0.0
    %886 = vmatpush1.msra.mxu0 0.0
    %887 = vmatprep.subr.mxu0 0.0
    %888 = vmatpush1.msra.mxu0 0.0
    %889 = vmatprep.subr.mxu0 0.0
    %890 = vmatpush1.msra.mxu0 0.0
    %891 = vmatprep.subr.mxu0 0.0
    %892 = vmatpush1.msra.mxu0 0.0
    %893 = vmatprep.subr.mxu0 0.0
    %894 = vmatpush1.msra.mxu0 0.0
    %895 = vmatprep.subr.mxu0 0.0
    %896 = vmatpush1.msra.mxu0 0.0
    %897 = vmatprep.subr.mxu0 0.0
    %898 = vmatpush1.msra.mxu0 0.0
    %899 = vmatprep.subr.mxu0 0.0
    %900 = vmatpush1.msra.mxu0 0.0
    %901 = vmatprep.subr.mxu0 0.0
    %902 = vmatpush1.msra.mxu0 0.0
    %903 = vmatprep.subr.mxu0 0.0
    %904 = vmatpush1.msra.mxu0 0.0
    %905 = vmatprep.subr.mxu0 0.0
    %906 = vmatpush1.msra.mxu0 0.0
    %907 = vmatprep.subr.mxu0 0.0
    %908 = vmatpush1.msra.mxu0 0.0
    %909 = vmatprep.subr.mxu0 0.0
    %910 = vmatpush1.msra.mxu0 0.0
    %911 = vmatprep.subr.mxu0 0.0
    %912 = vmatpush1.msra.mxu0 0.0
    %913 = vmatprep.mubr.f32.mxu0 0.0
    %914 = vmatmul.mubr.f32.gmra.mrb[0].mxu0 %v845
    %v915 = vpop.f32.mrb[0].mxu0
    %v916 = vadd.f32 0.0, %v915
    %v917 = vpop.f32.mrb[0].mxu0
    %v918 = vadd.f32 0.0, %v917
    %919 = vmatprep.mubr.f32.mxu0 0.0
    %920 = vmatmul.mubr.f32.gmra.mrb[0].mxu0 %v847
    %v921 = vpop.f32.mrb[0].mxu0
    %v922 = vadd.f32 0.0, %v921
    %v923 = vpop.f32.mrb[0].mxu0
    %v924 = vadd.f32 0.0, %v923
    %925 = vdwg.mxu0
    %v926 = vsel %vm303, %v916, %v918
    %v927 = vsel %vm304, %v922, %v924
    %v928 = vld [vmem:[#allocation2 + $0x40] sm:$0xff]
    %v929 = vld [vmem:[#allocation2 + $0x48] sm:$0xff]
    %v930 = vadd.f32 %v926, %v928
    %v931 = vadd.f32 %v927, %v929
    %v932 = vxor.u32 %v930, 2147483648
    %v933 = vxor.u32 %v931, 2147483648
    %v934 = vmul.f32 %v932, 1.442695
    %v935 = vpow.pop %v934
    %v936 = vmul.f32 %v933, 1.442695
    %v937 = vpow.pop %v936
    %v938 = vadd.f32 %v935, 1.0
    %v939 = vadd.f32 %v937, 1.0
    %v940 = vrcp.pop %v938
    %v941 = vmul.f32 1.0, %v940
    %v942 = vrcp.pop %v939
    %v943 = vmul.f32 1.0, %v942
    %v944 = vtanh.pop %v930
    %v945 = vtanh.pop %v931
    %v946 = vmul.f32 %v941, %v811
    %v947 = vmul.f32 %v943, %v812
    %950 = vrot.lane.b32.xlu0 %v944, 32
    %v951 = vpop.permute.xlu0 %950
    %952 = vrot.lane.b32.xlu0 %v945, 32
    %v953 = vpop.permute.xlu0 %952
    %v956 = vmul.f32 %v941, %v951
    %v957 = vmul.f32 %v943, %v953
    %960 = vrot.lane.b32.xlu0 %v956, 32
    %v961 = vpop.permute.xlu0 %960
    %962 = vrot.lane.b32.xlu0 %v957, 32
    %v963 = vpop.permute.xlu0 %962
    %v966 = vadd.f32 %v946, %v961
    %v967 = vadd.f32 %v947, %v963
    %v968 = vtanh.pop %v966
    %v969 = vtanh.pop %v967
    %972 = vrot.lane.b32.xlu0 %v968, 32
    %v973 = vpop.permute.xlu0 %972
    %974 = vrot.lane.b32.xlu0 %v969, 32
    %v975 = vpop.permute.xlu0 %974
    %v978 = vmul.f32 %v941, %v973
    %v979 = vmul.f32 %v943, %v975
    %981 = vrot.lane.b32.xlu0 %v978, 64
    %v982 = vpop.permute.xlu0 %981
    %984 = vst.msk [vmem:[#allocation3 + $0x20] sm:$0xff] %vm220, %v982
    %986 = vrot.lane.b32.xlu0 %v979, 96
    %v987 = vpop.permute.xlu0 %986
    %989 = vst.msk [vmem:[#allocation3 + $0x18] sm:$0xff] %vm368, %v987
    %v990 = vld [vmem:[%s2] sm:$0xff]
    %v991 = vld [vmem:[%s2 + $0x8] sm:$0xff]
    %v992 = vld [vmem:[%s2 + $0x10] sm:$0xff]
    %v993 = vld [vmem:[%s2 + $0x18] sm:$0xff]
    %v994 = vld [vmem:[%s2 + $0x20] sm:$0xff]
    %v995 = vld [vmem:[%s2 + $0x28] sm:$0xff]
    %v996 = vld [vmem:[%s2 + $0x30] sm:$0xff]
    %v997 = vld [vmem:[%s2 + $0x38] sm:$0xff]
    %998 = vrot.lane.b32.xlu0 %v979, 64
    %v999 = vpop.permute.xlu0 %998
    %v1000 = vsel %vm220, %v982, 0
    %v1002 = vsel %vm220, %v999, 0
    %1004 = vmatprep.subr.mxu0 %v991
    %1005 = vmatpush1.msra.mxu0 %v990
    %1006 = vmatprep.subr.mxu0 %v993
    %1007 = vmatpush1.msra.mxu0 %v992
    %1008 = vmatprep.subr.mxu0 %v995
    %1009 = vmatpush1.msra.mxu0 %v994
    %1010 = vmatprep.subr.mxu0 %v997
    %1011 = vmatpush1.msra.mxu0 %v996
    %1012 = vmatprep.subr.mxu0 0.0
    %1013 = vmatpush1.msra.mxu0 0.0
    %1014 = vmatprep.subr.mxu0 0.0
    %1015 = vmatpush1.msra.mxu0 0.0
    %1016 = vmatprep.subr.mxu0 0.0
    %1017 = vmatpush1.msra.mxu0 0.0
    %1018 = vmatprep.subr.mxu0 0.0
    %1019 = vmatpush1.msra.mxu0 0.0
    %1020 = vmatprep.subr.mxu0 0.0
    %1021 = vmatpush1.msra.mxu0 0.0
    %1022 = vmatprep.subr.mxu0 0.0
    %1023 = vmatpush1.msra.mxu0 0.0
    %1024 = vmatprep.subr.mxu0 0.0
    %1025 = vmatpush1.msra.mxu0 0.0
    %1026 = vmatprep.subr.mxu0 0.0
    %1027 = vmatpush1.msra.mxu0 0.0
    %1028 = vmatprep.subr.mxu0 0.0
    %1029 = vmatpush1.msra.mxu0 0.0
    %1030 = vmatprep.subr.mxu0 0.0
    %1031 = vmatpush1.msra.mxu0 0.0
    %1032 = vmatprep.subr.mxu0 0.0
    %1033 = vmatpush1.msra.mxu0 0.0
    %1034 = vmatprep.subr.mxu0 0.0
    %1035 = vmatpush1.msra.mxu0 0.0
    %1036 = vmatprep.subr.mxu0 0.0
    %1037 = vmatpush1.msra.mxu0 0.0
    %1038 = vmatprep.subr.mxu0 0.0
    %1039 = vmatpush1.msra.mxu0 0.0
    %1040 = vmatprep.subr.mxu0 0.0
    %1041 = vmatpush1.msra.mxu0 0.0
    %1042 = vmatprep.subr.mxu0 0.0
    %1043 = vmatpush1.msra.mxu0 0.0
    %1044 = vmatprep.subr.mxu0 0.0
    %1045 = vmatpush1.msra.mxu0 0.0
    %1046 = vmatprep.subr.mxu0 0.0
    %1047 = vmatpush1.msra.mxu0 0.0
    %1048 = vmatprep.subr.mxu0 0.0
    %1049 = vmatpush1.msra.mxu0 0.0
    %1050 = vmatprep.subr.mxu0 0.0
    %1051 = vmatpush1.msra.mxu0 0.0
    %1052 = vmatprep.subr.mxu0 0.0
    %1053 = vmatpush1.msra.mxu0 0.0
    %1054 = vmatprep.subr.mxu0 0.0
    %1055 = vmatpush1.msra.mxu0 0.0
    %1056 = vmatprep.subr.mxu0 0.0
    %1057 = vmatpush1.msra.mxu0 0.0
    %1058 = vmatprep.subr.mxu0 0.0
    %1059 = vmatpush1.msra.mxu0 0.0
    %1060 = vmatprep.subr.mxu0 0.0
    %1061 = vmatpush1.msra.mxu0 0.0
    %1062 = vmatprep.subr.mxu0 0.0
    %1063 = vmatpush1.msra.mxu0 0.0
    %1064 = vmatprep.subr.mxu0 0.0
    %1065 = vmatpush1.msra.mxu0 0.0
    %1066 = vmatprep.subr.mxu0 0.0
    %1067 = vmatpush1.msra.mxu0 0.0
    %1068 = vmatprep.mubr.f32.mxu0 0.0
    %1069 = vmatmul.mubr.f32.gmra.mrb[0].mxu0 %v1000
    %v1070 = vpop.f32.mrb[0].mxu0
    %v1071 = vadd.f32 0.0, %v1070
    %v1072 = vpop.f32.mrb[0].mxu0
    %v1073 = vadd.f32 0.0, %v1072
    %1074 = vmatprep.mubr.f32.mxu0 0.0
    %1075 = vmatmul.mubr.f32.gmra.mrb[0].mxu0 %v1002
    %v1076 = vpop.f32.mrb[0].mxu0
    %v1077 = vadd.f32 0.0, %v1076
    %v1078 = vpop.f32.mrb[0].mxu0
    %v1079 = vadd.f32 0.0, %v1078
    %1080 = vdwg.mxu0
    %v1081 = vsel %vm303, %v1071, %v1073
    %v1082 = vsel %vm304, %v1077, %v1079
    %v1083 = vld [vmem:[#allocation2 + $0x50] sm:$0xff]
    %v1084 = vld [vmem:[#allocation2 + $0x58] sm:$0xff]
    %v1085 = vadd.f32 %v1081, %v1083
    %v1086 = vadd.f32 %v1082, %v1084
    %v1087 = vxor.u32 %v1085, 2147483648
    %v1088 = vxor.u32 %v1086, 2147483648
    %v1089 = vmul.f32 %v1087, 1.442695
    %v1090 = vpow.pop %v1089
    %v1091 = vmul.f32 %v1088, 1.442695
    %v1092 = vpow.pop %v1091
    %v1093 = vadd.f32 %v1090, 1.0
    %v1094 = vadd.f32 %v1092, 1.0
    %v1095 = vrcp.pop %v1093
    %v1096 = vmul.f32 1.0, %v1095
    %v1097 = vrcp.pop %v1094
    %v1098 = vmul.f32 1.0, %v1097
    %v1099 = vtanh.pop %v1085
    %v1100 = vtanh.pop %v1086
    %v1101 = vmul.f32 %v1096, %v966
    %v1102 = vmul.f32 %v1098, %v967
    %1105 = vrot.lane.b32.xlu0 %v1099, 32
    %v1106 = vpop.permute.xlu0 %1105
    %1107 = vrot.lane.b32.xlu0 %v1100, 32
    %v1108 = vpop.permute.xlu0 %1107
    %v1111 = vmul.f32 %v1096, %v1106
    %v1112 = vmul.f32 %v1098, %v1108
    %1115 = vrot.lane.b32.xlu0 %v1111, 32
    %v1116 = vpop.permute.xlu0 %1115
    %1117 = vrot.lane.b32.xlu0 %v1112, 32
    %v1118 = vpop.permute.xlu0 %1117
    %v1121 = vadd.f32 %v1101, %v1116
    %v1122 = vadd.f32 %v1102, %v1118
    %v1123 = vtanh.pop %v1121
    %v1124 = vtanh.pop %v1122
    %1127 = vrot.lane.b32.xlu0 %v1123, 32
    %v1128 = vpop.permute.xlu0 %1127
    %1129 = vrot.lane.b32.xlu0 %v1124, 32
    %v1130 = vpop.permute.xlu0 %1129
    %v1133 = vmul.f32 %v1096, %v1128
    %v1134 = vmul.f32 %v1098, %v1130
    %1136 = vrot.lane.b32.xlu0 %v1133, 64
    %v1137 = vpop.permute.xlu0 %1136
    %1139 = vst.msk [vmem:[#allocation3 + $0x28] sm:$0xff] %vm220, %v1137
    %1141 = vrot.lane.b32.xlu0 %v1134, 96
    %v1142 = vpop.permute.xlu0 %1141
    %1144 = vst.msk [vmem:[#allocation3 + $0x10] sm:$0xff] %vm368, %v1142
    %v1145 = vld [vmem:[%s2] sm:$0xff]
    %v1146 = vld [vmem:[%s2 + $0x8] sm:$0xff]
    %v1147 = vld [vmem:[%s2 + $0x10] sm:$0xff]
    %v1148 = vld [vmem:[%s2 + $0x18] sm:$0xff]
    %v1149 = vld [vmem:[%s2 + $0x20] sm:$0xff]
    %v1150 = vld [vmem:[%s2 + $0x28] sm:$0xff]
    %v1151 = vld [vmem:[%s2 + $0x30] sm:$0xff]
    %v1152 = vld [vmem:[%s2 + $0x38] sm:$0xff]
    %1153 = vrot.lane.b32.xlu0 %v1134, 64
    %v1154 = vpop.permute.xlu0 %1153
    %v1155 = vsel %vm220, %v1137, 0
    %v1157 = vsel %vm220, %v1154, 0
    %1159 = vmatprep.subr.mxu0 %v1146
    %1160 = vmatpush1.msra.mxu0 %v1145
    %1161 = vmatprep.subr.mxu0 %v1148
    %1162 = vmatpush1.msra.mxu0 %v1147
    %1163 = vmatprep.subr.mxu0 %v1150
    %1164 = vmatpush1.msra.mxu0 %v1149
    %1165 = vmatprep.subr.mxu0 %v1152
    %1166 = vmatpush1.msra.mxu0 %v1151
    %1167 = vmatprep.subr.mxu0 0.0
    %1168 = vmatpush1.msra.mxu0 0.0
    %1169 = vmatprep.subr.mxu0 0.0
    %1170 = vmatpush1.msra.mxu0 0.0
    %1171 = vmatprep.subr.mxu0 0.0
    %1172 = vmatpush1.msra.mxu0 0.0
    %1173 = vmatprep.subr.mxu0 0.0
    %1174 = vmatpush1.msra.mxu0 0.0
    %1175 = vmatprep.subr.mxu0 0.0
    %1176 = vmatpush1.msra.mxu0 0.0
    %1177 = vmatprep.subr.mxu0 0.0
    %1178 = vmatpush1.msra.mxu0 0.0
    %1179 = vmatprep.subr.mxu0 0.0
    %1180 = vmatpush1.msra.mxu0 0.0
    %1181 = vmatprep.subr.mxu0 0.0
    %1182 = vmatpush1.msra.mxu0 0.0
    %1183 = vmatprep.subr.mxu0 0.0
    %1184 = vmatpush1.msra.mxu0 0.0
    %1185 = vmatprep.subr.mxu0 0.0
    %1186 = vmatpush1.msra.mxu0 0.0
    %1187 = vmatprep.subr.mxu0 0.0
    %1188 = vmatpush1.msra.mxu0 0.0
    %1189 = vmatprep.subr.mxu0 0.0
    %1190 = vmatpush1.msra.mxu0 0.0
    %1191 = vmatprep.subr.mxu0 0.0
    %1192 = vmatpush1.msra.mxu0 0.0
    %1193 = vmatprep.subr.mxu0 0.0
    %1194 = vmatpush1.msra.mxu0 0.0
    %1195 = vmatprep.subr.mxu0 0.0
    %1196 = vmatpush1.msra.mxu0 0.0
    %1197 = vmatprep.subr.mxu0 0.0
    %1198 = vmatpush1.msra.mxu0 0.0
    %1199 = vmatprep.subr.mxu0 0.0
    %1200 = vmatpush1.msra.mxu0 0.0
    %1201 = vmatprep.subr.mxu0 0.0
    %1202 = vmatpush1.msra.mxu0 0.0
    %1203 = vmatprep.subr.mxu0 0.0
    %1204 = vmatpush1.msra.mxu0 0.0
    %1205 = vmatprep.subr.mxu0 0.0
    %1206 = vmatpush1.msra.mxu0 0.0
    %1207 = vmatprep.subr.mxu0 0.0
    %1208 = vmatpush1.msra.mxu0 0.0
    %1209 = vmatprep.subr.mxu0 0.0
    %1210 = vmatpush1.msra.mxu0 0.0
    %1211 = vmatprep.subr.mxu0 0.0
    %1212 = vmatpush1.msra.mxu0 0.0
    %1213 = vmatprep.subr.mxu0 0.0
    %1214 = vmatpush1.msra.mxu0 0.0
    %1215 = vmatprep.subr.mxu0 0.0
    %1216 = vmatpush1.msra.mxu0 0.0
    %1217 = vmatprep.subr.mxu0 0.0
    %1218 = vmatpush1.msra.mxu0 0.0
    %1219 = vmatprep.subr.mxu0 0.0
    %1220 = vmatpush1.msra.mxu0 0.0
    %1221 = vmatprep.subr.mxu0 0.0
    %1222 = vmatpush1.msra.mxu0 0.0
    %1223 = vmatprep.mubr.f32.mxu0 0.0
    %1224 = vmatmul.mubr.f32.gmra.mrb[0].mxu0 %v1155
    %v1225 = vpop.f32.mrb[0].mxu0
    %v1226 = vadd.f32 0.0, %v1225
    %v1227 = vpop.f32.mrb[0].mxu0
    %v1228 = vadd.f32 0.0, %v1227
    %1229 = vmatprep.mubr.f32.mxu0 0.0
    %1230 = vmatmul.mubr.f32.gmra.mrb[0].mxu0 %v1157
    %v1231 = vpop.f32.mrb[0].mxu0
    %v1232 = vadd.f32 0.0, %v1231
    %v1233 = vpop.f32.mrb[0].mxu0
    %v1234 = vadd.f32 0.0, %v1233
    %1235 = vdwg.mxu0
    %v1236 = vsel %vm303, %v1226, %v1228
    %v1237 = vsel %vm304, %v1232, %v1234
    %v1238 = vld [vmem:[#allocation2 + $0x60] sm:$0xff]
    %v1239 = vld [vmem:[#allocation2 + $0x68] sm:$0xff]
    %v1240 = vadd.f32 %v1236, %v1238
    %v1241 = vadd.f32 %v1237, %v1239
    %v1242 = vxor.u32 %v1240, 2147483648
    %v1243 = vxor.u32 %v1241, 2147483648
    %v1244 = vmul.f32 %v1242, 1.442695
    %v1245 = vpow.pop %v1244
    %v1246 = vmul.f32 %v1243, 1.442695
    %v1247 = vpow.pop %v1246
    %v1248 = vadd.f32 %v1245, 1.0
    %v1249 = vadd.f32 %v1247, 1.0
    %v1250 = vrcp.pop %v1248
    %v1251 = vmul.f32 1.0, %v1250
    %v1252 = vrcp.pop %v1249
    %v1253 = vmul.f32 1.0, %v1252
    %v1254 = vtanh.pop %v1240
    %v1255 = vtanh.pop %v1241
    %v1256 = vmul.f32 %v1251, %v1121
    %v1257 = vmul.f32 %v1253, %v1122
    %1260 = vrot.lane.b32.xlu0 %v1254, 32
    %v1261 = vpop.permute.xlu0 %1260
    %1262 = vrot.lane.b32.xlu0 %v1255, 32
    %v1263 = vpop.permute.xlu0 %1262
    %v1266 = vmul.f32 %v1251, %v1261
    %v1267 = vmul.f32 %v1253, %v1263
    %1270 = vrot.lane.b32.xlu0 %v1266, 32
    %v1271 = vpop.permute.xlu0 %1270
    %1272 = vrot.lane.b32.xlu0 %v1267, 32
    %v1273 = vpop.permute.xlu0 %1272
    %v1276 = vadd.f32 %v1256, %v1271
    %v1277 = vadd.f32 %v1257, %v1273
    %v1278 = vtanh.pop %v1276
    %v1279 = vtanh.pop %v1277
    %1282 = vrot.lane.b32.xlu0 %v1278, 32
    %v1283 = vpop.permute.xlu0 %1282
    %1284 = vrot.lane.b32.xlu0 %v1279, 32
    %v1285 = vpop.permute.xlu0 %1284
    %v1288 = vmul.f32 %v1251, %v1283
    %v1289 = vmul.f32 %v1253, %v1285
    %1291 = vrot.lane.b32.xlu0 %v1288, 64
    %v1292 = vpop.permute.xlu0 %1291
    %1294 = vst.msk [vmem:[#allocation3 + $0x30] sm:$0xff] %vm220, %v1292
    %1296 = vrot.lane.b32.xlu0 %v1289, 96
    %v1297 = vpop.permute.xlu0 %1296
    %1299 = vst.msk [vmem:[#allocation3 + $0x8] sm:$0xff] %vm368, %v1297
    %v1300 = vld [vmem:[%s2] sm:$0xff]
    %v1301 = vld [vmem:[%s2 + $0x8] sm:$0xff]
    %v1302 = vld [vmem:[%s2 + $0x10] sm:$0xff]
    %v1303 = vld [vmem:[%s2 + $0x18] sm:$0xff]
    %v1304 = vld [vmem:[%s2 + $0x20] sm:$0xff]
    %v1305 = vld [vmem:[%s2 + $0x28] sm:$0xff]
    %v1306 = vld [vmem:[%s2 + $0x30] sm:$0xff]
    %v1307 = vld [vmem:[%s2 + $0x38] sm:$0xff]
    %1308 = vrot.lane.b32.xlu0 %v1289, 64
    %v1309 = vpop.permute.xlu0 %1308
    %v1310 = vsel %vm220, %v1292, 0
    %v1312 = vsel %vm220, %v1309, 0
    %1314 = vmatprep.subr.mxu0 %v1301
    %1315 = vmatpush1.msra.mxu0 %v1300
    %1316 = vmatprep.subr.mxu0 %v1303
    %1317 = vmatpush1.msra.mxu0 %v1302
    %1318 = vmatprep.subr.mxu0 %v1305
    %1319 = vmatpush1.msra.mxu0 %v1304
    %1320 = vmatprep.subr.mxu0 %v1307
    %1321 = vmatpush1.msra.mxu0 %v1306
    %1322 = vmatprep.subr.mxu0 0.0
    %1323 = vmatpush1.msra.mxu0 0.0
    %1324 = vmatprep.subr.mxu0 0.0
    %1325 = vmatpush1.msra.mxu0 0.0
    %1326 = vmatprep.subr.mxu0 0.0
    %1327 = vmatpush1.msra.mxu0 0.0
    %1328 = vmatprep.subr.mxu0 0.0
    %1329 = vmatpush1.msra.mxu0 0.0
    %1330 = vmatprep.subr.mxu0 0.0
    %1331 = vmatpush1.msra.mxu0 0.0
    %1332 = vmatprep.subr.mxu0 0.0
    %1333 = vmatpush1.msra.mxu0 0.0
    %1334 = vmatprep.subr.mxu0 0.0
    %1335 = vmatpush1.msra.mxu0 0.0
    %1336 = vmatprep.subr.mxu0 0.0
    %1337 = vmatpush1.msra.mxu0 0.0
    %1338 = vmatprep.subr.mxu0 0.0
    %1339 = vmatpush1.msra.mxu0 0.0
    %1340 = vmatprep.subr.mxu0 0.0
    %1341 = vmatpush1.msra.mxu0 0.0
    %1342 = vmatprep.subr.mxu0 0.0
    %1343 = vmatpush1.msra.mxu0 0.0
    %1344 = vmatprep.subr.mxu0 0.0
    %1345 = vmatpush1.msra.mxu0 0.0
    %1346 = vmatprep.subr.mxu0 0.0
    %1347 = vmatpush1.msra.mxu0 0.0
    %1348 = vmatprep.subr.mxu0 0.0
    %1349 = vmatpush1.msra.mxu0 0.0
    %1350 = vmatprep.subr.mxu0 0.0
    %1351 = vmatpush1.msra.mxu0 0.0
    %1352 = vmatprep.subr.mxu0 0.0
    %1353 = vmatpush1.msra.mxu0 0.0
    %1354 = vmatprep.subr.mxu0 0.0
    %1355 = vmatpush1.msra.mxu0 0.0
    %1356 = vmatprep.subr.mxu0 0.0
    %1357 = vmatpush1.msra.mxu0 0.0
    %1358 = vmatprep.subr.mxu0 0.0
    %1359 = vmatpush1.msra.mxu0 0.0
    %1360 = vmatprep.subr.mxu0 0.0
    %1361 = vmatpush1.msra.mxu0 0.0
    %1362 = vmatprep.subr.mxu0 0.0
    %1363 = vmatpush1.msra.mxu0 0.0
    %1364 = vmatprep.subr.mxu0 0.0
    %1365 = vmatpush1.msra.mxu0 0.0
    %1366 = vmatprep.subr.mxu0 0.0
    %1367 = vmatpush1.msra.mxu0 0.0
    %1368 = vmatprep.subr.mxu0 0.0
    %1369 = vmatpush1.msra.mxu0 0.0
    %1370 = vmatprep.subr.mxu0 0.0
    %1371 = vmatpush1.msra.mxu0 0.0
    %1372 = vmatprep.subr.mxu0 0.0
    %1373 = vmatpush1.msra.mxu0 0.0
    %1374 = vmatprep.subr.mxu0 0.0
    %1375 = vmatpush1.msra.mxu0 0.0
    %1376 = vmatprep.subr.mxu0 0.0
    %1377 = vmatpush1.msra.mxu0 0.0
    %1378 = vmatprep.mubr.f32.mxu0 0.0
    %1379 = vmatmul.mubr.f32.gmra.mrb[0].mxu0 %v1310
    %v1380 = vpop.f32.mrb[0].mxu0
    %v1381 = vadd.f32 0.0, %v1380
    %v1382 = vpop.f32.mrb[0].mxu0
    %v1383 = vadd.f32 0.0, %v1382
    %1384 = vmatprep.mubr.f32.mxu0 0.0
    %1385 = vmatmul.mubr.f32.gmra.mrb[0].mxu0 %v1312
    %v1386 = vpop.f32.mrb[0].mxu0
    %v1387 = vadd.f32 0.0, %v1386
    %v1388 = vpop.f32.mrb[0].mxu0
    %v1389 = vadd.f32 0.0, %v1388
    %1390 = vdwg.mxu0
    %v1391 = vsel %vm303, %v1381, %v1383
    %v1392 = vsel %vm304, %v1387, %v1389
    %v1393 = vld [vmem:[#allocation2 + $0x70] sm:$0xff]
    %v1394 = vld [vmem:[#allocation2 + $0x78] sm:$0xff]
    %v1395 = vadd.f32 %v1391, %v1393
    %v1396 = vadd.f32 %v1392, %v1394
    %v1397 = vxor.u32 %v1395, 2147483648
    %v1398 = vxor.u32 %v1396, 2147483648
    %v1399 = vmul.f32 %v1397, 1.442695
    %v1400 = vpow.pop %v1399
    %v1401 = vmul.f32 %v1398, 1.442695
    %v1402 = vpow.pop %v1401
    %v1403 = vadd.f32 %v1400, 1.0
    %v1404 = vadd.f32 %v1402, 1.0
    %v1405 = vrcp.pop %v1403
    %v1406 = vmul.f32 1.0, %v1405
    %v1407 = vrcp.pop %v1404
    %v1408 = vmul.f32 1.0, %v1407
    %v1409 = vtanh.pop %v1395
    %v1410 = vtanh.pop %v1396
    %v1411 = vmul.f32 %v1406, %v1276
    %v1412 = vmul.f32 %v1408, %v1277
    %1415 = vrot.lane.b32.xlu0 %v1409, 32
    %v1416 = vpop.permute.xlu0 %1415
    %1417 = vrot.lane.b32.xlu0 %v1410, 32
    %v1418 = vpop.permute.xlu0 %1417
    %v1421 = vmul.f32 %v1406, %v1416
    %v1422 = vmul.f32 %v1408, %v1418
    %1425 = vrot.lane.b32.xlu0 %v1421, 32
    %v1426 = vpop.permute.xlu0 %1425
    %1427 = vrot.lane.b32.xlu0 %v1422, 32
    %v1428 = vpop.permute.xlu0 %1427
    %v1431 = vadd.f32 %v1411, %v1426
    %v1432 = vadd.f32 %v1412, %v1428
    %v1433 = vtanh.pop %v1431
    %v1434 = vtanh.pop %v1432
    %1437 = vrot.lane.b32.xlu0 %v1433, 32
    %v1438 = vpop.permute.xlu0 %1437
    %1439 = vrot.lane.b32.xlu0 %v1434, 32
    %v1440 = vpop.permute.xlu0 %1439
    %v1443 = vmul.f32 %v1406, %v1438
    %v1444 = vmul.f32 %v1408, %v1440
    %1446 = vrot.lane.b32.xlu0 %v1443, 64
    %v1447 = vpop.permute.xlu0 %1446
    %1449 = vst.msk [vmem:[#allocation3 + $0x38] sm:$0xff] %vm220, %v1447
    %1451 = vrot.lane.b32.xlu0 %v1444, 96
    %v1452 = vpop.permute.xlu0 %1451
    %1454 = vst.msk [vmem:[#allocation3] sm:$0xff] %vm368, %v1452
    %v1455 = vld [vmem:[#allocation3] sm:$0xff]
    %v1456 = vld [vmem:[#allocation3 + $0x8] sm:$0xff]
    %v1457 = vld [vmem:[#allocation3 + $0x10] sm:$0xff]
    %v1458 = vld [vmem:[#allocation3 + $0x18] sm:$0xff]
    %v1459 = vld [vmem:[#allocation3 + $0x20] sm:$0xff]
    %v1460 = vld [vmem:[#allocation3 + $0x28] sm:$0xff]
    %v1461 = vld [vmem:[#allocation3 + $0x30] sm:$0xff]
    %v1462 = vld [vmem:[#allocation3 + $0x38] sm:$0xff]
    %v1463 = vpack.c.bf16 %v1456, %v1455
    %v1464 = vpack.c.bf16 %v1458, %v1457
    %v1465 = vpack.c.bf16 %v1460, %v1459
    %v1466 = vpack.c.bf16 %v1462, %v1461
    %v1467 = vld [vmem:[%s4] sm:$0xff]
    %v1468 = vld [vmem:[%s4 + $0x8] sm:$0xff]
    %v1469 = vld [vmem:[%s4 + $0x10] sm:$0xff]
    %v1470 = vld [vmem:[%s4 + $0x18] sm:$0xff]
    %v1471 = vld [vmem:[%s4 + $0x20] sm:$0xff]
    %v1472 = vld [vmem:[%s4 + $0x28] sm:$0xff]
    %v1473 = vld [vmem:[%s4 + $0x30] sm:$0xff]
    %v1474 = vld [vmem:[%s4 + $0x38] sm:$0xff]
    %v1475 = vld [vmem:[#allocation8] sm:$0x3]
    %v1477 = vlaneseq
    %v1478 = vshrl.u32 %v1477, 7
    %v1479 = vsub.s32 0, %v1478
    %v1480 = vrot.slane %v1475, %v1479
    %v1481 = vlaneseq
    %v1482 = vshrl.u32 %v1481, 7
    %v1483 = vsub.s32 1, %v1482
    %v1484 = vrot.slane %v1475, %v1483
    %v1495 = vunpack.c.l.b16 %v1467
    %v1496 = vunpack.c.h.b16 %v1467
    %v1497 = vunpack.c.l.b16 %v1468
    %v1498 = vunpack.c.h.b16 %v1468
    %v1499 = vunpack.c.l.b16 %v1469
    %v1500 = vunpack.c.h.b16 %v1469
    %v1501 = vunpack.c.l.b16 %v1470
    %v1502 = vunpack.c.h.b16 %v1470
    %v1503 = vunpack.c.l.b16 %v1471
    %v1504 = vunpack.c.h.b16 %v1471
    %v1505 = vunpack.c.l.b16 %v1472
    %v1506 = vunpack.c.h.b16 %v1472
    %v1507 = vunpack.c.l.b16 %v1473
    %v1508 = vunpack.c.h.b16 %v1473
    %v1509 = vunpack.c.l.b16 %v1474
    %v1510 = vunpack.c.h.b16 %v1474
    %v1511 = vpack.c.b16 %v1497, %v1495
    %v1512 = vpack.c.b16 %v1498, %v1496
    %v1513 = vpack.c.b16 %v1501, %v1499
    %v1514 = vpack.c.b16 %v1502, %v1500
    %v1515 = vpack.c.b16 %v1505, %v1503
    %v1516 = vpack.c.b16 %v1506, %v1504
    %v1517 = vpack.c.b16 %v1509, %v1507
    %v1518 = vpack.c.b16 %v1510, %v1508
    %vm1527 = vcmask 523264
    %v1529 = vsel %vm1527, %v1463, 0
    %v1532 = vsel %vm1527, %v1464, 0
    %v1535 = vsel %vm1527, %v1465, 0
    %v1538 = vsel %vm1527, %v1466, 0
    %1540 = vmatprep.subr.bf16.mxu0 %v1512
    %1541 = vmatpush1.bf16.msra.mxu0 %v1511
    %1542 = vmatprep.subr.bf16.mxu0 %v1514
    %1543 = vmatpush1.bf16.msra.mxu0 %v1513
    %1544 = vmatprep.subr.bf16.mxu0 %v1516
    %1545 = vmatpush1.bf16.msra.mxu0 %v1515
    %1546 = vmatprep.subr.bf16.mxu0 %v1518
    %1547 = vmatpush1.bf16.msra.mxu0 %v1517
    %1548 = vmatprep.subr.bf16.mxu0 0
    %1549 = vmatpush1.bf16.msra.mxu0 0
    %1550 = vmatprep.subr.bf16.mxu0 0
    %1551 = vmatpush1.bf16.msra.mxu0 0
    %1552 = vmatprep.subr.bf16.mxu0 0
    %1553 = vmatpush1.bf16.msra.mxu0 0
    %1554 = vmatprep.subr.bf16.mxu0 0
    %1555 = vmatpush1.bf16.msra.mxu0 0
    %1556 = vmatprep.subr.bf16.mxu0 0
    %1557 = vmatpush1.bf16.msra.mxu0 0
    %1558 = vmatprep.subr.bf16.mxu0 0
    %1559 = vmatpush1.bf16.msra.mxu0 0
    %1560 = vmatprep.subr.bf16.mxu0 0
    %1561 = vmatpush1.bf16.msra.mxu0 0
    %1562 = vmatprep.subr.bf16.mxu0 0
    %1563 = vmatpush1.bf16.msra.mxu0 0
    %1564 = vmatprep.subr.bf16.mxu0 0
    %1565 = vmatpush1.bf16.msra.mxu0 0
    %1566 = vmatprep.subr.bf16.mxu0 0
    %1567 = vmatpush1.bf16.msra.mxu0 0
    %1568 = vmatprep.subr.bf16.mxu0 0
    %1569 = vmatpush1.bf16.msra.mxu0 0
    %1570 = vmatprep.subr.bf16.mxu0 0
    %1571 = vmatpush1.bf16.msra.mxu0 0
    %1572 = vmatprep.mubr.bf16.mxu0 0
    %1573 = vmatmul.mubr.bf16.gmra.mrb[0].mxu0 %v1529
    %v1574 = vpop.f32.mrb[0].mxu0
    %v1575 = vadd.f32 %v1480, %v1574
    %v1576 = vpop.f32.mrb[0].mxu0
    %v1577 = vadd.f32 %v1484, %v1576
    %v1578 = vpop.f32.mrb[0].mxu0
    %v1579 = vadd.f32 %v1480, %v1578
    %v1580 = vpop.f32.mrb[0].mxu0
    %v1581 = vadd.f32 %v1484, %v1580
    %1582 = vmatprep.mubr.bf16.mxu0 0
    %1583 = vmatmul.mubr.bf16.gmra.mrb[0].mxu0 %v1532
    %v1584 = vpop.f32.mrb[0].mxu0
    %v1585 = vadd.f32 %v1480, %v1584
    %v1586 = vpop.f32.mrb[0].mxu0
    %v1587 = vadd.f32 %v1484, %v1586
    %v1588 = vpop.f32.mrb[0].mxu0
    %v1589 = vadd.f32 %v1480, %v1588
    %v1590 = vpop.f32.mrb[0].mxu0
    %v1591 = vadd.f32 %v1484, %v1590
    %1592 = vmatprep.mubr.bf16.mxu0 0
    %1593 = vmatmul.mubr.bf16.gmra.mrb[0].mxu0 %v1535
    %v1594 = vpop.f32.mrb[0].mxu0
    %v1595 = vadd.f32 %v1480, %v1594
    %v1596 = vpop.f32.mrb[0].mxu0
    %v1597 = vadd.f32 %v1484, %v1596
    %v1598 = vpop.f32.mrb[0].mxu0
    %v1599 = vadd.f32 %v1480, %v1598
    %v1600 = vpop.f32.mrb[0].mxu0
    %v1601 = vadd.f32 %v1484, %v1600
    %1602 = vmatprep.mubr.bf16.mxu0 0
    %1603 = vmatmul.mubr.bf16.gmra.mrb[0].mxu0 %v1538
    %v1604 = vpop.f32.mrb[0].mxu0
    %v1605 = vadd.f32 %v1480, %v1604
    %v1606 = vpop.f32.mrb[0].mxu0
    %v1607 = vadd.f32 %v1484, %v1606
    %v1608 = vpop.f32.mrb[0].mxu0
    %v1609 = vadd.f32 %v1480, %v1608
    %v1610 = vpop.f32.mrb[0].mxu0
    %v1611 = vadd.f32 %v1484, %v1610
    %1612 = vdwg.mxu0
    %1613 = vst [vmem:[#allocation2] sm:$0xff] %v1575
    %1614 = vst [vmem:[#allocation2 + $0x78] sm:$0xff] %v1577
    %1615 = vst [vmem:[#allocation2 + $0x10] sm:$0xff] %v1579
    %1616 = vst [vmem:[#allocation2 + $0x68] sm:$0xff] %v1581
    %1617 = vst [vmem:[#allocation2 + $0x20] sm:$0xff] %v1585
    %1618 = vst [vmem:[#allocation2 + $0x58] sm:$0xff] %v1587
    %1619 = vst [vmem:[#allocation2 + $0x30] sm:$0xff] %v1589
    %1620 = vst [vmem:[#allocation2 + $0x48] sm:$0xff] %v1591
    %1621 = vst [vmem:[#allocation2 + $0x40] sm:$0xff] %v1595
    %1622 = vst [vmem:[#allocation2 + $0x38] sm:$0xff] %v1597
    %1623 = vst [vmem:[#allocation2 + $0x50] sm:$0xff] %v1599
    %1624 = vst [vmem:[#allocation2 + $0x28] sm:$0xff] %v1601
    %1625 = vst [vmem:[#allocation2 + $0x60] sm:$0xff] %v1605
    %1626 = vst [vmem:[#allocation2 + $0x18] sm:$0xff] %v1607
    %1627 = vst [vmem:[#allocation2 + $0x70] sm:$0xff] %v1609
    %1628 = vst [vmem:[#allocation2 + $0x8] sm:$0xff] %v1611
    %v1629 = vld [vmem:[%s5] sm:$0xff]
    %v1630 = vld [vmem:[%s5 + $0x8] sm:$0xff]
    %v1631 = vld [vmem:[%s5 + $0x10] sm:$0xff]
    %v1632 = vld [vmem:[%s5 + $0x18] sm:$0xff]
    %v1633 = vld [vmem:[%s5 + $0x20] sm:$0xff]
    %v1634 = vld [vmem:[%s5 + $0x28] sm:$0xff]
    %v1635 = vld [vmem:[%s5 + $0x30] sm:$0xff]
    %v1636 = vld [vmem:[%s5 + $0x38] sm:$0xff]
    %1637 = vmatprep.subr.mxu0 %v1630
    %1638 = vmatpush1.msra.mxu0 %v1629
    %1639 = vmatprep.subr.mxu0 %v1632
    %1640 = vmatpush1.msra.mxu0 %v1631
    %1641 = vmatprep.subr.mxu0 %v1634
    %1642 = vmatpush1.msra.mxu0 %v1633
    %1643 = vmatprep.subr.mxu0 %v1636
    %1644 = vmatpush1.msra.mxu0 %v1635
    %1645 = vmatprep.subr.mxu0 0.0
    %1646 = vmatpush1.msra.mxu0 0.0
    %1647 = vmatprep.subr.mxu0 0.0
    %1648 = vmatpush1.msra.mxu0 0.0
    %1649 = vmatprep.subr.mxu0 0.0
    %1650 = vmatpush1.msra.mxu0 0.0
    %1651 = vmatprep.subr.mxu0 0.0
    %1652 = vmatpush1.msra.mxu0 0.0
    %1653 = vmatprep.subr.mxu0 0.0
    %1654 = vmatpush1.msra.mxu0 0.0
    %1655 = vmatprep.subr.mxu0 0.0
    %1656 = vmatpush1.msra.mxu0 0.0
    %1657 = vmatprep.subr.mxu0 0.0
    %1658 = vmatpush1.msra.mxu0 0.0
    %1659 = vmatprep.subr.mxu0 0.0
    %1660 = vmatpush1.msra.mxu0 0.0
    %1661 = vmatprep.subr.mxu0 0.0
    %1662 = vmatpush1.msra.mxu0 0.0
    %1663 = vmatprep.subr.mxu0 0.0
    %1664 = vmatpush1.msra.mxu0 0.0
    %1665 = vmatprep.subr.mxu0 0.0
    %1666 = vmatpush1.msra.mxu0 0.0
    %1667 = vmatprep.subr.mxu0 0.0
    %1668 = vmatpush1.msra.mxu0 0.0
    %1669 = vmatprep.subr.mxu0 0.0
    %1670 = vmatpush1.msra.mxu0 0.0
    %1671 = vmatprep.subr.mxu0 0.0
    %1672 = vmatpush1.msra.mxu0 0.0
    %1673 = vmatprep.subr.mxu0 0.0
    %1674 = vmatpush1.msra.mxu0 0.0
    %1675 = vmatprep.subr.mxu0 0.0
    %1676 = vmatpush1.msra.mxu0 0.0
    %1677 = vmatprep.subr.mxu0 0.0
    %1678 = vmatpush1.msra.mxu0 0.0
    %1679 = vmatprep.subr.mxu0 0.0
    %1680 = vmatpush1.msra.mxu0 0.0
    %1681 = vmatprep.subr.mxu0 0.0
    %1682 = vmatpush1.msra.mxu0 0.0
    %1683 = vmatprep.subr.mxu0 0.0
    %1684 = vmatpush1.msra.mxu0 0.0
    %1685 = vmatprep.subr.mxu0 0.0
    %1686 = vmatpush1.msra.mxu0 0.0
    %1687 = vmatprep.subr.mxu0 0.0
    %1688 = vmatpush1.msra.mxu0 0.0
    %1689 = vmatprep.subr.mxu0 0.0
    %1690 = vmatpush1.msra.mxu0 0.0
    %1691 = vmatprep.subr.mxu0 0.0
    %1692 = vmatpush1.msra.mxu0 0.0
    %1693 = vmatprep.subr.mxu0 0.0
    %1694 = vmatpush1.msra.mxu0 0.0
    %1695 = vmatprep.subr.mxu0 0.0
    %1696 = vmatpush1.msra.mxu0 0.0
    %1697 = vmatprep.subr.mxu0 0.0
    %1698 = vmatpush1.msra.mxu0 0.0
    %1699 = vmatprep.subr.mxu0 0.0
    %1700 = vmatpush1.msra.mxu0 0.0
    %1701 = vmatprep.mubr.f32.mxu0 0.0
    %1702 = vmatmul.mubr.f32.gmra.mrb[0].mxu0 %v222
    %v1703 = vpop.f32.mrb[0].mxu0
    %v1704 = vadd.f32 0.0, %v1703
    %v1705 = vpop.f32.mrb[0].mxu0
    %v1706 = vadd.f32 0.0, %v1705
    %1707 = vmatprep.mubr.f32.mxu0 0.0
    %1708 = vmatmul.mubr.f32.gmra.mrb[0].mxu0 %v222
    %v1709 = vpop.f32.mrb[0].mxu0
    %v1710 = vadd.f32 0.0, %v1709
    %v1711 = vpop.f32.mrb[0].mxu0
    %v1712 = vadd.f32 0.0, %v1711
    %1713 = vdwg.mxu0
    %v1714 = vsel %vm303, %v1704, %v1706
    %v1715 = vsel %vm304, %v1710, %v1712
    %v1716 = vld [vmem:[#allocation2] sm:$0xff]
    %v1717 = vld [vmem:[#allocation2 + $0x8] sm:$0xff]
    %v1718 = vadd.f32 %v1714, %v1716
    %v1719 = vadd.f32 %v1715, %v1717
    %v1720 = vxor.u32 %v1718, 2147483648
    %v1721 = vxor.u32 %v1719, 2147483648
    %v1722 = vmul.f32 %v1720, 1.442695
    %v1723 = vpow.pop %v1722
    %v1724 = vmul.f32 %v1721, 1.442695
    %v1725 = vpow.pop %v1724
    %v1726 = vadd.f32 %v1723, 1.0
    %v1727 = vadd.f32 %v1725, 1.0
    %v1728 = vrcp.pop %v1726
    %v1729 = vmul.f32 1.0, %v1728
    %v1730 = vrcp.pop %v1727
    %v1731 = vmul.f32 1.0, %v1730
    %v1732 = vtanh.pop %v1718
    %v1733 = vtanh.pop %v1719
    %v1734 = vmul.f32 %v1729, 0.0
    %v1735 = vmul.f32 %v1731, 0.0
    %1738 = vrot.lane.b32.xlu0 %v1732, 32
    %v1739 = vpop.permute.xlu0 %1738
    %1740 = vrot.lane.b32.xlu0 %v1733, 32
    %v1741 = vpop.permute.xlu0 %1740
    %v1744 = vmul.f32 %v1729, %v1739
    %v1745 = vmul.f32 %v1731, %v1741
    %1748 = vrot.lane.b32.xlu0 %v1744, 32
    %v1749 = vpop.permute.xlu0 %1748
    %1750 = vrot.lane.b32.xlu0 %v1745, 32
    %v1751 = vpop.permute.xlu0 %1750
    %v1754 = vadd.f32 %v1734, %v1749
    %v1755 = vadd.f32 %v1735, %v1751
    %v1756 = vtanh.pop %v1754
    %v1757 = vtanh.pop %v1755
    %1760 = vrot.lane.b32.xlu0 %v1756, 32
    %v1761 = vpop.permute.xlu0 %1760
    %1762 = vrot.lane.b32.xlu0 %v1757, 32
    %v1763 = vpop.permute.xlu0 %1762
    %v1766 = vmul.f32 %v1729, %v1761
    %v1767 = vmul.f32 %v1731, %v1763
    %1769 = vrot.lane.b32.xlu0 %v1766, 64
    %v1770 = vpop.permute.xlu0 %1769
    %1772 = vst.msk [vmem:[#allocation3] sm:$0xff] %vm220, %v1770
    %1774 = vrot.lane.b32.xlu0 %v1767, 96
    %v1775 = vpop.permute.xlu0 %1774
    %1777 = vst.msk [vmem:[#allocation3 + $0x38] sm:$0xff] %vm368, %v1775
    %v1778 = vld [vmem:[%s5] sm:$0xff]
    %v1779 = vld [vmem:[%s5 + $0x8] sm:$0xff]
    %v1780 = vld [vmem:[%s5 + $0x10] sm:$0xff]
    %v1781 = vld [vmem:[%s5 + $0x18] sm:$0xff]
    %v1782 = vld [vmem:[%s5 + $0x20] sm:$0xff]
    %v1783 = vld [vmem:[%s5 + $0x28] sm:$0xff]
    %v1784 = vld [vmem:[%s5 + $0x30] sm:$0xff]
    %v1785 = vld [vmem:[%s5 + $0x38] sm:$0xff]
    %1786 = vrot.lane.b32.xlu0 %v1767, 64
    %v1787 = vpop.permute.xlu0 %1786
    %v1788 = vsel %vm220, %v1770, 0
    %v1790 = vsel %vm220, %v1787, 0
    %1792 = vmatprep.subr.mxu0 %v1779
    %1793 = vmatpush1.msra.mxu0 %v1778
    %1794 = vmatprep.subr.mxu0 %v1781
    %1795 = vmatpush1.msra.mxu0 %v1780
    %1796 = vmatprep.subr.mxu0 %v1783
    %1797 = vmatpush1.msra.mxu0 %v1782
    %1798 = vmatprep.subr.mxu0 %v1785
    %1799 = vmatpush1.msra.mxu0 %v1784
    %1800 = vmatprep.subr.mxu0 0.0
    %1801 = vmatpush1.msra.mxu0 0.0
    %1802 = vmatprep.subr.mxu0 0.0
    %1803 = vmatpush1.msra.mxu0 0.0
    %1804 = vmatprep.subr.mxu0 0.0
    %1805 = vmatpush1.msra.mxu0 0.0
    %1806 = vmatprep.subr.mxu0 0.0
    %1807 = vmatpush1.msra.mxu0 0.0
    %1808 = vmatprep.subr.mxu0 0.0
    %1809 = vmatpush1.msra.mxu0 0.0
    %1810 = vmatprep.subr.mxu0 0.0
    %1811 = vmatpush1.msra.mxu0 0.0
    %1812 = vmatprep.subr.mxu0 0.0
    %1813 = vmatpush1.msra.mxu0 0.0
    %1814 = vmatprep.subr.mxu0 0.0
    %1815 = vmatpush1.msra.mxu0 0.0
    %1816 = vmatprep.subr.mxu0 0.0
    %1817 = vmatpush1.msra.mxu0 0.0
    %1818 = vmatprep.subr.mxu0 0.0
    %1819 = vmatpush1.msra.mxu0 0.0
    %1820 = vmatprep.subr.mxu0 0.0
    %1821 = vmatpush1.msra.mxu0 0.0
    %1822 = vmatprep.subr.mxu0 0.0
    %1823 = vmatpush1.msra.mxu0 0.0
    %1824 = vmatprep.subr.mxu0 0.0
    %1825 = vmatpush1.msra.mxu0 0.0
    %1826 = vmatprep.subr.mxu0 0.0
    %1827 = vmatpush1.msra.mxu0 0.0
    %1828 = vmatprep.subr.mxu0 0.0
    %1829 = vmatpush1.msra.mxu0 0.0
    %1830 = vmatprep.subr.mxu0 0.0
    %1831 = vmatpush1.msra.mxu0 0.0
    %1832 = vmatprep.subr.mxu0 0.0
    %1833 = vmatpush1.msra.mxu0 0.0
    %1834 = vmatprep.subr.mxu0 0.0
    %1835 = vmatpush1.msra.mxu0 0.0
    %1836 = vmatprep.subr.mxu0 0.0
    %1837 = vmatpush1.msra.mxu0 0.0
    %1838 = vmatprep.subr.mxu0 0.0
    %1839 = vmatpush1.msra.mxu0 0.0
    %1840 = vmatprep.subr.mxu0 0.0
    %1841 = vmatpush1.msra.mxu0 0.0
    %1842 = vmatprep.subr.mxu0 0.0
    %1843 = vmatpush1.msra.mxu0 0.0
    %1844 = vmatprep.subr.mxu0 0.0
    %1845 = vmatpush1.msra.mxu0 0.0
    %1846 = vmatprep.subr.mxu0 0.0
    %1847 = vmatpush1.msra.mxu0 0.0
    %1848 = vmatprep.subr.mxu0 0.0
    %1849 = vmatpush1.msra.mxu0 0.0
    %1850 = vmatprep.subr.mxu0 0.0
    %1851 = vmatpush1.msra.mxu0 0.0
    %1852 = vmatprep.subr.mxu0 0.0
    %1853 = vmatpush1.msra.mxu0 0.0
    %1854 = vmatprep.subr.mxu0 0.0
    %1855 = vmatpush1.msra.mxu0 0.0
    %1856 = vmatprep.mubr.f32.mxu0 0.0
    %1857 = vmatmul.mubr.f32.gmra.mrb[0].mxu0 %v1788
    %v1858 = vpop.f32.mrb[0].mxu0
    %v1859 = vadd.f32 0.0, %v1858
    %v1860 = vpop.f32.mrb[0].mxu0
    %v1861 = vadd.f32 0.0, %v1860
    %1862 = vmatprep.mubr.f32.mxu0 0.0
    %1863 = vmatmul.mubr.f32.gmra.mrb[0].mxu0 %v1790
    %v1864 = vpop.f32.mrb[0].mxu0
    %v1865 = vadd.f32 0.0, %v1864
    %v1866 = vpop.f32.mrb[0].mxu0
    %v1867 = vadd.f32 0.0, %v1866
    %1868 = vdwg.mxu0
    %v1869 = vsel %vm303, %v1859, %v1861
    %v1870 = vsel %vm304, %v1865, %v1867
    %v1871 = vld [vmem:[#allocation2 + $0x10] sm:$0xff]
    %v1872 = vld [vmem:[#allocation2 + $0x18] sm:$0xff]
    %v1873 = vadd.f32 %v1869, %v1871
    %v1874 = vadd.f32 %v1870, %v1872
    %v1875 = vxor.u32 %v1873, 2147483648
    %v1876 = vxor.u32 %v1874, 2147483648
    %v1877 = vmul.f32 %v1875, 1.442695
    %v1878 = vpow.pop %v1877
    %v1879 = vmul.f32 %v1876, 1.442695
    %v1880 = vpow.pop %v1879
    %v1881 = vadd.f32 %v1878, 1.0
    %v1882 = vadd.f32 %v1880, 1.0
    %v1883 = vrcp.pop %v1881
    %v1884 = vmul.f32 1.0, %v1883
    %v1885 = vrcp.pop %v1882
    %v1886 = vmul.f32 1.0, %v1885
    %v1887 = vtanh.pop %v1873
    %v1888 = vtanh.pop %v1874
    %v1889 = vmul.f32 %v1884, %v1754
    %v1890 = vmul.f32 %v1886, %v1755
    %1893 = vrot.lane.b32.xlu0 %v1887, 32
    %v1894 = vpop.permute.xlu0 %1893
    %1895 = vrot.lane.b32.xlu0 %v1888, 32
    %v1896 = vpop.permute.xlu0 %1895
    %v1899 = vmul.f32 %v1884, %v1894
    %v1900 = vmul.f32 %v1886, %v1896
    %1903 = vrot.lane.b32.xlu0 %v1899, 32
    %v1904 = vpop.permute.xlu0 %1903
    %1905 = vrot.lane.b32.xlu0 %v1900, 32
    %v1906 = vpop.permute.xlu0 %1905
    %v1909 = vadd.f32 %v1889, %v1904
    %v1910 = vadd.f32 %v1890, %v1906
    %v1911 = vtanh.pop %v1909
    %v1912 = vtanh.pop %v1910
    %1915 = vrot.lane.b32.xlu0 %v1911, 32
    %v1916 = vpop.permute.xlu0 %1915
    %1917 = vrot.lane.b32.xlu0 %v1912, 32
    %v1918 = vpop.permute.xlu0 %1917
    %v1921 = vmul.f32 %v1884, %v1916
    %v1922 = vmul.f32 %v1886, %v1918
    %1924 = vrot.lane.b32.xlu0 %v1921, 64
    %v1925 = vpop.permute.xlu0 %1924
    %1927 = vst.msk [vmem:[#allocation3 + $0x8] sm:$0xff] %vm220, %v1925
    %1929 = vrot.lane.b32.xlu0 %v1922, 96
    %v1930 = vpop.permute.xlu0 %1929
    %1932 = vst.msk [vmem:[#allocation3 + $0x30] sm:$0xff] %vm368, %v1930
    %v1933 = vld [vmem:[%s5] sm:$0xff]
    %v1934 = vld [vmem:[%s5 + $0x8] sm:$0xff]
    %v1935 = vld [vmem:[%s5 + $0x10] sm:$0xff]
    %v1936 = vld [vmem:[%s5 + $0x18] sm:$0xff]
    %v1937 = vld [vmem:[%s5 + $0x20] sm:$0xff]
    %v1938 = vld [vmem:[%s5 + $0x28] sm:$0xff]
    %v1939 = vld [vmem:[%s5 + $0x30] sm:$0xff]
    %v1940 = vld [vmem:[%s5 + $0x38] sm:$0xff]
    %1941 = vrot.lane.b32.xlu0 %v1922, 64
    %v1942 = vpop.permute.xlu0 %1941
    %v1943 = vsel %vm220, %v1925, 0
    %v1945 = vsel %vm220, %v1942, 0
    %1947 = vmatprep.subr.mxu0 %v1934
    %1948 = vmatpush1.msra.mxu0 %v1933
    %1949 = vmatprep.subr.mxu0 %v1936
    %1950 = vmatpush1.msra.mxu0 %v1935
    %1951 = vmatprep.subr.mxu0 %v1938
    %1952 = vmatpush1.msra.mxu0 %v1937
    %1953 = vmatprep.subr.mxu0 %v1940
    %1954 = vmatpush1.msra.mxu0 %v1939
    %1955 = vmatprep.subr.mxu0 0.0
    %1956 = vmatpush1.msra.mxu0 0.0
    %1957 = vmatprep.subr.mxu0 0.0
    %1958 = vmatpush1.msra.mxu0 0.0
    %1959 = vmatprep.subr.mxu0 0.0
    %1960 = vmatpush1.msra.mxu0 0.0
    %1961 = vmatprep.subr.mxu0 0.0
    %1962 = vmatpush1.msra.mxu0 0.0
    %1963 = vmatprep.subr.mxu0 0.0
    %1964 = vmatpush1.msra.mxu0 0.0
    %1965 = vmatprep.subr.mxu0 0.0
    %1966 = vmatpush1.msra.mxu0 0.0
    %1967 = vmatprep.subr.mxu0 0.0
    %1968 = vmatpush1.msra.mxu0 0.0
    %1969 = vmatprep.subr.mxu0 0.0
    %1970 = vmatpush1.msra.mxu0 0.0
    %1971 = vmatprep.subr.mxu0 0.0
    %1972 = vmatpush1.msra.mxu0 0.0
    %1973 = vmatprep.subr.mxu0 0.0
    %1974 = vmatpush1.msra.mxu0 0.0
    %1975 = vmatprep.subr.mxu0 0.0
    %1976 = vmatpush1.msra.mxu0 0.0
    %1977 = vmatprep.subr.mxu0 0.0
    %1978 = vmatpush1.msra.mxu0 0.0
    %1979 = vmatprep.subr.mxu0 0.0
    %1980 = vmatpush1.msra.mxu0 0.0
    %1981 = vmatprep.subr.mxu0 0.0
    %1982 = vmatpush1.msra.mxu0 0.0
    %1983 = vmatprep.subr.mxu0 0.0
    %1984 = vmatpush1.msra.mxu0 0.0
    %1985 = vmatprep.subr.mxu0 0.0
    %1986 = vmatpush1.msra.mxu0 0.0
    %1987 = vmatprep.subr.mxu0 0.0
    %1988 = vmatpush1.msra.mxu0 0.0
    %1989 = vmatprep.subr.mxu0 0.0
    %1990 = vmatpush1.msra.mxu0 0.0
    %1991 = vmatprep.subr.mxu0 0.0
    %1992 = vmatpush1.msra.mxu0 0.0
    %1993 = vmatprep.subr.mxu0 0.0
    %1994 = vmatpush1.msra.mxu0 0.0
    %1995 = vmatprep.subr.mxu0 0.0
    %1996 = vmatpush1.msra.mxu0 0.0
    %1997 = vmatprep.subr.mxu0 0.0
    %1998 = vmatpush1.msra.mxu0 0.0
    %1999 = vmatprep.subr.mxu0 0.0
    %2000 = vmatpush1.msra.mxu0 0.0
    %2001 = vmatprep.subr.mxu0 0.0
    %2002 = vmatpush1.msra.mxu0 0.0
    %2003 = vmatprep.subr.mxu0 0.0
    %2004 = vmatpush1.msra.mxu0 0.0
    %2005 = vmatprep.subr.mxu0 0.0
    %2006 = vmatpush1.msra.mxu0 0.0
    %2007 = vmatprep.subr.mxu0 0.0
    %2008 = vmatpush1.msra.mxu0 0.0
    %2009 = vmatprep.subr.mxu0 0.0
    %2010 = vmatpush1.msra.mxu0 0.0
    %2011 = vmatprep.mubr.f32.mxu0 0.0
    %2012 = vmatmul.mubr.f32.gmra.mrb[0].mxu0 %v1943
    %v2013 = vpop.f32.mrb[0].mxu0
    %v2014 = vadd.f32 0.0, %v2013
    %v2015 = vpop.f32.mrb[0].mxu0
    %v2016 = vadd.f32 0.0, %v2015
    %2017 = vmatprep.mubr.f32.mxu0 0.0
    %2018 = vmatmul.mubr.f32.gmra.mrb[0].mxu0 %v1945
    %v2019 = vpop.f32.mrb[0].mxu0
    %v2020 = vadd.f32 0.0, %v2019
    %v2021 = vpop.f32.mrb[0].mxu0
    %v2022 = vadd.f32 0.0, %v2021
    %2023 = vdwg.mxu0
    %v2024 = vsel %vm303, %v2014, %v2016
    %v2025 = vsel %vm304, %v2020, %v2022
    %v2026 = vld [vmem:[#allocation2 + $0x20] sm:$0xff]
    %v2027 = vld [vmem:[#allocation2 + $0x28] sm:$0xff]
    %v2028 = vadd.f32 %v2024, %v2026
    %v2029 = vadd.f32 %v2025, %v2027
    %v2030 = vxor.u32 %v2028, 2147483648
    %v2031 = vxor.u32 %v2029, 2147483648
    %v2032 = vmul.f32 %v2030, 1.442695
    %v2033 = vpow.pop %v2032
    %v2034 = vmul.f32 %v2031, 1.442695
    %v2035 = vpow.pop %v2034
    %v2036 = vadd.f32 %v2033, 1.0
    %v2037 = vadd.f32 %v2035, 1.0
    %v2038 = vrcp.pop %v2036
    %v2039 = vmul.f32 1.0, %v2038
    %v2040 = vrcp.pop %v2037
    %v2041 = vmul.f32 1.0, %v2040
    %v2042 = vtanh.pop %v2028
    %v2043 = vtanh.pop %v2029
    %v2044 = vmul.f32 %v2039, %v1909
    %v2045 = vmul.f32 %v2041, %v1910
    %2048 = vrot.lane.b32.xlu0 %v2042, 32
    %v2049 = vpop.permute.xlu0 %2048
    %2050 = vrot.lane.b32.xlu0 %v2043, 32
    %v2051 = vpop.permute.xlu0 %2050
    %v2054 = vmul.f32 %v2039, %v2049
    %v2055 = vmul.f32 %v2041, %v2051
    %2058 = vrot.lane.b32.xlu0 %v2054, 32
    %v2059 = vpop.permute.xlu0 %2058
    %2060 = vrot.lane.b32.xlu0 %v2055, 32
    %v2061 = vpop.permute.xlu0 %2060
    %v2064 = vadd.f32 %v2044, %v2059
    %v2065 = vadd.f32 %v2045, %v2061
    %v2066 = vtanh.pop %v2064
    %v2067 = vtanh.pop %v2065
    %2070 = vrot.lane.b32.xlu0 %v2066, 32
    %v2071 = vpop.permute.xlu0 %2070
    %2072 = vrot.lane.b32.xlu0 %v2067, 32
    %v2073 = vpop.permute.xlu0 %2072
    %v2076 = vmul.f32 %v2039, %v2071
    %v2077 = vmul.f32 %v2041, %v2073
    %2079 = vrot.lane.b32.xlu0 %v2076, 64
    %v2080 = vpop.permute.xlu0 %2079
    %2082 = vst.msk [vmem:[#allocation3 + $0x10] sm:$0xff] %vm220, %v2080
    %2084 = vrot.lane.b32.xlu0 %v2077, 96
    %v2085 = vpop.permute.xlu0 %2084
    %2087 = vst.msk [vmem:[#allocation3 + $0x28] sm:$0xff] %vm368, %v2085
    %v2088 = vld [vmem:[%s5] sm:$0xff]
    %v2089 = vld [vmem:[%s5 + $0x8] sm:$0xff]
    %v2090 = vld [vmem:[%s5 + $0x10] sm:$0xff]
    %v2091 = vld [vmem:[%s5 + $0x18] sm:$0xff]
    %v2092 = vld [vmem:[%s5 + $0x20] sm:$0xff]
    %v2093 = vld [vmem:[%s5 + $0x28] sm:$0xff]
    %v2094 = vld [vmem:[%s5 + $0x30] sm:$0xff]
    %v2095 = vld [vmem:[%s5 + $0x38] sm:$0xff]
    %2096 = vrot.lane.b32.xlu0 %v2077, 64
    %v2097 = vpop.permute.xlu0 %2096
    %v2098 = vsel %vm220, %v2080, 0
    %v2100 = vsel %vm220, %v2097, 0
    %2102 = vmatprep.subr.mxu0 %v2089
    %2103 = vmatpush1.msra.mxu0 %v2088
    %2104 = vmatprep.subr.mxu0 %v2091
    %2105 = vmatpush1.msra.mxu0 %v2090
    %2106 = vmatprep.subr.mxu0 %v2093
    %2107 = vmatpush1.msra.mxu0 %v2092
    %2108 = vmatprep.subr.mxu0 %v2095
    %2109 = vmatpush1.msra.mxu0 %v2094
    %2110 = vmatprep.subr.mxu0 0.0
    %2111 = vmatpush1.msra.mxu0 0.0
    %2112 = vmatprep.subr.mxu0 0.0
    %2113 = vmatpush1.msra.mxu0 0.0
    %2114 = vmatprep.subr.mxu0 0.0
    %2115 = vmatpush1.msra.mxu0 0.0
    %2116 = vmatprep.subr.mxu0 0.0
    %2117 = vmatpush1.msra.mxu0 0.0
    %2118 = vmatprep.subr.mxu0 0.0
    %2119 = vmatpush1.msra.mxu0 0.0
    %2120 = vmatprep.subr.mxu0 0.0
    %2121 = vmatpush1.msra.mxu0 0.0
    %2122 = vmatprep.subr.mxu0 0.0
    %2123 = vmatpush1.msra.mxu0 0.0
    %2124 = vmatprep.subr.mxu0 0.0
    %2125 = vmatpush1.msra.mxu0 0.0
    %2126 = vmatprep.subr.mxu0 0.0
    %2127 = vmatpush1.msra.mxu0 0.0
    %2128 = vmatprep.subr.mxu0 0.0
    %2129 = vmatpush1.msra.mxu0 0.0
    %2130 = vmatprep.subr.mxu0 0.0
    %2131 = vmatpush1.msra.mxu0 0.0
    %2132 = vmatprep.subr.mxu0 0.0
    %2133 = vmatpush1.msra.mxu0 0.0
    %2134 = vmatprep.subr.mxu0 0.0
    %2135 = vmatpush1.msra.mxu0 0.0
    %2136 = vmatprep.subr.mxu0 0.0
    %2137 = vmatpush1.msra.mxu0 0.0
    %2138 = vmatprep.subr.mxu0 0.0
    %2139 = vmatpush1.msra.mxu0 0.0
    %2140 = vmatprep.subr.mxu0 0.0
    %2141 = vmatpush1.msra.mxu0 0.0
    %2142 = vmatprep.subr.mxu0 0.0
    %2143 = vmatpush1.msra.mxu0 0.0
    %2144 = vmatprep.subr.mxu0 0.0
    %2145 = vmatpush1.msra.mxu0 0.0
    %2146 = vmatprep.subr.mxu0 0.0
    %2147 = vmatpush1.msra.mxu0 0.0
    %2148 = vmatprep.subr.mxu0 0.0
    %2149 = vmatpush1.msra.mxu0 0.0
    %2150 = vmatprep.subr.mxu0 0.0
    %2151 = vmatpush1.msra.mxu0 0.0
    %2152 = vmatprep.subr.mxu0 0.0
    %2153 = vmatpush1.msra.mxu0 0.0
    %2154 = vmatprep.subr.mxu0 0.0
    %2155 = vmatpush1.msra.mxu0 0.0
    %2156 = vmatprep.subr.mxu0 0.0
    %2157 = vmatpush1.msra.mxu0 0.0
    %2158 = vmatprep.subr.mxu0 0.0
    %2159 = vmatpush1.msra.mxu0 0.0
    %2160 = vmatprep.subr.mxu0 0.0
    %2161 = vmatpush1.msra.mxu0 0.0
    %2162 = vmatprep.subr.mxu0 0.0
    %2163 = vmatpush1.msra.mxu0 0.0
    %2164 = vmatprep.subr.mxu0 0.0
    %2165 = vmatpush1.msra.mxu0 0.0
    %2166 = vmatprep.mubr.f32.mxu0 0.0
    %2167 = vmatmul.mubr.f32.gmra.mrb[0].mxu0 %v2098
    %v2168 = vpop.f32.mrb[0].mxu0
    %v2169 = vadd.f32 0.0, %v2168
    %v2170 = vpop.f32.mrb[0].mxu0
    %v2171 = vadd.f32 0.0, %v2170
    %2172 = vmatprep.mubr.f32.mxu0 0.0
    %2173 = vmatmul.mubr.f32.gmra.mrb[0].mxu0 %v2100
    %v2174 = vpop.f32.mrb[0].mxu0
    %v2175 = vadd.f32 0.0, %v2174
    %v2176 = vpop.f32.mrb[0].mxu0
    %v2177 = vadd.f32 0.0, %v2176
    %2178 = vdwg.mxu0
    %v2179 = vsel %vm303, %v2169, %v2171
    %v2180 = vsel %vm304, %v2175, %v2177
    %v2181 = vld [vmem:[#allocation2 + $0x30] sm:$0xff]
    %v2182 = vld [vmem:[#allocation2 + $0x38] sm:$0xff]
    %v2183 = vadd.f32 %v2179, %v2181
    %v2184 = vadd.f32 %v2180, %v2182
    %v2185 = vxor.u32 %v2183, 2147483648
    %v2186 = vxor.u32 %v2184, 2147483648
    %v2187 = vmul.f32 %v2185, 1.442695
    %v2188 = vpow.pop %v2187
    %v2189 = vmul.f32 %v2186, 1.442695
    %v2190 = vpow.pop %v2189
    %v2191 = vadd.f32 %v2188, 1.0
    %v2192 = vadd.f32 %v2190, 1.0
    %v2193 = vrcp.pop %v2191
    %v2194 = vmul.f32 1.0, %v2193
    %v2195 = vrcp.pop %v2192
    %v2196 = vmul.f32 1.0, %v2195
    %v2197 = vtanh.pop %v2183
    %v2198 = vtanh.pop %v2184
    %v2199 = vmul.f32 %v2194, %v2064
    %v2200 = vmul.f32 %v2196, %v2065
    %2203 = vrot.lane.b32.xlu0 %v2197, 32
    %v2204 = vpop.permute.xlu0 %2203
    %2205 = vrot.lane.b32.xlu0 %v2198, 32
    %v2206 = vpop.permute.xlu0 %2205
    %v2209 = vmul.f32 %v2194, %v2204
    %v2210 = vmul.f32 %v2196, %v2206
    %2213 = vrot.lane.b32.xlu0 %v2209, 32
    %v2214 = vpop.permute.xlu0 %2213
    %2215 = vrot.lane.b32.xlu0 %v2210, 32
    %v2216 = vpop.permute.xlu0 %2215
    %v2219 = vadd.f32 %v2199, %v2214
    %v2220 = vadd.f32 %v2200, %v2216
    %v2221 = vtanh.pop %v2219
    %v2222 = vtanh.pop %v2220
    %2225 = vrot.lane.b32.xlu0 %v2221, 32
    %v2226 = vpop.permute.xlu0 %2225
    %2227 = vrot.lane.b32.xlu0 %v2222, 32
    %v2228 = vpop.permute.xlu0 %2227
    %v2231 = vmul.f32 %v2194, %v2226
    %v2232 = vmul.f32 %v2196, %v2228
    %2234 = vrot.lane.b32.xlu0 %v2231, 64
    %v2235 = vpop.permute.xlu0 %2234
    %2237 = vst.msk [vmem:[#allocation3 + $0x18] sm:$0xff] %vm220, %v2235
    %2239 = vrot.lane.b32.xlu0 %v2232, 96
    %v2240 = vpop.permute.xlu0 %2239
    %2242 = vst.msk [vmem:[#allocation3 + $0x20] sm:$0xff] %vm368, %v2240
    %v2243 = vld [vmem:[%s5] sm:$0xff]
    %v2244 = vld [vmem:[%s5 + $0x8] sm:$0xff]
    %v2245 = vld [vmem:[%s5 + $0x10] sm:$0xff]
    %v2246 = vld [vmem:[%s5 + $0x18] sm:$0xff]
    %v2247 = vld [vmem:[%s5 + $0x20] sm:$0xff]
    %v2248 = vld [vmem:[%s5 + $0x28] sm:$0xff]
    %v2249 = vld [vmem:[%s5 + $0x30] sm:$0xff]
    %v2250 = vld [vmem:[%s5 + $0x38] sm:$0xff]
    %2251 = vrot.lane.b32.xlu0 %v2232, 64
    %v2252 = vpop.permute.xlu0 %2251
    %v2253 = vsel %vm220, %v2235, 0
    %v2255 = vsel %vm220, %v2252, 0
    %2257 = vmatprep.subr.mxu0 %v2244
    %2258 = vmatpush1.msra.mxu0 %v2243
    %2259 = vmatprep.subr.mxu0 %v2246
    %2260 = vmatpush1.msra.mxu0 %v2245
    %2261 = vmatprep.subr.mxu0 %v2248
    %2262 = vmatpush1.msra.mxu0 %v2247
    %2263 = vmatprep.subr.mxu0 %v2250
    %2264 = vmatpush1.msra.mxu0 %v2249
    %2265 = vmatprep.subr.mxu0 0.0
    %2266 = vmatpush1.msra.mxu0 0.0
    %2267 = vmatprep.subr.mxu0 0.0
    %2268 = vmatpush1.msra.mxu0 0.0
    %2269 = vmatprep.subr.mxu0 0.0
    %2270 = vmatpush1.msra.mxu0 0.0
    %2271 = vmatprep.subr.mxu0 0.0
    %2272 = vmatpush1.msra.mxu0 0.0
    %2273 = vmatprep.subr.mxu0 0.0
    %2274 = vmatpush1.msra.mxu0 0.0
    %2275 = vmatprep.subr.mxu0 0.0
    %2276 = vmatpush1.msra.mxu0 0.0
    %2277 = vmatprep.subr.mxu0 0.0
    %2278 = vmatpush1.msra.mxu0 0.0
    %2279 = vmatprep.subr.mxu0 0.0
    %2280 = vmatpush1.msra.mxu0 0.0
    %2281 = vmatprep.subr.mxu0 0.0
    %2282 = vmatpush1.msra.mxu0 0.0
    %2283 = vmatprep.subr.mxu0 0.0
    %2284 = vmatpush1.msra.mxu0 0.0
    %2285 = vmatprep.subr.mxu0 0.0
    %2286 = vmatpush1.msra.mxu0 0.0
    %2287 = vmatprep.subr.mxu0 0.0
    %2288 = vmatpush1.msra.mxu0 0.0
    %2289 = vmatprep.subr.mxu0 0.0
    %2290 = vmatpush1.msra.mxu0 0.0
    %2291 = vmatprep.subr.mxu0 0.0
    %2292 = vmatpush1.msra.mxu0 0.0
    %2293 = vmatprep.subr.mxu0 0.0
    %2294 = vmatpush1.msra.mxu0 0.0
    %2295 = vmatprep.subr.mxu0 0.0
    %2296 = vmatpush1.msra.mxu0 0.0
    %2297 = vmatprep.subr.mxu0 0.0
    %2298 = vmatpush1.msra.mxu0 0.0
    %2299 = vmatprep.subr.mxu0 0.0
    %2300 = vmatpush1.msra.mxu0 0.0
    %2301 = vmatprep.subr.mxu0 0.0
    %2302 = vmatpush1.msra.mxu0 0.0
    %2303 = vmatprep.subr.mxu0 0.0
    %2304 = vmatpush1.msra.mxu0 0.0
    %2305 = vmatprep.subr.mxu0 0.0
    %2306 = vmatpush1.msra.mxu0 0.0
    %2307 = vmatprep.subr.mxu0 0.0
    %2308 = vmatpush1.msra.mxu0 0.0
    %2309 = vmatprep.subr.mxu0 0.0
    %2310 = vmatpush1.msra.mxu0 0.0
    %2311 = vmatprep.subr.mxu0 0.0
    %2312 = vmatpush1.msra.mxu0 0.0
    %2313 = vmatprep.subr.mxu0 0.0
    %2314 = vmatpush1.msra.mxu0 0.0
    %2315 = vmatprep.subr.mxu0 0.0
    %2316 = vmatpush1.msra.mxu0 0.0
    %2317 = vmatprep.subr.mxu0 0.0
    %2318 = vmatpush1.msra.mxu0 0.0
    %2319 = vmatprep.subr.mxu0 0.0
    %2320 = vmatpush1.msra.mxu0 0.0
    %2321 = vmatprep.mubr.f32.mxu0 0.0
    %2322 = vmatmul.mubr.f32.gmra.mrb[0].mxu0 %v2253
    %v2323 = vpop.f32.mrb[0].mxu0
    %v2324 = vadd.f32 0.0, %v2323
    %v2325 = vpop.f32.mrb[0].mxu0
    %v2326 = vadd.f32 0.0, %v2325
    %2327 = vmatprep.mubr.f32.mxu0 0.0
    %2328 = vmatmul.mubr.f32.gmra.mrb[0].mxu0 %v2255
    %v2329 = vpop.f32.mrb[0].mxu0
    %v2330 = vadd.f32 0.0, %v2329
    %v2331 = vpop.f32.mrb[0].mxu0
    %v2332 = vadd.f32 0.0, %v2331
    %2333 = vdwg.mxu0
    %v2334 = vsel %vm303, %v2324, %v2326
    %v2335 = vsel %vm304, %v2330, %v2332
    %v2336 = vld [vmem:[#allocation2 + $0x40] sm:$0xff]
    %v2337 = vld [vmem:[#allocation2 + $0x48] sm:$0xff]
    %v2338 = vadd.f32 %v2334, %v2336
    %v2339 = vadd.f32 %v2335, %v2337
    %v2340 = vxor.u32 %v2338, 2147483648
    %v2341 = vxor.u32 %v2339, 2147483648
    %v2342 = vmul.f32 %v2340, 1.442695
    %v2343 = vpow.pop %v2342
    %v2344 = vmul.f32 %v2341, 1.442695
    %v2345 = vpow.pop %v2344
    %v2346 = vadd.f32 %v2343, 1.0
    %v2347 = vadd.f32 %v2345, 1.0
    %v2348 = vrcp.pop %v2346
    %v2349 = vmul.f32 1.0, %v2348
    %v2350 = vrcp.pop %v2347
    %v2351 = vmul.f32 1.0, %v2350
    %v2352 = vtanh.pop %v2338
    %v2353 = vtanh.pop %v2339
    %v2354 = vmul.f32 %v2349, %v2219
    %v2355 = vmul.f32 %v2351, %v2220
    %2358 = vrot.lane.b32.xlu0 %v2352, 32
    %v2359 = vpop.permute.xlu0 %2358
    %2360 = vrot.lane.b32.xlu0 %v2353, 32
    %v2361 = vpop.permute.xlu0 %2360
    %v2364 = vmul.f32 %v2349, %v2359
    %v2365 = vmul.f32 %v2351, %v2361
    %2368 = vrot.lane.b32.xlu0 %v2364, 32
    %v2369 = vpop.permute.xlu0 %2368
    %2370 = vrot.lane.b32.xlu0 %v2365, 32
    %v2371 = vpop.permute.xlu0 %2370
    %v2374 = vadd.f32 %v2354, %v2369
    %v2375 = vadd.f32 %v2355, %v2371
    %v2376 = vtanh.pop %v2374
    %v2377 = vtanh.pop %v2375
    %2380 = vrot.lane.b32.xlu0 %v2376, 32
    %v2381 = vpop.permute.xlu0 %2380
    %2382 = vrot.lane.b32.xlu0 %v2377, 32
    %v2383 = vpop.permute.xlu0 %2382
    %v2386 = vmul.f32 %v2349, %v2381
    %v2387 = vmul.f32 %v2351, %v2383
    %2389 = vrot.lane.b32.xlu0 %v2386, 64
    %v2390 = vpop.permute.xlu0 %2389
    %2392 = vst.msk [vmem:[#allocation3 + $0x20] sm:$0xff] %vm220, %v2390
    %2394 = vrot.lane.b32.xlu0 %v2387, 96
    %v2395 = vpop.permute.xlu0 %2394
    %2397 = vst.msk [vmem:[#allocation3 + $0x18] sm:$0xff] %vm368, %v2395
    %v2398 = vld [vmem:[%s5] sm:$0xff]
    %v2399 = vld [vmem:[%s5 + $0x8] sm:$0xff]
    %v2400 = vld [vmem:[%s5 + $0x10] sm:$0xff]
    %v2401 = vld [vmem:[%s5 + $0x18] sm:$0xff]
    %v2402 = vld [vmem:[%s5 + $0x20] sm:$0xff]
    %v2403 = vld [vmem:[%s5 + $0x28] sm:$0xff]
    %v2404 = vld [vmem:[%s5 + $0x30] sm:$0xff]
    %v2405 = vld [vmem:[%s5 + $0x38] sm:$0xff]
    %2406 = vrot.lane.b32.xlu0 %v2387, 64
    %v2407 = vpop.permute.xlu0 %2406
    %v2408 = vsel %vm220, %v2390, 0
    %v2410 = vsel %vm220, %v2407, 0
    %2412 = vmatprep.subr.mxu0 %v2399
    %2413 = vmatpush1.msra.mxu0 %v2398
    %2414 = vmatprep.subr.mxu0 %v2401
    %2415 = vmatpush1.msra.mxu0 %v2400
    %2416 = vmatprep.subr.mxu0 %v2403
    %2417 = vmatpush1.msra.mxu0 %v2402
    %2418 = vmatprep.subr.mxu0 %v2405
    %2419 = vmatpush1.msra.mxu0 %v2404
    %2420 = vmatprep.subr.mxu0 0.0
    %2421 = vmatpush1.msra.mxu0 0.0
    %2422 = vmatprep.subr.mxu0 0.0
    %2423 = vmatpush1.msra.mxu0 0.0
    %2424 = vmatprep.subr.mxu0 0.0
    %2425 = vmatpush1.msra.mxu0 0.0
    %2426 = vmatprep.subr.mxu0 0.0
    %2427 = vmatpush1.msra.mxu0 0.0
    %2428 = vmatprep.subr.mxu0 0.0
    %2429 = vmatpush1.msra.mxu0 0.0
    %2430 = vmatprep.subr.mxu0 0.0
    %2431 = vmatpush1.msra.mxu0 0.0
    %2432 = vmatprep.subr.mxu0 0.0
    %2433 = vmatpush1.msra.mxu0 0.0
    %2434 = vmatprep.subr.mxu0 0.0
    %2435 = vmatpush1.msra.mxu0 0.0
    %2436 = vmatprep.subr.mxu0 0.0
    %2437 = vmatpush1.msra.mxu0 0.0
    %2438 = vmatprep.subr.mxu0 0.0
    %2439 = vmatpush1.msra.mxu0 0.0
    %2440 = vmatprep.subr.mxu0 0.0
    %2441 = vmatpush1.msra.mxu0 0.0
    %2442 = vmatprep.subr.mxu0 0.0
    %2443 = vmatpush1.msra.mxu0 0.0
    %2444 = vmatprep.subr.mxu0 0.0
    %2445 = vmatpush1.msra.mxu0 0.0
    %2446 = vmatprep.subr.mxu0 0.0
    %2447 = vmatpush1.msra.mxu0 0.0
    %2448 = vmatprep.subr.mxu0 0.0
    %2449 = vmatpush1.msra.mxu0 0.0
    %2450 = vmatprep.subr.mxu0 0.0
    %2451 = vmatpush1.msra.mxu0 0.0
    %2452 = vmatprep.subr.mxu0 0.0
    %2453 = vmatpush1.msra.mxu0 0.0
    %2454 = vmatprep.subr.mxu0 0.0
    %2455 = vmatpush1.msra.mxu0 0.0
    %2456 = vmatprep.subr.mxu0 0.0
    %2457 = vmatpush1.msra.mxu0 0.0
    %2458 = vmatprep.subr.mxu0 0.0
    %2459 = vmatpush1.msra.mxu0 0.0
    %2460 = vmatprep.subr.mxu0 0.0
    %2461 = vmatpush1.msra.mxu0 0.0
    %2462 = vmatprep.subr.mxu0 0.0
    %2463 = vmatpush1.msra.mxu0 0.0
    %2464 = vmatprep.subr.mxu0 0.0
    %2465 = vmatpush1.msra.mxu0 0.0
    %2466 = vmatprep.subr.mxu0 0.0
    %2467 = vmatpush1.msra.mxu0 0.0
    %2468 = vmatprep.subr.mxu0 0.0
    %2469 = vmatpush1.msra.mxu0 0.0
    %2470 = vmatprep.subr.mxu0 0.0
    %2471 = vmatpush1.msra.mxu0 0.0
    %2472 = vmatprep.subr.mxu0 0.0
    %2473 = vmatpush1.msra.mxu0 0.0
    %2474 = vmatprep.subr.mxu0 0.0
    %2475 = vmatpush1.msra.mxu0 0.0
    %2476 = vmatprep.mubr.f32.mxu0 0.0
    %2477 = vmatmul.mubr.f32.gmra.mrb[0].mxu0 %v2408
    %v2478 = vpop.f32.mrb[0].mxu0
    %v2479 = vadd.f32 0.0, %v2478
    %v2480 = vpop.f32.mrb[0].mxu0
    %v2481 = vadd.f32 0.0, %v2480
    %2482 = vmatprep.mubr.f32.mxu0 0.0
    %2483 = vmatmul.mubr.f32.gmra.mrb[0].mxu0 %v2410
    %v2484 = vpop.f32.mrb[0].mxu0
    %v2485 = vadd.f32 0.0, %v2484
    %v2486 = vpop.f32.mrb[0].mxu0
    %v2487 = vadd.f32 0.0, %v2486
    %2488 = vdwg.mxu0
    %v2489 = vsel %vm303, %v2479, %v2481
    %v2490 = vsel %vm304, %v2485, %v2487
    %v2491 = vld [vmem:[#allocation2 + $0x50] sm:$0xff]
    %v2492 = vld [vmem:[#allocation2 + $0x58] sm:$0xff]
    %v2493 = vadd.f32 %v2489, %v2491
    %v2494 = vadd.f32 %v2490, %v2492
    %v2495 = vxor.u32 %v2493, 2147483648
    %v2496 = vxor.u32 %v2494, 2147483648
    %v2497 = vmul.f32 %v2495, 1.442695
    %v2498 = vpow.pop %v2497
    %v2499 = vmul.f32 %v2496, 1.442695
    %v2500 = vpow.pop %v2499
    %v2501 = vadd.f32 %v2498, 1.0
    %v2502 = vadd.f32 %v2500, 1.0
    %v2503 = vrcp.pop %v2501
    %v2504 = vmul.f32 1.0, %v2503
    %v2505 = vrcp.pop %v2502
    %v2506 = vmul.f32 1.0, %v2505
    %v2507 = vtanh.pop %v2493
    %v2508 = vtanh.pop %v2494
    %v2509 = vmul.f32 %v2504, %v2374
    %v2510 = vmul.f32 %v2506, %v2375
    %2513 = vrot.lane.b32.xlu0 %v2507, 32
    %v2514 = vpop.permute.xlu0 %2513
    %2515 = vrot.lane.b32.xlu0 %v2508, 32
    %v2516 = vpop.permute.xlu0 %2515
    %v2519 = vmul.f32 %v2504, %v2514
    %v2520 = vmul.f32 %v2506, %v2516
    %2523 = vrot.lane.b32.xlu0 %v2519, 32
    %v2524 = vpop.permute.xlu0 %2523
    %2525 = vrot.lane.b32.xlu0 %v2520, 32
    %v2526 = vpop.permute.xlu0 %2525
    %v2529 = vadd.f32 %v2509, %v2524
    %v2530 = vadd.f32 %v2510, %v2526
    %v2531 = vtanh.pop %v2529
    %v2532 = vtanh.pop %v2530
    %2535 = vrot.lane.b32.xlu0 %v2531, 32
    %v2536 = vpop.permute.xlu0 %2535
    %2537 = vrot.lane.b32.xlu0 %v2532, 32
    %v2538 = vpop.permute.xlu0 %2537
    %v2541 = vmul.f32 %v2504, %v2536
    %v2542 = vmul.f32 %v2506, %v2538
    %2544 = vrot.lane.b32.xlu0 %v2541, 64
    %v2545 = vpop.permute.xlu0 %2544
    %2547 = vst.msk [vmem:[#allocation3 + $0x28] sm:$0xff] %vm220, %v2545
    %2549 = vrot.lane.b32.xlu0 %v2542, 96
    %v2550 = vpop.permute.xlu0 %2549
    %2552 = vst.msk [vmem:[#allocation3 + $0x10] sm:$0xff] %vm368, %v2550
    %v2553 = vld [vmem:[%s5] sm:$0xff]
    %v2554 = vld [vmem:[%s5 + $0x8] sm:$0xff]
    %v2555 = vld [vmem:[%s5 + $0x10] sm:$0xff]
    %v2556 = vld [vmem:[%s5 + $0x18] sm:$0xff]
    %v2557 = vld [vmem:[%s5 + $0x20] sm:$0xff]
    %v2558 = vld [vmem:[%s5 + $0x28] sm:$0xff]
    %v2559 = vld [vmem:[%s5 + $0x30] sm:$0xff]
    %v2560 = vld [vmem:[%s5 + $0x38] sm:$0xff]
    %2561 = vrot.lane.b32.xlu0 %v2542, 64
    %v2562 = vpop.permute.xlu0 %2561
    %v2563 = vsel %vm220, %v2545, 0
    %v2565 = vsel %vm220, %v2562, 0
    %2567 = vmatprep.subr.mxu0 %v2554
    %2568 = vmatpush1.msra.mxu0 %v2553
    %2569 = vmatprep.subr.mxu0 %v2556
    %2570 = vmatpush1.msra.mxu0 %v2555
    %2571 = vmatprep.subr.mxu0 %v2558
    %2572 = vmatpush1.msra.mxu0 %v2557
    %2573 = vmatprep.subr.mxu0 %v2560
    %2574 = vmatpush1.msra.mxu0 %v2559
    %2575 = vmatprep.subr.mxu0 0.0
    %2576 = vmatpush1.msra.mxu0 0.0
    %2577 = vmatprep.subr.mxu0 0.0
    %2578 = vmatpush1.msra.mxu0 0.0
    %2579 = vmatprep.subr.mxu0 0.0
    %2580 = vmatpush1.msra.mxu0 0.0
    %2581 = vmatprep.subr.mxu0 0.0
    %2582 = vmatpush1.msra.mxu0 0.0
    %2583 = vmatprep.subr.mxu0 0.0
    %2584 = vmatpush1.msra.mxu0 0.0
    %2585 = vmatprep.subr.mxu0 0.0
    %2586 = vmatpush1.msra.mxu0 0.0
    %2587 = vmatprep.subr.mxu0 0.0
    %2588 = vmatpush1.msra.mxu0 0.0
    %2589 = vmatprep.subr.mxu0 0.0
    %2590 = vmatpush1.msra.mxu0 0.0
    %2591 = vmatprep.subr.mxu0 0.0
    %2592 = vmatpush1.msra.mxu0 0.0
    %2593 = vmatprep.subr.mxu0 0.0
    %2594 = vmatpush1.msra.mxu0 0.0
    %2595 = vmatprep.subr.mxu0 0.0
    %2596 = vmatpush1.msra.mxu0 0.0
    %2597 = vmatprep.subr.mxu0 0.0
    %2598 = vmatpush1.msra.mxu0 0.0
    %2599 = vmatprep.subr.mxu0 0.0
    %2600 = vmatpush1.msra.mxu0 0.0
    %2601 = vmatprep.subr.mxu0 0.0
    %2602 = vmatpush1.msra.mxu0 0.0
    %2603 = vmatprep.subr.mxu0 0.0
    %2604 = vmatpush1.msra.mxu0 0.0
    %2605 = vmatprep.subr.mxu0 0.0
    %2606 = vmatpush1.msra.mxu0 0.0
    %2607 = vmatprep.subr.mxu0 0.0
    %2608 = vmatpush1.msra.mxu0 0.0
    %2609 = vmatprep.subr.mxu0 0.0
    %2610 = vmatpush1.msra.mxu0 0.0
    %2611 = vmatprep.subr.mxu0 0.0
    %2612 = vmatpush1.msra.mxu0 0.0
    %2613 = vmatprep.subr.mxu0 0.0
    %2614 = vmatpush1.msra.mxu0 0.0
    %2615 = vmatprep.subr.mxu0 0.0
    %2616 = vmatpush1.msra.mxu0 0.0
    %2617 = vmatprep.subr.mxu0 0.0
    %2618 = vmatpush1.msra.mxu0 0.0
    %2619 = vmatprep.subr.mxu0 0.0
    %2620 = vmatpush1.msra.mxu0 0.0
    %2621 = vmatprep.subr.mxu0 0.0
    %2622 = vmatpush1.msra.mxu0 0.0
    %2623 = vmatprep.subr.mxu0 0.0
    %2624 = vmatpush1.msra.mxu0 0.0
    %2625 = vmatprep.subr.mxu0 0.0
    %2626 = vmatpush1.msra.mxu0 0.0
    %2627 = vmatprep.subr.mxu0 0.0
    %2628 = vmatpush1.msra.mxu0 0.0
    %2629 = vmatprep.subr.mxu0 0.0
    %2630 = vmatpush1.msra.mxu0 0.0
    %2631 = vmatprep.mubr.f32.mxu0 0.0
    %2632 = vmatmul.mubr.f32.gmra.mrb[0].mxu0 %v2563
    %v2633 = vpop.f32.mrb[0].mxu0
    %v2634 = vadd.f32 0.0, %v2633
    %v2635 = vpop.f32.mrb[0].mxu0
    %v2636 = vadd.f32 0.0, %v2635
    %2637 = vmatprep.mubr.f32.mxu0 0.0
    %2638 = vmatmul.mubr.f32.gmra.mrb[0].mxu0 %v2565
    %v2639 = vpop.f32.mrb[0].mxu0
    %v2640 = vadd.f32 0.0, %v2639
    %v2641 = vpop.f32.mrb[0].mxu0
    %v2642 = vadd.f32 0.0, %v2641
    %2643 = vdwg.mxu0
    %v2644 = vsel %vm303, %v2634, %v2636
    %v2645 = vsel %vm304, %v2640, %v2642
    %v2646 = vld [vmem:[#allocation2 + $0x60] sm:$0xff]
    %v2647 = vld [vmem:[#allocation2 + $0x68] sm:$0xff]
    %v2648 = vadd.f32 %v2644, %v2646
    %v2649 = vadd.f32 %v2645, %v2647
    %v2650 = vxor.u32 %v2648, 2147483648
    %v2651 = vxor.u32 %v2649, 2147483648
    %v2652 = vmul.f32 %v2650, 1.442695
    %v2653 = vpow.pop %v2652
    %v2654 = vmul.f32 %v2651, 1.442695
    %v2655 = vpow.pop %v2654
    %v2656 = vadd.f32 %v2653, 1.0
    %v2657 = vadd.f32 %v2655, 1.0
    %v2658 = vrcp.pop %v2656
    %v2659 = vmul.f32 1.0, %v2658
    %v2660 = vrcp.pop %v2657
    %v2661 = vmul.f32 1.0, %v2660
    %v2662 = vtanh.pop %v2648
    %v2663 = vtanh.pop %v2649
    %v2664 = vmul.f32 %v2659, %v2529
    %v2665 = vmul.f32 %v2661, %v2530
    %2668 = vrot.lane.b32.xlu0 %v2662, 32
    %v2669 = vpop.permute.xlu0 %2668
    %2670 = vrot.lane.b32.xlu0 %v2663, 32
    %v2671 = vpop.permute.xlu0 %2670
    %v2674 = vmul.f32 %v2659, %v2669
    %v2675 = vmul.f32 %v2661, %v2671
    %2678 = vrot.lane.b32.xlu0 %v2674, 32
    %v2679 = vpop.permute.xlu0 %2678
    %2680 = vrot.lane.b32.xlu0 %v2675, 32
    %v2681 = vpop.permute.xlu0 %2680
    %v2684 = vadd.f32 %v2664, %v2679
    %v2685 = vadd.f32 %v2665, %v2681
    %v2686 = vtanh.pop %v2684
    %v2687 = vtanh.pop %v2685
    %2690 = vrot.lane.b32.xlu0 %v2686, 32
    %v2691 = vpop.permute.xlu0 %2690
    %2692 = vrot.lane.b32.xlu0 %v2687, 32
    %v2693 = vpop.permute.xlu0 %2692
    %v2696 = vmul.f32 %v2659, %v2691
    %v2697 = vmul.f32 %v2661, %v2693
    %2699 = vrot.lane.b32.xlu0 %v2696, 64
    %v2700 = vpop.permute.xlu0 %2699
    %2702 = vst.msk [vmem:[#allocation3 + $0x30] sm:$0xff] %vm220, %v2700
    %2704 = vrot.lane.b32.xlu0 %v2697, 96
    %v2705 = vpop.permute.xlu0 %2704
    %2707 = vst.msk [vmem:[#allocation3 + $0x8] sm:$0xff] %vm368, %v2705
    %v2708 = vld [vmem:[%s5] sm:$0xff]
    %v2709 = vld [vmem:[%s5 + $0x8] sm:$0xff]
    %v2710 = vld [vmem:[%s5 + $0x10] sm:$0xff]
    %v2711 = vld [vmem:[%s5 + $0x18] sm:$0xff]
    %v2712 = vld [vmem:[%s5 + $0x20] sm:$0xff]
    %v2713 = vld [vmem:[%s5 + $0x28] sm:$0xff]
    %v2714 = vld [vmem:[%s5 + $0x30] sm:$0xff]
    %v2715 = vld [vmem:[%s5 + $0x38] sm:$0xff]
    %2716 = vrot.lane.b32.xlu0 %v2697, 64
    %v2717 = vpop.permute.xlu0 %2716
    %v2718 = vsel %vm220, %v2700, 0
    %v2720 = vsel %vm220, %v2717, 0
    %2722 = vmatprep.subr.mxu0 %v2709
    %2723 = vmatpush1.msra.mxu0 %v2708
    %2724 = vmatprep.subr.mxu0 %v2711
    %2725 = vmatpush1.msra.mxu0 %v2710
    %2726 = vmatprep.subr.mxu0 %v2713
    %2727 = vmatpush1.msra.mxu0 %v2712
    %2728 = vmatprep.subr.mxu0 %v2715
    %2729 = vmatpush1.msra.mxu0 %v2714
    %2730 = vmatprep.subr.mxu0 0.0
    %2731 = vmatpush1.msra.mxu0 0.0
    %2732 = vmatprep.subr.mxu0 0.0
    %2733 = vmatpush1.msra.mxu0 0.0
    %2734 = vmatprep.subr.mxu0 0.0
    %2735 = vmatpush1.msra.mxu0 0.0
    %2736 = vmatprep.subr.mxu0 0.0
    %2737 = vmatpush1.msra.mxu0 0.0
    %2738 = vmatprep.subr.mxu0 0.0
    %2739 = vmatpush1.msra.mxu0 0.0
    %2740 = vmatprep.subr.mxu0 0.0
    %2741 = vmatpush1.msra.mxu0 0.0
    %2742 = vmatprep.subr.mxu0 0.0
    %2743 = vmatpush1.msra.mxu0 0.0
    %2744 = vmatprep.subr.mxu0 0.0
    %2745 = vmatpush1.msra.mxu0 0.0
    %2746 = vmatprep.subr.mxu0 0.0
    %2747 = vmatpush1.msra.mxu0 0.0
    %2748 = vmatprep.subr.mxu0 0.0
    %2749 = vmatpush1.msra.mxu0 0.0
    %2750 = vmatprep.subr.mxu0 0.0
    %2751 = vmatpush1.msra.mxu0 0.0
    %2752 = vmatprep.subr.mxu0 0.0
    %2753 = vmatpush1.msra.mxu0 0.0
    %2754 = vmatprep.subr.mxu0 0.0
    %2755 = vmatpush1.msra.mxu0 0.0
    %2756 = vmatprep.subr.mxu0 0.0
    %2757 = vmatpush1.msra.mxu0 0.0
    %2758 = vmatprep.subr.mxu0 0.0
    %2759 = vmatpush1.msra.mxu0 0.0
    %2760 = vmatprep.subr.mxu0 0.0
    %2761 = vmatpush1.msra.mxu0 0.0
    %2762 = vmatprep.subr.mxu0 0.0
    %2763 = vmatpush1.msra.mxu0 0.0
    %2764 = vmatprep.subr.mxu0 0.0
    %2765 = vmatpush1.msra.mxu0 0.0
    %2766 = vmatprep.subr.mxu0 0.0
    %2767 = vmatpush1.msra.mxu0 0.0
    %2768 = vmatprep.subr.mxu0 0.0
    %2769 = vmatpush1.msra.mxu0 0.0
    %2770 = vmatprep.subr.mxu0 0.0
    %2771 = vmatpush1.msra.mxu0 0.0
    %2772 = vmatprep.subr.mxu0 0.0
    %2773 = vmatpush1.msra.mxu0 0.0
    %2774 = vmatprep.subr.mxu0 0.0
    %2775 = vmatpush1.msra.mxu0 0.0
    %2776 = vmatprep.subr.mxu0 0.0
    %2777 = vmatpush1.msra.mxu0 0.0
    %2778 = vmatprep.subr.mxu0 0.0
    %2779 = vmatpush1.msra.mxu0 0.0
    %2780 = vmatprep.subr.mxu0 0.0
    %2781 = vmatpush1.msra.mxu0 0.0
    %2782 = vmatprep.subr.mxu0 0.0
    %2783 = vmatpush1.msra.mxu0 0.0
    %2784 = vmatprep.subr.mxu0 0.0
    %2785 = vmatpush1.msra.mxu0 0.0
    %2786 = vmatprep.mubr.f32.mxu0 0.0
    %2787 = vmatmul.mubr.f32.gmra.mrb[0].mxu0 %v2718
    %v2788 = vpop.f32.mrb[0].mxu0
    %v2789 = vadd.f32 0.0, %v2788
    %v2790 = vpop.f32.mrb[0].mxu0
    %v2791 = vadd.f32 0.0, %v2790
    %2792 = vmatprep.mubr.f32.mxu0 0.0
    %2793 = vmatmul.mubr.f32.gmra.mrb[0].mxu0 %v2720
    %v2794 = vpop.f32.mrb[0].mxu0
    %v2795 = vadd.f32 0.0, %v2794
    %v2796 = vpop.f32.mrb[0].mxu0
    %v2797 = vadd.f32 0.0, %v2796
    %2798 = vdwg.mxu0
    %v2799 = vsel %vm303, %v2789, %v2791
    %v2800 = vsel %vm304, %v2795, %v2797
    %v2801 = vld [vmem:[#allocation2 + $0x70] sm:$0xff]
    %v2802 = vld [vmem:[#allocation2 + $0x78] sm:$0xff]
    %v2803 = vadd.f32 %v2799, %v2801
    %v2804 = vadd.f32 %v2800, %v2802
    %v2805 = vxor.u32 %v2803, 2147483648
    %v2806 = vxor.u32 %v2804, 2147483648
    %v2807 = vmul.f32 %v2805, 1.442695
    %v2808 = vpow.pop %v2807
    %v2809 = vmul.f32 %v2806, 1.442695
    %v2810 = vpow.pop %v2809
    %v2811 = vadd.f32 %v2808, 1.0
    %v2812 = vadd.f32 %v2810, 1.0
    %v2813 = vrcp.pop %v2811
    %v2814 = vmul.f32 1.0, %v2813
    %v2815 = vrcp.pop %v2812
    %v2816 = vmul.f32 1.0, %v2815
    %v2817 = vtanh.pop %v2803
    %v2818 = vtanh.pop %v2804
    %v2819 = vmul.f32 %v2814, %v2684
    %v2820 = vmul.f32 %v2816, %v2685
    %2823 = vrot.lane.b32.xlu0 %v2817, 32
    %v2824 = vpop.permute.xlu0 %2823
    %2825 = vrot.lane.b32.xlu0 %v2818, 32
    %v2826 = vpop.permute.xlu0 %2825
    %v2829 = vmul.f32 %v2814, %v2824
    %v2830 = vmul.f32 %v2816, %v2826
    %2833 = vrot.lane.b32.xlu0 %v2829, 32
    %v2834 = vpop.permute.xlu0 %2833
    %2835 = vrot.lane.b32.xlu0 %v2830, 32
    %v2836 = vpop.permute.xlu0 %2835
    %v2839 = vadd.f32 %v2819, %v2834
    %v2840 = vadd.f32 %v2820, %v2836
    %v2841 = vtanh.pop %v2839
    %v2842 = vtanh.pop %v2840
    %2845 = vrot.lane.b32.xlu0 %v2841, 32
    %v2846 = vpop.permute.xlu0 %2845
    %2847 = vrot.lane.b32.xlu0 %v2842, 32
    %v2848 = vpop.permute.xlu0 %2847
    %v2851 = vmul.f32 %v2814, %v2846
    %v2852 = vmul.f32 %v2816, %v2848
    %2854 = vrot.lane.b32.xlu0 %v2851, 64
    %v2855 = vpop.permute.xlu0 %2854
    %2857 = vst.msk [vmem:[#allocation3 + $0x38] sm:$0xff] %vm220, %v2855
    %2859 = vrot.lane.b32.xlu0 %v2852, 96
    %v2860 = vpop.permute.xlu0 %2859
    %2862 = vst.msk [vmem:[#allocation3] sm:$0xff] %vm368, %v2860
    %v2863 = vld [vmem:[#allocation3] sm:$0xff]
    %v2864 = vld [vmem:[#allocation3 + $0x8] sm:$0xff]
    %v2865 = vld [vmem:[#allocation3 + $0x10] sm:$0xff]
    %v2866 = vld [vmem:[#allocation3 + $0x18] sm:$0xff]
    %v2867 = vld [vmem:[#allocation3 + $0x20] sm:$0xff]
    %v2868 = vld [vmem:[#allocation3 + $0x28] sm:$0xff]
    %v2869 = vld [vmem:[#allocation3 + $0x30] sm:$0xff]
    %v2870 = vld [vmem:[#allocation3 + $0x38] sm:$0xff]
    %v2871 = vpack.c.bf16 %v2864, %v2863
    %v2872 = vpack.c.bf16 %v2866, %v2865
    %v2873 = vpack.c.bf16 %v2868, %v2867
    %v2874 = vpack.c.bf16 %v2870, %v2869
    %v2875 = vld [vmem:[%s7] sm:$0xf]
    %v2876 = vld [vmem:[%s7 + $0x4] sm:$0xf]
    %v2877 = vld [vmem:[%s7 + $0x8] sm:$0xf]
    %v2878 = vld [vmem:[%s7 + $0xc] sm:$0xf]
    %v2879 = vld [vmem:[%s7 + $0x10] sm:$0xf]
    %v2880 = vld [vmem:[%s7 + $0x14] sm:$0xf]
    %v2881 = vld [vmem:[%s7 + $0x18] sm:$0xf]
    %v2882 = vld [vmem:[%s7 + $0x1c] sm:$0xf]
    %v2883 = vld [vmem:[%s8] sm:$0x1]
    %v2885 = vlaneseq
    %v2886 = vshrl.u32 %v2885, 7
    %v2887 = vsub.s32 0, %v2886
    %v2888 = vrot.slane %v2883, %v2887
    %v2898 = vunpack.c.l.b16 %v2875
    %v2899 = vunpack.c.l.b16 %v2876
    %v2900 = vunpack.c.l.b16 %v2877
    %v2901 = vunpack.c.l.b16 %v2878
    %v2902 = vunpack.c.l.b16 %v2879
    %v2903 = vunpack.c.l.b16 %v2880
    %v2904 = vunpack.c.l.b16 %v2881
    %v2905 = vunpack.c.l.b16 %v2882
    %v2906 = vpack.c.b16 %v2899, %v2898
    %v2907 = vpack.c.b16 %v2901, %v2900
    %v2908 = vpack.c.b16 %v2903, %v2902
    %v2909 = vpack.c.b16 %v2905, %v2904
    %v2915 = vsel %vm1527, %v2871, 0
    %v2918 = vsel %vm1527, %v2872, 0
    %v2921 = vsel %vm1527, %v2873, 0
    %v2924 = vsel %vm1527, %v2874, 0
    %2926 = vmatprep.subr.bf16.mxu0 0
    %2927 = vmatpush1.bf16.msra.mxu0 %v2906
    %2928 = vmatprep.subr.bf16.mxu0 0
    %2929 = vmatpush1.bf16.msra.mxu0 %v2907
    %2930 = vmatprep.subr.bf16.mxu0 0
    %2931 = vmatpush1.bf16.msra.mxu0 %v2908
    %2932 = vmatprep.subr.bf16.mxu0 0
    %2933 = vmatpush1.bf16.msra.mxu0 %v2909
    %2934 = vmatprep.subr.bf16.mxu0 0
    %2935 = vmatpush1.bf16.msra.mxu0 0
    %2936 = vmatprep.subr.bf16.mxu0 0
    %2937 = vmatpush1.bf16.msra.mxu0 0
    %2938 = vmatprep.subr.bf16.mxu0 0
    %2939 = vmatpush1.bf16.msra.mxu0 0
    %2940 = vmatprep.subr.bf16.mxu0 0
    %2941 = vmatpush1.bf16.msra.mxu0 0
    %2942 = vmatprep.subr.bf16.mxu0 0
    %2943 = vmatpush1.bf16.msra.mxu0 0
    %2944 = vmatprep.subr.bf16.mxu0 0
    %2945 = vmatpush1.bf16.msra.mxu0 0
    %2946 = vmatprep.subr.bf16.mxu0 0
    %2947 = vmatpush1.bf16.msra.mxu0 0
    %2948 = vmatprep.subr.bf16.mxu0 0
    %2949 = vmatpush1.bf16.msra.mxu0 0
    %2950 = vmatprep.subr.bf16.mxu0 0
    %2951 = vmatpush1.bf16.msra.mxu0 0
    %2952 = vmatprep.subr.bf16.mxu0 0
    %2953 = vmatpush1.bf16.msra.mxu0 0
    %2954 = vmatprep.subr.bf16.mxu0 0
    %2955 = vmatpush1.bf16.msra.mxu0 0
    %2956 = vmatprep.subr.bf16.mxu0 0
    %2957 = vmatpush1.bf16.msra.mxu0 0
    %2958 = vmatprep.mubr.bf16.mxu0 0
    %2959 = vmatmul.mubr.bf16.gmra.mrb[0].mxu0 %v2915
    %v2960 = vpop.f32.mrb[0].mxu0
    %v2961 = vadd.f32 %v2888, %v2960
    %v2962 = vpop.f32.mrb[0].mxu0
    %v2963 = vpop.f32.mrb[0].mxu0
    %v2964 = vadd.f32 %v2888, %v2963
    %v2965 = vpop.f32.mrb[0].mxu0
    %2966 = vmatprep.mubr.bf16.mxu0 0
    %2967 = vmatmul.mubr.bf16.gmra.mrb[0].mxu0 %v2918
    %v2968 = vpop.f32.mrb[0].mxu0
    %v2969 = vadd.f32 %v2888, %v2968
    %v2970 = vpop.f32.mrb[0].mxu0
    %v2971 = vpop.f32.mrb[0].mxu0
    %v2972 = vadd.f32 %v2888, %v2971
    %v2973 = vpop.f32.mrb[0].mxu0
    %2974 = vmatprep.mubr.bf16.mxu0 0
    %2975 = vmatmul.mubr.bf16.gmra.mrb[0].mxu0 %v2921
    %v2976 = vpop.f32.mrb[0].mxu0
    %v2977 = vadd.f32 %v2888, %v2976
    %v2978 = vpop.f32.mrb[0].mxu0
    %v2979 = vpop.f32.mrb[0].mxu0
    %v2980 = vadd.f32 %v2888, %v2979
    %v2981 = vpop.f32.mrb[0].mxu0
    %2982 = vmatprep.mubr.bf16.mxu0 0
    %2983 = vmatmul.mubr.bf16.gmra.mrb[0].mxu0 %v2924
    %v2984 = vpop.f32.mrb[0].mxu0
    %v2985 = vadd.f32 %v2888, %v2984
    %v2986 = vpop.f32.mrb[0].mxu0
    %v2987 = vpop.f32.mrb[0].mxu0
    %v2988 = vadd.f32 %v2888, %v2987
    %v2989 = vpop.f32.mrb[0].mxu0
    %2990 = vdwg.mxu0
    %2991 = vst [vmem:[%s9] sm:$0xff] %v2961
    %2992 = vst [vmem:[%s9 + $0x8] sm:$0xff] %v2964
    %2993 = vst [vmem:[%s9 + $0x10] sm:$0xff] %v2969
    %2994 = vst [vmem:[%s9 + $0x18] sm:$0xff] %v2972
    %2995 = vst [vmem:[%s9 + $0x20] sm:$0xff] %v2977
    %2996 = vst [vmem:[%s9 + $0x28] sm:$0xff] %v2980
    %2997 = vst [vmem:[%s9 + $0x30] sm:$0xff] %v2985
    %2998 = vst [vmem:[%s9 + $0x38] sm:$0xff] %v2988
    // Predicated region
    $region50: #{generator_forward.1} parent=1 // pred_check
      _
    $region51: #{generator_forward.1} parent=1 // pred_check_branch
      %3000 = sbr.rel (0) target = $region53
    $region52: #{generator_forward.1} parent=1 // pred_region
      _
    $region53: #{generator_forward.1} parent=1 // pred_fallthru
      _
    // Predicated region
    $region54: #{generator_forward.1} parent=1 // pred_check
      _
    $region55: #{generator_forward.1} parent=1 // pred_check_branch
      %3002 = sbr.rel (0) target = $region57
    $region56: #{generator_forward.1} parent=1 // pred_region
      _
    $region57: #{generator_forward.1} parent=1 // pred_fallthru
      _
    %3003 = vsyncpa [#allocation5], 1
    %3004 = vsyncpa [#allocation7], 1

</llo_original>
